<compile_context>
chip_gen: v5e
topology: v5e:2x2
jax: 0.10.0
libtpu: 0.0.40
codegen_flags: <defaults>
</compile_context>

<pallas_src>
import math

import jax
import jax.numpy as jnp
from jax.experimental import pallas as pl
from jax.experimental.pallas import tpu as pltpu


def _ceil_to(x, m):
    return -(-x // m) * m


# ------------------------------ kernel ----------------------------------------

def _branch(x, w1, b1, w2, b2):
    """Per-element MLP + masked mean-pool for one set branch.

    x:  (TB, S, 1+F) f32 — the set mask is folded in as feature column 0.
    w1: (1+F, Hp) f32 (row 0 is zero so the mask column never enters the matmul),
    b1: (1, Hp) f32, w2: (Hp, Hp) bf16, b2: (1, Hp) f32.
    Per-element MLP runs as flat (TB*S, .) 2-D matmuls so the MXU sees a big M.
    """
    TB, S, Fp1 = x.shape
    Hp = w1.shape[1]
    m = x[:, :, 0:1]                                    # (TB, S, 1) set mask
    xf = x.reshape(TB * S, Fp1)
    # first layer: K is tiny (11..21), keep f32 operands
    h = jnp.dot(xf, w1, preferred_element_type=jnp.float32) + b1
    h = jnp.maximum(h, 0.0)
    # second layer: Hp x Hp on the MXU with bf16 operands, f32 accumulation
    h = jnp.dot(h.astype(jnp.bfloat16), w2, preferred_element_type=jnp.float32) + b2
    h = jnp.maximum(h, 0.0)
    h = h.reshape(TB, S, Hp) * m                        # mask padded set elements
    pooled = jnp.sum(h, axis=1)                         # (TB, Hp)
    norm = jnp.sum(m, axis=1)                           # (TB, 1)
    # EUP approximate reciprocal (free slot); ~1e-4 rel. error.
    return pooled * pl.reciprocal(norm, approx=True)


def setconv_kernel(
    samples_ref, sw1_ref, sb1_ref, sw2_ref, sb2_ref,
    predicates_ref, pw1_ref, pb1_ref, pw2_ref, pb2_ref,
    joins_ref, jw1_ref, jb1_ref, jw2_ref, jb2_ref,
    part_wa_ref, part_wb_ref, part_wc_ref, part_b1_ref,
    ow1_ref, ob1_ref, ow2t_ref, ob2_ref,
    pred_ref, feature_ref,
):
    hid_sample = _branch(samples_ref[...], sw1_ref[...], sb1_ref[...],
                         sw2_ref[...], sb2_ref[...])
    hid_predicate = _branch(predicates_ref[...], pw1_ref[...], pb1_ref[...],
                            pw2_ref[...], pb2_ref[...])
    hid_join = _branch(joins_ref[...], jw1_ref[...], jb1_ref[...],
                       jw2_ref[...], jb2_ref[...])

    bf16 = jnp.bfloat16
    # torch.cat((hs, hp, hj), 1) @ part_w1 == hs@Wa + hp@Wb + hj@Wc, where
    # Wa/Wb/Wc are the row-blocks of part_w1 — avoids an in-kernel concatenate.
    part = (jnp.dot(hid_sample.astype(bf16), part_wa_ref[...],
                    preferred_element_type=jnp.float32)
            + jnp.dot(hid_predicate.astype(bf16), part_wb_ref[...],
                      preferred_element_type=jnp.float32)
            + jnp.dot(hid_join.astype(bf16), part_wc_ref[...],
                      preferred_element_type=jnp.float32)
            + part_b1_ref[...])
    feature = jnp.maximum(part, 0.0)                                   # (TB, Hp)

    hid = jnp.maximum(
        jnp.dot(feature.astype(bf16), ow1_ref[...],
                preferred_element_type=jnp.float32) + ob1_ref[...], 0.0)
    # Degenerate (TB,Hp)@(Hp,1) matmul done on the VPU/XLU instead of the MXU:
    # ow2 is passed transposed as an f32 (1, Hp) row vector.
    logit = jnp.sum(hid * ow2t_ref[...], axis=-1, keepdims=True) + ob2_ref[...]
    pred = jax.nn.sigmoid(logit)                                       # (TB, 1)

    feature_ref[...] = feature
    # lane-dense store: broadcast the (TB,1) prediction across 128 lanes so the
    # output write is an unmasked vst; the wrapper slices column 0.
    pred_ref[...] = jnp.broadcast_to(pred, pred_ref.shape)


# ------------------------------ wrapper ----------------------------------------

def _padded_tile_bytes(shape, itemsize=4):
    """Rough VMEM footprint of one tile, padding last two dims to (8, 128)."""
    s = list(shape)
    s[-1] = _ceil_to(s[-1], 128)
    if len(s) >= 2:
        s[-2] = _ceil_to(s[-2], 8)
    return int(math.prod(s)) * itemsize


def setconv_forward(samples, predicates, joins,
                    sample_mask, predicate_mask, join_mask, params,
                    *, batch_tile=512):
    B, S_s, F_s = samples.shape
    _, S_p, F_p = predicates.shape
    _, S_j, F_j = joins.shape
    H = params["ow1"].shape[0]
    Hp = _ceil_to(max(H, 128), 128)        # lane/MXU-dense hidden width

    f32, bf16 = jnp.float32, jnp.bfloat16

    # ---- batch tiling: TB multiple of 8; pad B up to a multiple of TB (never
    # fall back to a single huge tile); keep >= 2 grid steps so v7x's two
    # TensorCores both get work and the DMA pipeline can overlap.
    TB = _ceil_to(min(batch_tile, max(B, 1)), 8)
    if _ceil_to(B, TB) // TB < 2 and B > 8:
        TB = _ceil_to(_ceil_to(B, 2) // 2, 8)
    B_pad = _ceil_to(B, TB)
    grid = (B_pad // TB,)

    def pad_to(a, shape):
        return jnp.pad(a, [(0, t - s) for s, t in zip(a.shape, shape)])

    def pad_batch(a, fill=0.0):
        if a.shape[0] == B_pad:
            return a
        return jnp.pad(a, [(0, B_pad - a.shape[0])] + [(0, 0)] * (a.ndim - 1),
                       constant_values=fill)

    def fuse_mask(x, mask, S):
        # Fold the set mask in as feature column 0: one DMA stream per branch and
        # no (TB, S, 1) lane-padded mask tiles in VMEM.
        return jnp.concatenate(
            [mask.reshape(x.shape[0], S, 1).astype(f32), x.astype(f32)], axis=2)

    def first_layer_w(w):
        # (F, H) -> (1+F, Hp) with a zero row so the mask column contributes 0.
        return pad_to(jnp.concatenate([jnp.zeros((1, w.shape[1]), f32), w], axis=0),
                      (w.shape[0] + 1, Hp))

    # batch pad: set rows with zeros, mask rows with ones (avoids 0-division NaNs
    # in the padded rows; they are sliced off below anyway).
    samples_aug = fuse_mask(pad_batch(samples), pad_batch(sample_mask, 1.0), S_s)
    predicates_aug = fuse_mask(pad_batch(predicates),
                               pad_batch(predicate_mask, 1.0), S_p)
    joins_aug = fuse_mask(pad_batch(joins), pad_batch(join_mask, 1.0), S_j)

    sw1 = first_layer_w(params["sw1"]);  sb1 = pad_to(params["sb1"], (1, Hp))
    sw2 = pad_to(params["sw2"], (Hp, Hp)).astype(bf16)
    sb2 = pad_to(params["sb2"], (1, Hp))
    pw1 = first_layer_w(params["pw1"]);  pb1 = pad_to(params["pb1"], (1, Hp))
    pw2 = pad_to(params["pw2"], (Hp, Hp)).astype(bf16)
    pb2 = pad_to(params["pb2"], (1, Hp))
    jw1 = first_layer_w(params["jw1"]);  jb1 = pad_to(params["jb1"], (1, Hp))
    jw2 = pad_to(params["jw2"], (Hp, Hp)).astype(bf16)
    jb2 = pad_to(params["jb2"], (1, Hp))
    part_wa = pad_to(params["part_wa"], (Hp, Hp)).astype(bf16)
    part_wb = pad_to(params["part_wb"], (Hp, Hp)).astype(bf16)
    part_wc = pad_to(params["part_wc"], (Hp, Hp)).astype(bf16)
    part_b1 = pad_to(params["part_b1"], (1, Hp))
    ow1 = pad_to(params["ow1"], (Hp, Hp)).astype(bf16)
    ob1 = pad_to(params["ob1"], (1, Hp))
    ow2t = pad_to(params["ow2"].T, (1, Hp))    # f32 row vector for the VPU logit
    ob2 = params["ob2"]                        # (1, 1)

    inputs = (samples_aug, sw1, sb1, sw2, sb2,
              predicates_aug, pw1, pb1, pw2, pb2,
              joins_aug, jw1, jb1, jw2, jb2,
              part_wa, part_wb, part_wc, part_b1,
              ow1, ob1, ow2t, ob2)

    def batch3(S, F):
        # batch-tiled (TB, S, F): last two dims equal the full array dims.
        return pl.BlockSpec((TB, S, F), lambda i: (i, 0, 0))

    def const(a):
        # weights/biases: full block, constant index_map -> VMEM-resident.
        nd = a.ndim
        return pl.BlockSpec(a.shape, lambda i, _nd=nd: (0,) * _nd)

    in_specs = [
        batch3(S_s, F_s + 1), const(sw1), const(sb1), const(sw2), const(sb2),
        batch3(S_p, F_p + 1), const(pw1), const(pb1), const(pw2), const(pb2),
        batch3(S_j, F_j + 1), const(jw1), const(jb1), const(jw2), const(jb2),
        const(part_wa), const(part_wb), const(part_wc), const(part_b1),
        const(ow1), const(ob1), const(ow2t), const(ob2),
    ]
    out_specs = (
        pl.BlockSpec((TB, 128), lambda i: (i, 0)),   # pred, lane-dense broadcast
        pl.BlockSpec((TB, Hp), lambda i: (i, 0)),    # feature
    )

    # ---- VMEM budget: double-buffered batch tiles + resident weights + flat
    # (TB*S, Hp) intermediates, capped generation-aware (v7x: 64 MiB per core).
    tile_shapes = [(TB, S_s, F_s + 1), (TB, S_p, F_p + 1), (TB, S_j, F_j + 1),
                   (TB, 128), (TB, Hp)]
    weight_bytes = sum(_padded_tile_bytes(a.shape, a.dtype.itemsize)
                       for a in inputs if a.ndim == 2)
    interm_bytes = 6 * _padded_tile_bytes((TB * max(S_s, S_p, S_j), Hp))
    vmem_est = (2 * sum(_padded_tile_bytes(s) for s in tile_shapes)
                + 2 * weight_bytes + interm_bytes)
    try:
        vmem_cap = int(getattr(pltpu.get_tpu_info(), "vmem_capacity_bytes",
                               128 * 1024 * 1024))
    except Exception:
        vmem_cap = 128 * 1024 * 1024
    vmem_limit = int(min(int(0.6 * vmem_cap),
                         max(16 * 1024 * 1024, 2 * vmem_est)))

    flops = 2 * B_pad * (S_s * ((F_s + 1) * Hp + Hp * Hp)
                         + S_p * ((F_p + 1) * Hp + Hp * Hp)
                         + S_j * ((F_j + 1) * Hp + Hp * Hp)
                         + 3 * Hp * Hp          # part_mlp1 as three Hp x Hp dots
                         + Hp * Hp              # out_mlp1
                         + Hp)                  # out_mlp2 (VPU)
    bytes_accessed = int(sum(a.size * a.dtype.itemsize for a in inputs)
                         + B_pad * (Hp + 128) * 4)
    cost = pl.CostEstimate(flops=int(flops), transcendentals=4 * B_pad,
                           bytes_accessed=bytes_accessed)

    pred_full, feature_full = pl.pallas_call(
        setconv_kernel,
        out_shape=(jax.ShapeDtypeStruct((B_pad, 128), f32),
                   jax.ShapeDtypeStruct((B_pad, Hp), f32)),
        grid=grid,
        in_specs=in_specs,
        out_specs=out_specs,
        compiler_params=pltpu.CompilerParams(
            dimension_semantics=("parallel",),   # lets v7x split batch across 2 TCs
            vmem_limit_bytes=vmem_limit),
        cost_estimate=cost,
    )(*inputs)

    return pred_full[:B, :1], feature_full[:B, :H]


# ----------------------- parameter construction -------------------------------

def _linear_params(key, fan_in, fan_out):
    """PyTorch-style Linear init; weight stored as (in, out)."""
    kw, kb = jax.random.split(key)
    bound = 1.0 / jnp.sqrt(jnp.float32(fan_in))
    w = jax.random.uniform(kw, (fan_in, fan_out), jnp.float32, -bound, bound)
    b = jax.random.uniform(kb, (1, fan_out), jnp.float32, -bound, bound)
    return w, b


def init_setconv_params(key, sample_feats=10, col_feats=10, opval_feats=10,
                        join_feats=10, hid_units=256):
    predicate_feats = col_feats + opval_feats
    keys = jax.random.split(key, 10)
    p = {}
    p["sw1"], p["sb1"] = _linear_params(keys[0], sample_feats, hid_units)
    p["sw2"], p["sb2"] = _linear_params(keys[1], hid_units, hid_units)
    p["pw1"], p["pb1"] = _linear_params(keys[2], predicate_feats, hid_units)
    p["pw2"], p["pb2"] = _linear_params(keys[3], hid_units, hid_units)
    p["jw1"], p["jb1"] = _linear_params(keys[4], join_feats, hid_units)
    p["jw2"], p["jb2"] = _linear_params(keys[5], hid_units, hid_units)
    part_w1, p["part_b1"] = _linear_params(keys[6], hid_units * 3, hid_units)
    # split part_mlp1 weight into its three row-blocks (see kernel comment)
    p["part_wa"] = part_w1[:hid_units]
    p["part_wb"] = part_w1[hid_units:2 * hid_units]
    p["part_wc"] = part_w1[2 * hid_units:]
    p["ow1"], p["ob1"] = _linear_params(keys[7], hid_units, hid_units)
    p["ow2"], p["ob2"] = _linear_params(keys[8], hid_units, 1)
    # TODO(synk): part_mlp2 in the torch module is never used in forward(), so it
    # is intentionally not instantiated here.
    return p


# ----------------------- pure-JAX reference (for sanity) ----------------------

def setconv_reference(samples, predicates, joins,
                      sample_mask, predicate_mask, join_mask, p):
    def branch(x, m, w1, b1, w2, b2):
        h = jnp.maximum(x @ w1 + b1, 0.0)
        h = jnp.maximum(h @ w2 + b2, 0.0)
        h = h * m
        return jnp.sum(h, axis=1) / jnp.sum(m, axis=1)

    hs = branch(samples, sample_mask, p["sw1"], p["sb1"], p["sw2"], p["sb2"])
    hp = branch(predicates, predicate_mask, p["pw1"], p["pb1"], p["pw2"], p["pb2"])
    hj = branch(joins, join_mask, p["jw1"], p["jb1"], p["jw2"], p["jb2"])
    hid = jnp.concatenate((hs, hp, hj), axis=1)
    part_w1 = jnp.concatenate((p["part_wa"], p["part_wb"], p["part_wc"]), axis=0)
    feature = jnp.maximum(hid @ part_w1 + p["part_b1"], 0.0)
    h = jnp.maximum(feature @ p["ow1"] + p["ob1"], 0.0)
    pred = jax.nn.sigmoid(h @ p["ow2"] + p["ob2"])
    return pred, feature


# ----------------------------------- main --------------------------------------

if __name__ == "__main__":
    B = 32            # tiled into TB=16 -> grid of 2, TB*S = 128 rows per matmul
    HID = 32          # padded to 128 lanes inside the wrapper
    SAMPLE_FEATS, COL_FEATS, OPVAL_FEATS, JOIN_FEATS = 10, 10, 10, 10
    PRED_FEATS = COL_FEATS + OPVAL_FEATS
    N_SAMPLES, N_PREDS, N_JOINS = 8, 8, 8

    key = jax.random.PRNGKey(0)
    k_param, k_s, k_p, k_j, k_ms, k_mp, k_mj = jax.random.split(key, 7)

    params = init_setconv_params(
        k_param, sample_feats=SAMPLE_FEATS, col_feats=COL_FEATS,
        opval_feats=OPVAL_FEATS, join_feats=JOIN_FEATS, hid_units=HID)

    samples = jax.random.normal(k_s, (B, N_SAMPLES, SAMPLE_FEATS), jnp.float32)
    predicates = jax.random.normal(k_p, (B, N_PREDS, PRED_FEATS), jnp.float32)
    joins = jax.random.normal(k_j, (B, N_JOINS, JOIN_FEATS), jnp.float32)

    def make_mask(k, n):
        m = jax.random.bernoulli(k, 0.7, (B, n, 1)).astype(jnp.float32)
        # guarantee at least one valid element per batch row (avoid /0)
        return m.at[:, 0, :].set(1.0)

    sample_mask = make_mask(k_ms, N_SAMPLES)
    predicate_mask = make_mask(k_mp, N_PREDS)
    join_mask = make_mask(k_mj, N_JOINS)

    pred, feature = setconv_forward(samples, predicates, joins,
                                    sample_mask, predicate_mask, join_mask,
                                    params, batch_tile=512)
    pred = jax.block_until_ready(pred)
    feature = jax.block_until_ready(feature)

    pred_ref, feature_ref = setconv_reference(samples, predicates, joins,
                                              sample_mask, predicate_mask,
                                              join_mask, params)
    assert pred.shape == (B, 1) and feature.shape == (B, HID)
    # tolerance accounts for bf16 MXU operands (f32 accumulation) and the EUP
    # approximate reciprocal in the masked mean-pool
    assert jnp.allclose(pred, pred_ref, atol=2e-2, rtol=2e-2)
    assert jnp.allclose(feature, feature_ref, atol=2e-2, rtol=2e-2)

    print("KERNEL_OK")
</pallas_src>

<mosaic_0001>
module attributes {stable_mosaic.version = 11 : i64} {
  func.func @setconv_kernel(%arg0: i32, %arg1: memref<16x8x11xf32, #tpu.memory_space<vmem>>, %arg2: memref<11x128xf32, #tpu.memory_space<vmem>>, %arg3: memref<1x128xf32, #tpu.memory_space<vmem>>, %arg4: memref<128x128xbf16, #tpu.memory_space<vmem>>, %arg5: memref<1x128xf32, #tpu.memory_space<vmem>>, %arg6: memref<16x8x21xf32, #tpu.memory_space<vmem>>, %arg7: memref<21x128xf32, #tpu.memory_space<vmem>>, %arg8: memref<1x128xf32, #tpu.memory_space<vmem>>, %arg9: memref<128x128xbf16, #tpu.memory_space<vmem>>, %arg10: memref<1x128xf32, #tpu.memory_space<vmem>>, %arg11: memref<16x8x11xf32, #tpu.memory_space<vmem>>, %arg12: memref<11x128xf32, #tpu.memory_space<vmem>>, %arg13: memref<1x128xf32, #tpu.memory_space<vmem>>, %arg14: memref<128x128xbf16, #tpu.memory_space<vmem>>, %arg15: memref<1x128xf32, #tpu.memory_space<vmem>>, %arg16: memref<128x128xbf16, #tpu.memory_space<vmem>>, %arg17: memref<128x128xbf16, #tpu.memory_space<vmem>>, %arg18: memref<128x128xbf16, #tpu.memory_space<vmem>>, %arg19: memref<1x128xf32, #tpu.memory_space<vmem>>, %arg20: memref<128x128xbf16, #tpu.memory_space<vmem>>, %arg21: memref<1x128xf32, #tpu.memory_space<vmem>>, %arg22: memref<1x128xf32, #tpu.memory_space<vmem>>, %arg23: memref<1x1xf32, #tpu.memory_space<vmem>>, %arg24: memref<16x128xf32, #tpu.memory_space<vmem>>, %arg25: memref<16x128xf32, #tpu.memory_space<vmem>>) attributes {dimension_semantics = [#tpu.dimension_semantics<parallel>], iteration_bounds = array<i64: 2>, scalar_prefetch = 0 : i64, scratch_operands = 0 : i64, tpu.core_type = #tpu.core_type<tc>, window_params = [{transform_indices = @transform_0, window_bounds = array<i64: 16, 8, 11>}, {pipeline_mode = #tpu.pipeline_mode<synchronous>, transform_indices = @transform_1, window_bounds = array<i64: 11, 128>}, {pipeline_mode = #tpu.pipeline_mode<synchronous>, transform_indices = @transform_2, window_bounds = array<i64: 1, 128>}, {pipeline_mode = #tpu.pipeline_mode<synchronous>, transform_indices = @transform_3, window_bounds = array<i64: 128, 128>}, {pipeline_mode = #tpu.pipeline_mode<synchronous>, transform_indices = @transform_4, window_bounds = array<i64: 1, 128>}, {transform_indices = @transform_5, window_bounds = array<i64: 16, 8, 21>}, {pipeline_mode = #tpu.pipeline_mode<synchronous>, transform_indices = @transform_6, window_bounds = array<i64: 21, 128>}, {pipeline_mode = #tpu.pipeline_mode<synchronous>, transform_indices = @transform_7, window_bounds = array<i64: 1, 128>}, {pipeline_mode = #tpu.pipeline_mode<synchronous>, transform_indices = @transform_8, window_bounds = array<i64: 128, 128>}, {pipeline_mode = #tpu.pipeline_mode<synchronous>, transform_indices = @transform_9, window_bounds = array<i64: 1, 128>}, {transform_indices = @transform_10, window_bounds = array<i64: 16, 8, 11>}, {pipeline_mode = #tpu.pipeline_mode<synchronous>, transform_indices = @transform_11, window_bounds = array<i64: 11, 128>}, {pipeline_mode = #tpu.pipeline_mode<synchronous>, transform_indices = @transform_12, window_bounds = array<i64: 1, 128>}, {pipeline_mode = #tpu.pipeline_mode<synchronous>, transform_indices = @transform_13, window_bounds = array<i64: 128, 128>}, {pipeline_mode = #tpu.pipeline_mode<synchronous>, transform_indices = @transform_14, window_bounds = array<i64: 1, 128>}, {pipeline_mode = #tpu.pipeline_mode<synchronous>, transform_indices = @transform_15, window_bounds = array<i64: 128, 128>}, {pipeline_mode = #tpu.pipeline_mode<synchronous>, transform_indices = @transform_16, window_bounds = array<i64: 128, 128>}, {pipeline_mode = #tpu.pipeline_mode<synchronous>, transform_indices = @transform_17, window_bounds = array<i64: 128, 128>}, {pipeline_mode = #tpu.pipeline_mode<synchronous>, transform_indices = @transform_18, window_bounds = array<i64: 1, 128>}, {pipeline_mode = #tpu.pipeline_mode<synchronous>, transform_indices = @transform_19, window_bounds = array<i64: 128, 128>}, {pipeline_mode = #tpu.pipeline_mode<synchronous>, transform_indices = @transform_20, window_bounds = array<i64: 1, 128>}, {pipeline_mode = #tpu.pipeline_mode<synchronous>, transform_indices = @transform_21, window_bounds = array<i64: 1, 128>}, {pipeline_mode = #tpu.pipeline_mode<synchronous>, transform_indices = @transform_22, window_bounds = array<i64: 1, 1>}, {transform_indices = @transform_23, window_bounds = array<i64: 16, 128>}, {transform_indices = @transform_24, window_bounds = array<i64: 16, 128>}]} {
    %c0 = arith.constant 0 : index
    %c0_0 = arith.constant 0 : index
    %c0_1 = arith.constant 0 : index
    %0 = vector.load %arg1[%c0, %c0_0, %c0_1] : memref<16x8x11xf32, #tpu.memory_space<vmem>>, vector<16x8x11xf32>
    %c0_2 = arith.constant 0 : index
    %c0_3 = arith.constant 0 : index
    %1 = vector.load %arg2[%c0_2, %c0_3] : memref<11x128xf32, #tpu.memory_space<vmem>>, vector<11x128xf32>
    %c0_4 = arith.constant 0 : index
    %c0_5 = arith.constant 0 : index
    %2 = vector.load %arg3[%c0_4, %c0_5] : memref<1x128xf32, #tpu.memory_space<vmem>>, vector<1x128xf32>
    %c0_6 = arith.constant 0 : index
    %c0_7 = arith.constant 0 : index
    %3 = vector.load %arg4[%c0_6, %c0_7] : memref<128x128xbf16, #tpu.memory_space<vmem>>, vector<128x128xbf16>
    %c0_8 = arith.constant 0 : index
    %c0_9 = arith.constant 0 : index
    %4 = vector.load %arg5[%c0_8, %c0_9] : memref<1x128xf32, #tpu.memory_space<vmem>>, vector<1x128xf32>
    %5 = vector.extract_strided_slice %0 {offsets = [0, 0, 0], sizes = [16, 8, 1], strides = [1, 1, 1]} : vector<16x8x11xf32> to vector<16x8x1xf32>
    %6 = vector.shape_cast %0 : vector<16x8x11xf32> to vector<128x11xf32>
    %cst = arith.constant dense<0.000000e+00> : vector<128x128xf32>
    %7 = tpu.matmul %6, %1, %cst {dimension_numbers = #tpu.dot_dimension_numbers<[1], [0], [0], [1], [0, 0, 1, 1], [], []>} : vector<128x11xf32>, vector<11x128xf32>, vector<128x128xf32> -> vector<128x128xf32>
    %8 = vector.broadcast %2 : vector<1x128xf32> to vector<128x128xf32>
    %9 = arith.addf %7, %8 : vector<128x128xf32>
    %cst_10 = arith.constant 0.000000e+00 : f32
    %10 = vector.broadcast %cst_10 : f32 to vector<128x128xf32>
    %11 = arith.maximumf %9, %10 : vector<128x128xf32>
    %12 = arith.truncf %11 : vector<128x128xf32> to vector<128x128xbf16>
    %cst_11 = arith.constant dense<0.000000e+00> : vector<128x128xf32>
    %13 = tpu.matmul %12, %3, %cst_11 {dimension_numbers = #tpu.dot_dimension_numbers<[1], [0], [0], [1], [0, 0, 1, 1], [], []>} : vector<128x128xbf16>, vector<128x128xbf16>, vector<128x128xf32> -> vector<128x128xf32>
    %14 = vector.broadcast %4 : vector<1x128xf32> to vector<128x128xf32>
    %15 = arith.addf %13, %14 : vector<128x128xf32>
    %cst_12 = arith.constant 0.000000e+00 : f32
    %16 = vector.broadcast %cst_12 : f32 to vector<128x128xf32>
    %17 = arith.maximumf %15, %16 : vector<128x128xf32>
    %18 = vector.shape_cast %17 : vector<128x128xf32> to vector<16x8x128xf32>
    %19 = vector.broadcast %5 : vector<16x8x1xf32> to vector<16x8x128xf32>
    %20 = arith.mulf %18, %19 : vector<16x8x128xf32>
    %cst_13 = arith.constant dense<0.000000e+00> : vector<16x128xf32>
    %21 = vector.multi_reduction <add>, %20, %cst_13 [1] : vector<16x8x128xf32> to vector<16x128xf32>
    %cst_14 = arith.constant dense<0.000000e+00> : vector<16x1xf32>
    %22 = vector.multi_reduction <add>, %5, %cst_14 [1] : vector<16x8x1xf32> to vector<16x1xf32>
    %23 = tpu.reciprocal %22 {approx = true} : vector<16x1xf32> -> vector<16x1xf32>
    %24 = vector.broadcast %23 : vector<16x1xf32> to vector<16x128xf32>
    %25 = arith.mulf %21, %24 : vector<16x128xf32>
    %c0_15 = arith.constant 0 : index
    %c0_16 = arith.constant 0 : index
    %c0_17 = arith.constant 0 : index
    %26 = vector.load %arg6[%c0_15, %c0_16, %c0_17] : memref<16x8x21xf32, #tpu.memory_space<vmem>>, vector<16x8x21xf32>
    %c0_18 = arith.constant 0 : index
    %c0_19 = arith.constant 0 : index
    %27 = vector.load %arg7[%c0_18, %c0_19] : memref<21x128xf32, #tpu.memory_space<vmem>>, vector<21x128xf32>
    %c0_20 = arith.constant 0 : index
    %c0_21 = arith.constant 0 : index
    %28 = vector.load %arg8[%c0_20, %c0_21] : memref<1x128xf32, #tpu.memory_space<vmem>>, vector<1x128xf32>
    %c0_22 = arith.constant 0 : index
    %c0_23 = arith.constant 0 : index
    %29 = vector.load %arg9[%c0_22, %c0_23] : memref<128x128xbf16, #tpu.memory_space<vmem>>, vector<128x128xbf16>
    %c0_24 = arith.constant 0 : index
    %c0_25 = arith.constant 0 : index
    %30 = vector.load %arg10[%c0_24, %c0_25] : memref<1x128xf32, #tpu.memory_space<vmem>>, vector<1x128xf32>
    %31 = vector.extract_strided_slice %26 {offsets = [0, 0, 0], sizes = [16, 8, 1], strides = [1, 1, 1]} : vector<16x8x21xf32> to vector<16x8x1xf32>
    %32 = vector.shape_cast %26 : vector<16x8x21xf32> to vector<128x21xf32>
    %cst_26 = arith.constant dense<0.000000e+00> : vector<128x128xf32>
    %33 = tpu.matmul %32, %27, %cst_26 {dimension_numbers = #tpu.dot_dimension_numbers<[1], [0], [0], [1], [0, 0, 1, 1], [], []>} : vector<128x21xf32>, vector<21x128xf32>, vector<128x128xf32> -> vector<128x128xf32>
    %34 = vector.broadcast %28 : vector<1x128xf32> to vector<128x128xf32>
    %35 = arith.addf %33, %34 : vector<128x128xf32>
    %cst_27 = arith.constant 0.000000e+00 : f32
    %36 = vector.broadcast %cst_27 : f32 to vector<128x128xf32>
    %37 = arith.maximumf %35, %36 : vector<128x128xf32>
    %38 = arith.truncf %37 : vector<128x128xf32> to vector<128x128xbf16>
    %cst_28 = arith.constant dense<0.000000e+00> : vector<128x128xf32>
    %39 = tpu.matmul %38, %29, %cst_28 {dimension_numbers = #tpu.dot_dimension_numbers<[1], [0], [0], [1], [0, 0, 1, 1], [], []>} : vector<128x128xbf16>, vector<128x128xbf16>, vector<128x128xf32> -> vector<128x128xf32>
    %40 = vector.broadcast %30 : vector<1x128xf32> to vector<128x128xf32>
    %41 = arith.addf %39, %40 : vector<128x128xf32>
    %cst_29 = arith.constant 0.000000e+00 : f32
    %42 = vector.broadcast %cst_29 : f32 to vector<128x128xf32>
    %43 = arith.maximumf %41, %42 : vector<128x128xf32>
    %44 = vector.shape_cast %43 : vector<128x128xf32> to vector<16x8x128xf32>
    %45 = vector.broadcast %31 : vector<16x8x1xf32> to vector<16x8x128xf32>
    %46 = arith.mulf %44, %45 : vector<16x8x128xf32>
    %cst_30 = arith.constant dense<0.000000e+00> : vector<16x128xf32>
    %47 = vector.multi_reduction <add>, %46, %cst_30 [1] : vector<16x8x128xf32> to vector<16x128xf32>
    %cst_31 = arith.constant dense<0.000000e+00> : vector<16x1xf32>
    %48 = vector.multi_reduction <add>, %31, %cst_31 [1] : vector<16x8x1xf32> to vector<16x1xf32>
    %49 = tpu.reciprocal %48 {approx = true} : vector<16x1xf32> -> vector<16x1xf32>
    %50 = vector.broadcast %49 : vector<16x1xf32> to vector<16x128xf32>
    %51 = arith.mulf %47, %50 : vector<16x128xf32>
    %c0_32 = arith.constant 0 : index
    %c0_33 = arith.constant 0 : index
    %c0_34 = arith.constant 0 : index
    %52 = vector.load %arg11[%c0_32, %c0_33, %c0_34] : memref<16x8x11xf32, #tpu.memory_space<vmem>>, vector<16x8x11xf32>
    %c0_35 = arith.constant 0 : index
    %c0_36 = arith.constant 0 : index
    %53 = vector.load %arg12[%c0_35, %c0_36] : memref<11x128xf32, #tpu.memory_space<vmem>>, vector<11x128xf32>
    %c0_37 = arith.constant 0 : index
    %c0_38 = arith.constant 0 : index
    %54 = vector.load %arg13[%c0_37, %c0_38] : memref<1x128xf32, #tpu.memory_space<vmem>>, vector<1x128xf32>
    %c0_39 = arith.constant 0 : index
    %c0_40 = arith.constant 0 : index
    %55 = vector.load %arg14[%c0_39, %c0_40] : memref<128x128xbf16, #tpu.memory_space<vmem>>, vector<128x128xbf16>
    %c0_41 = arith.constant 0 : index
    %c0_42 = arith.constant 0 : index
    %56 = vector.load %arg15[%c0_41, %c0_42] : memref<1x128xf32, #tpu.memory_space<vmem>>, vector<1x128xf32>
    %57 = vector.extract_strided_slice %52 {offsets = [0, 0, 0], sizes = [16, 8, 1], strides = [1, 1, 1]} : vector<16x8x11xf32> to vector<16x8x1xf32>
    %58 = vector.shape_cast %52 : vector<16x8x11xf32> to vector<128x11xf32>
    %cst_43 = arith.constant dense<0.000000e+00> : vector<128x128xf32>
    %59 = tpu.matmul %58, %53, %cst_43 {dimension_numbers = #tpu.dot_dimension_numbers<[1], [0], [0], [1], [0, 0, 1, 1], [], []>} : vector<128x11xf32>, vector<11x128xf32>, vector<128x128xf32> -> vector<128x128xf32>
    %60 = vector.broadcast %54 : vector<1x128xf32> to vector<128x128xf32>
    %61 = arith.addf %59, %60 : vector<128x128xf32>
    %cst_44 = arith.constant 0.000000e+00 : f32
    %62 = vector.broadcast %cst_44 : f32 to vector<128x128xf32>
    %63 = arith.maximumf %61, %62 : vector<128x128xf32>
    %64 = arith.truncf %63 : vector<128x128xf32> to vector<128x128xbf16>
    %cst_45 = arith.constant dense<0.000000e+00> : vector<128x128xf32>
    %65 = tpu.matmul %64, %55, %cst_45 {dimension_numbers = #tpu.dot_dimension_numbers<[1], [0], [0], [1], [0, 0, 1, 1], [], []>} : vector<128x128xbf16>, vector<128x128xbf16>, vector<128x128xf32> -> vector<128x128xf32>
    %66 = vector.broadcast %56 : vector<1x128xf32> to vector<128x128xf32>
    %67 = arith.addf %65, %66 : vector<128x128xf32>
    %cst_46 = arith.constant 0.000000e+00 : f32
    %68 = vector.broadcast %cst_46 : f32 to vector<128x128xf32>
    %69 = arith.maximumf %67, %68 : vector<128x128xf32>
    %70 = vector.shape_cast %69 : vector<128x128xf32> to vector<16x8x128xf32>
    %71 = vector.broadcast %57 : vector<16x8x1xf32> to vector<16x8x128xf32>
    %72 = arith.mulf %70, %71 : vector<16x8x128xf32>
    %cst_47 = arith.constant dense<0.000000e+00> : vector<16x128xf32>
    %73 = vector.multi_reduction <add>, %72, %cst_47 [1] : vector<16x8x128xf32> to vector<16x128xf32>
    %cst_48 = arith.constant dense<0.000000e+00> : vector<16x1xf32>
    %74 = vector.multi_reduction <add>, %57, %cst_48 [1] : vector<16x8x1xf32> to vector<16x1xf32>
    %75 = tpu.reciprocal %74 {approx = true} : vector<16x1xf32> -> vector<16x1xf32>
    %76 = vector.broadcast %75 : vector<16x1xf32> to vector<16x128xf32>
    %77 = arith.mulf %73, %76 : vector<16x128xf32>
    %78 = arith.truncf %25 : vector<16x128xf32> to vector<16x128xbf16>
    %c0_49 = arith.constant 0 : index
    %c0_50 = arith.constant 0 : index
    %79 = vector.load %arg16[%c0_49, %c0_50] : memref<128x128xbf16, #tpu.memory_space<vmem>>, vector<128x128xbf16>
    %cst_51 = arith.constant dense<0.000000e+00> : vector<16x128xf32>
    %80 = tpu.matmul %78, %79, %cst_51 {dimension_numbers = #tpu.dot_dimension_numbers<[1], [0], [0], [1], [0, 0, 1, 1], [], []>} : vector<16x128xbf16>, vector<128x128xbf16>, vector<16x128xf32> -> vector<16x128xf32>
    %81 = arith.truncf %51 : vector<16x128xf32> to vector<16x128xbf16>
    %c0_52 = arith.constant 0 : index
    %c0_53 = arith.constant 0 : index
    %82 = vector.load %arg17[%c0_52, %c0_53] : memref<128x128xbf16, #tpu.memory_space<vmem>>, vector<128x128xbf16>
    %cst_54 = arith.constant dense<0.000000e+00> : vector<16x128xf32>
    %83 = tpu.matmul %81, %82, %cst_54 {dimension_numbers = #tpu.dot_dimension_numbers<[1], [0], [0], [1], [0, 0, 1, 1], [], []>} : vector<16x128xbf16>, vector<128x128xbf16>, vector<16x128xf32> -> vector<16x128xf32>
    %84 = arith.addf %80, %83 : vector<16x128xf32>
    %85 = arith.truncf %77 : vector<16x128xf32> to vector<16x128xbf16>
    %c0_55 = arith.constant 0 : index
    %c0_56 = arith.constant 0 : index
    %86 = vector.load %arg18[%c0_55, %c0_56] : memref<128x128xbf16, #tpu.memory_space<vmem>>, vector<128x128xbf16>
    %cst_57 = arith.constant dense<0.000000e+00> : vector<16x128xf32>
    %87 = tpu.matmul %85, %86, %cst_57 {dimension_numbers = #tpu.dot_dimension_numbers<[1], [0], [0], [1], [0, 0, 1, 1], [], []>} : vector<16x128xbf16>, vector<128x128xbf16>, vector<16x128xf32> -> vector<16x128xf32>
    %88 = arith.addf %84, %87 : vector<16x128xf32>
    %c0_58 = arith.constant 0 : index
    %c0_59 = arith.constant 0 : index
    %89 = vector.load %arg19[%c0_58, %c0_59] : memref<1x128xf32, #tpu.memory_space<vmem>>, vector<1x128xf32>
    %90 = vector.broadcast %89 : vector<1x128xf32> to vector<16x128xf32>
    %91 = arith.addf %88, %90 : vector<16x128xf32>
    %cst_60 = arith.constant 0.000000e+00 : f32
    %92 = vector.broadcast %cst_60 : f32 to vector<16x128xf32>
    %93 = arith.maximumf %91, %92 : vector<16x128xf32>
    %94 = arith.truncf %93 : vector<16x128xf32> to vector<16x128xbf16>
    %c0_61 = arith.constant 0 : index
    %c0_62 = arith.constant 0 : index
    %95 = vector.load %arg20[%c0_61, %c0_62] : memref<128x128xbf16, #tpu.memory_space<vmem>>, vector<128x128xbf16>
    %cst_63 = arith.constant dense<0.000000e+00> : vector<16x128xf32>
    %96 = tpu.matmul %94, %95, %cst_63 {dimension_numbers = #tpu.dot_dimension_numbers<[1], [0], [0], [1], [0, 0, 1, 1], [], []>} : vector<16x128xbf16>, vector<128x128xbf16>, vector<16x128xf32> -> vector<16x128xf32>
    %c0_64 = arith.constant 0 : index
    %c0_65 = arith.constant 0 : index
    %97 = vector.load %arg21[%c0_64, %c0_65] : memref<1x128xf32, #tpu.memory_space<vmem>>, vector<1x128xf32>
    %98 = vector.broadcast %97 : vector<1x128xf32> to vector<16x128xf32>
    %99 = arith.addf %96, %98 : vector<16x128xf32>
    %cst_66 = arith.constant 0.000000e+00 : f32
    %100 = vector.broadcast %cst_66 : f32 to vector<16x128xf32>
    %101 = arith.maximumf %99, %100 : vector<16x128xf32>
    %c0_67 = arith.constant 0 : index
    %c0_68 = arith.constant 0 : index
    %102 = vector.load %arg22[%c0_67, %c0_68] : memref<1x128xf32, #tpu.memory_space<vmem>>, vector<1x128xf32>
    %103 = vector.broadcast %102 : vector<1x128xf32> to vector<16x128xf32>
    %104 = arith.mulf %101, %103 : vector<16x128xf32>
    %cst_69 = arith.constant dense<0.000000e+00> : vector<16xf32>
    %105 = vector.multi_reduction <add>, %104, %cst_69 [1] : vector<16x128xf32> to vector<16xf32>
    %106 = vector.shape_cast %105 : vector<16xf32> to vector<16x1xf32>
    %c0_70 = arith.constant 0 : index
    %c0_71 = arith.constant 0 : index
    %107 = vector.load %arg23[%c0_70, %c0_71] : memref<1x1xf32, #tpu.memory_space<vmem>>, vector<1x1xf32>
    %108 = vector.broadcast %107 : vector<1x1xf32> to vector<16x1xf32>
    %109 = arith.addf %106, %108 : vector<16x1xf32>
    %110 = arith.negf %109 : vector<16x1xf32>
    %111 = math.exp %110 : vector<16x1xf32>
    %cst_72 = arith.constant 1.000000e+00 : f32
    %112 = vector.broadcast %cst_72 : f32 to vector<16x1xf32>
    %113 = arith.addf %112, %111 : vector<16x1xf32>
    %114 = arith.divf %112, %113 : vector<16x1xf32>
    %c0_73 = arith.constant 0 : index
    %c0_74 = arith.constant 0 : index
    %115 = vector.load %arg25[%c0_73, %c0_74] : memref<16x128xf32, #tpu.memory_space<vmem>>, vector<16x128xf32>
    tpu.vector_store %arg25[%c0_73, %c0_74], %93 {strides = array<i32>} : memref<16x128xf32, #tpu.memory_space<vmem>>, vector<16x128xf32>,
    %116 = vector.shape_cast %114 : vector<16x1xf32> to vector<16x1xf32>
    %117 = vector.broadcast %116 : vector<16x1xf32> to vector<16x128xf32>
    %c0_75 = arith.constant 0 : index
    %c0_76 = arith.constant 0 : index
    %118 = vector.load %arg24[%c0_75, %c0_76] : memref<16x128xf32, #tpu.memory_space<vmem>>, vector<16x128xf32>
    tpu.vector_store %arg24[%c0_75, %c0_76], %117 {strides = array<i32>} : memref<16x128xf32, #tpu.memory_space<vmem>>, vector<16x128xf32>,
    return
  }
  func.func @transform_0(%arg0: i32) -> (i32, i32, i32) {
    %c0_i32 = arith.constant 0 : i32
    %c0_i32_0 = arith.constant 0 : i32
    %c0_i32_1 = arith.constant 0 : i32
    return %arg0, %c0_i32, %c0_i32_0 : i32, i32, i32
  }
  func.func @transform_1(%arg0: i32) -> (i32, i32) {
    %c0_i32 = arith.constant 0 : i32
    %c0_i32_0 = arith.constant 0 : i32
    %c0_i32_1 = arith.constant 0 : i32
    return %c0_i32, %c0_i32_0 : i32, i32
  }
  func.func @transform_2(%arg0: i32) -> (i32, i32) {
    %c0_i32 = arith.constant 0 : i32
    %c0_i32_0 = arith.constant 0 : i32
    %c0_i32_1 = arith.constant 0 : i32
    return %c0_i32, %c0_i32_0 : i32, i32
  }
  func.func @transform_3(%arg0: i32) -> (i32, i32) {
    %c0_i32 = arith.constant 0 : i32
    %c0_i32_0 = arith.constant 0 : i32
    %c0_i32_1 = arith.constant 0 : i32
    return %c0_i32, %c0_i32_0 : i32, i32
  }
  func.func @transform_4(%arg0: i32) -> (i32, i32) {
    %c0_i32 = arith.constant 0 : i32
    %c0_i32_0 = arith.constant 0 : i32
    %c0_i32_1 = arith.constant 0 : i32
    return %c0_i32, %c0_i32_0 : i32, i32
  }
  func.func @transform_5(%arg0: i32) -> (i32, i32, i32) {
    %c0_i32 = arith.constant 0 : i32
    %c0_i32_0 = arith.constant 0 : i32
    %c0_i32_1 = arith.constant 0 : i32
    return %arg0, %c0_i32, %c0_i32_0 : i32, i32, i32
  }
  func.func @transform_6(%arg0: i32) -> (i32, i32) {
    %c0_i32 = arith.constant 0 : i32
    %c0_i32_0 = arith.constant 0 : i32
    %c0_i32_1 = arith.constant 0 : i32
    return %c0_i32, %c0_i32_0 : i32, i32
  }
  func.func @transform_7(%arg0: i32) -> (i32, i32) {
    %c0_i32 = arith.constant 0 : i32
    %c0_i32_0 = arith.constant 0 : i32
    %c0_i32_1 = arith.constant 0 : i32
    return %c0_i32, %c0_i32_0 : i32, i32
  }
  func.func @transform_8(%arg0: i32) -> (i32, i32) {
    %c0_i32 = arith.constant 0 : i32
    %c0_i32_0 = arith.constant 0 : i32
    %c0_i32_1 = arith.constant 0 : i32
    return %c0_i32, %c0_i32_0 : i32, i32
  }
  func.func @transform_9(%arg0: i32) -> (i32, i32) {
    %c0_i32 = arith.constant 0 : i32
    %c0_i32_0 = arith.constant 0 : i32
    %c0_i32_1 = arith.constant 0 : i32
    return %c0_i32, %c0_i32_0 : i32, i32
  }
  func.func @transform_10(%arg0: i32) -> (i32, i32, i32) {
    %c0_i32 = arith.constant 0 : i32
    %c0_i32_0 = arith.constant 0 : i32
    %c0_i32_1 = arith.constant 0 : i32
    return %arg0, %c0_i32, %c0_i32_0 : i32, i32, i32
  }
  func.func @transform_11(%arg0: i32) -> (i32, i32) {
    %c0_i32 = arith.constant 0 : i32
    %c0_i32_0 = arith.constant 0 : i32
    %c0_i32_1 = arith.constant 0 : i32
    return %c0_i32, %c0_i32_0 : i32, i32
  }
  func.func @transform_12(%arg0: i32) -> (i32, i32) {
    %c0_i32 = arith.constant 0 : i32
    %c0_i32_0 = arith.constant 0 : i32
    %c0_i32_1 = arith.constant 0 : i32
    return %c0_i32, %c0_i32_0 : i32, i32
  }
  func.func @transform_13(%arg0: i32) -> (i32, i32) {
    %c0_i32 = arith.constant 0 : i32
    %c0_i32_0 = arith.constant 0 : i32
    %c0_i32_1 = arith.constant 0 : i32
    return %c0_i32, %c0_i32_0 : i32, i32
  }
  func.func @transform_14(%arg0: i32) -> (i32, i32) {
    %c0_i32 = arith.constant 0 : i32
    %c0_i32_0 = arith.constant 0 : i32
    %c0_i32_1 = arith.constant 0 : i32
    return %c0_i32, %c0_i32_0 : i32, i32
  }
  func.func @transform_15(%arg0: i32) -> (i32, i32) {
    %c0_i32 = arith.constant 0 : i32
    %c0_i32_0 = arith.constant 0 : i32
    %c0_i32_1 = arith.constant 0 : i32
    return %c0_i32, %c0_i32_0 : i32, i32
  }
  func.func @transform_16(%arg0: i32) -> (i32, i32) {
    %c0_i32 = arith.constant 0 : i32
    %c0_i32_0 = arith.constant 0 : i32
    %c0_i32_1 = arith.constant 0 : i32
    return %c0_i32, %c0_i32_0 : i32, i32
  }
  func.func @transform_17(%arg0: i32) -> (i32, i32) {
    %c0_i32 = arith.constant 0 : i32
    %c0_i32_0 = arith.constant 0 : i32
    %c0_i32_1 = arith.constant 0 : i32
    return %c0_i32, %c0_i32_0 : i32, i32
  }
  func.func @transform_18(%arg0: i32) -> (i32, i32) {
    %c0_i32 = arith.constant 0 : i32
    %c0_i32_0 = arith.constant 0 : i32
    %c0_i32_1 = arith.constant 0 : i32
    return %c0_i32, %c0_i32_0 : i32, i32
  }
  func.func @transform_19(%arg0: i32) -> (i32, i32) {
    %c0_i32 = arith.constant 0 : i32
    %c0_i32_0 = arith.constant 0 : i32
    %c0_i32_1 = arith.constant 0 : i32
    return %c0_i32, %c0_i32_0 : i32, i32
  }
  func.func @transform_20(%arg0: i32) -> (i32, i32) {
    %c0_i32 = arith.constant 0 : i32
    %c0_i32_0 = arith.constant 0 : i32
    %c0_i32_1 = arith.constant 0 : i32
    return %c0_i32, %c0_i32_0 : i32, i32
  }
  func.func @transform_21(%arg0: i32) -> (i32, i32) {
    %c0_i32 = arith.constant 0 : i32
    %c0_i32_0 = arith.constant 0 : i32
    %c0_i32_1 = arith.constant 0 : i32
    return %c0_i32, %c0_i32_0 : i32, i32
  }
  func.func @transform_22(%arg0: i32) -> (i32, i32) {
    %c0_i32 = arith.constant 0 : i32
    %c0_i32_0 = arith.constant 0 : i32
    %c0_i32_1 = arith.constant 0 : i32
    return %c0_i32, %c0_i32_0 : i32, i32
  }
  func.func @transform_23(%arg0: i32) -> (i32, i32) {
    %c0_i32 = arith.constant 0 : i32
    %c0_i32_0 = arith.constant 0 : i32
    return %arg0, %c0_i32 : i32, i32
  }
  func.func @transform_24(%arg0: i32) -> (i32, i32) {
    %c0_i32 = arith.constant 0 : i32
    %c0_i32_0 = arith.constant 0 : i32
    return %arg0, %c0_i32 : i32, i32
  }
}

</mosaic_0001>

<llo_original>
// kernel: tpu_custom_call.1
$region0: #{tpu_custom_call.1}
  #allocation0 [shape = 'u32[]', space=smem, size = 0x4, offset = 0x4, fixed_abs, tag = 'smem constant byte address 0x4 - core index']
  #allocation1 [shape = 'u32[72,128]{1,0:T(1,128)}', space=vmem, size = 0x9000, scoped, tag = 'internal scratch']
  #allocation2 [shape = 'f32[1,1]{1,0:T(1,128)S(1)}', space=vmem, size = 0x200, scoped, tag = 'scoped memory for tpu_custom_call.1']
  %s0 = inlined_call_operand.vmem [shape: f32[32,8,11], index: 0, kind: input, shape index: {}]
  %s1 = inlined_call_operand.vmem [shape: f32[11,128], index: 1, kind: input, shape index: {}]
  %s2 = inlined_call_operand.vmem [shape: f32[1,128], index: 2, kind: input, shape index: {}]
  %s3 = inlined_call_operand.vmem [shape: bf16[128,128], index: 3, kind: input, shape index: {}]
  %s4 = inlined_call_operand.vmem [shape: f32[1,128], index: 4, kind: input, shape index: {}]
  %s5 = inlined_call_operand.vmem [shape: f32[32,8,21], index: 5, kind: input, shape index: {}]
  %s6 = inlined_call_operand.vmem [shape: f32[21,128], index: 6, kind: input, shape index: {}]
  %s7 = inlined_call_operand.vmem [shape: f32[1,128], index: 7, kind: input, shape index: {}]
  %s8 = inlined_call_operand.vmem [shape: bf16[128,128], index: 8, kind: input, shape index: {}]
  %s9 = inlined_call_operand.vmem [shape: f32[1,128], index: 9, kind: input, shape index: {}]
  %s10 = inlined_call_operand.vmem [shape: f32[32,8,11], index: 10, kind: input, shape index: {}]
  %s11 = inlined_call_operand.vmem [shape: f32[11,128], index: 11, kind: input, shape index: {}]
  %s12 = inlined_call_operand.vmem [shape: f32[1,128], index: 12, kind: input, shape index: {}]
  %s13 = inlined_call_operand.vmem [shape: bf16[128,128], index: 13, kind: input, shape index: {}]
  %s14 = inlined_call_operand.vmem [shape: f32[1,128], index: 14, kind: input, shape index: {}]
  %s15 = inlined_call_operand.vmem [shape: bf16[128,128], index: 15, kind: input, shape index: {}]
  %s16 = inlined_call_operand.vmem [shape: bf16[128,128], index: 16, kind: input, shape index: {}]
  %s17 = inlined_call_operand.vmem [shape: bf16[128,128], index: 17, kind: input, shape index: {}]
  %s18 = inlined_call_operand.vmem [shape: f32[1,128], index: 18, kind: input, shape index: {}]
  %s19 = inlined_call_operand.vmem [shape: bf16[128,128], index: 19, kind: input, shape index: {}]
  %s20 = inlined_call_operand.vmem [shape: f32[1,128], index: 20, kind: input, shape index: {}]
  %s21 = inlined_call_operand.vmem [shape: f32[1,128], index: 21, kind: input, shape index: {}]
  %s22 = inlined_call_operand.<no memory space> [shape: f32[1,1], index: 22, kind: input, shape index: {}]
  %s23 = inlined_call_operand.hbm [shape: f32[32,128], index: 23, kind: output, shape index: {0}]
  %s24 = inlined_call_operand.hbm [shape: f32[32,128], index: 24, kind: output, shape index: {1}]
  %25 = xla_tuple %s23, %s24
  %s26 = sld [smem:[#allocation0]]
  $region133: #{tpu_custom_call.1} parent=0
    _
  %s28 = ssub.s32 1, %s26
  %s29 = scalar_select 0, %s28, %s26
  %v30 = vstv %s22
  %31 = vst [vmem:[#allocation2] sm:$0x1] %v30
  $region1: #{tpu_custom_call.1} parent=0
    #allocation3 [shape = 'u8[16384]{0}', space=vmem, size = 0x4000, scoped, tag = 'output window, operand 0']
    #allocation4 [shape = 's32[2]{0}', space=sflag, size = 0x8, scoped, tag = 'scoped memory for tpu_custom_call.1']
    #allocation5 [shape = 'u8[16384]{0}', space=vmem, size = 0x4000, scoped, tag = 'output window, operand 1']
    #allocation6 [shape = 's32[2]{0}', space=sflag, size = 0x8, scoped, tag = 'scoped memory for tpu_custom_call.1']
    %32 = vsyncpa [#allocation4], 0
    %s33 = scalar_lea.sflag [#allocation4], 1
    %34 = vsyncpa %s33, 0
    %35 = vsyncpa [#allocation6], 0
    %s36 = scalar_lea.sflag [#allocation6], 1
    %37 = vsyncpa %s36, 0
    loop: start=0, step=1, limit=4
    $region2: #{tpu_custom_call.1} parent=1 // loop_pre_header
      _
    $region3: #{tpu_custom_call.1} parent=1 // loop_header
      %s39 = sphi 0, %s43
      %p40 = scmp.ge.s32.totalorder %s39, 4
      %s49 = sphi 0, %s51
      %s52 = sphi 0, %s49
      %s53 = sphi 0, %s52
      %s69 = sphi 0, %s53
      %s73 = sphi 0, %s73
      %s75 = sphi 0, %s73
      %s76 = sphi 0, %s75
      %s90 = sphi 0, %s76
      %s94 = sphi 0, %s94
      %s96 = sphi 0, %s94
      %s97 = sphi 0, %s96
      %s111 = sphi 0, %s97
      %s115 = sphi 0, %s115
      %s117 = sphi 0, %s115
      %s118 = sphi 0, %s117
      %s132 = sphi 0, %s118
      %s136 = sphi 0, %s136
      %s138 = sphi 0, %s136
      %s139 = sphi 0, %s138
      %s153 = sphi 0, %s139
      %s159 = sphi 0, %s161
      %s162 = sphi 0, %s159
      %s163 = sphi 0, %s162
      %s179 = sphi 0, %s163
      %s183 = sphi 0, %s183
      %s185 = sphi 0, %s183
      %s186 = sphi 0, %s185
      %s200 = sphi 0, %s186
      %s204 = sphi 0, %s204
      %s206 = sphi 0, %s204
      %s207 = sphi 0, %s206
      %s221 = sphi 0, %s207
      %s225 = sphi 0, %s225
      %s227 = sphi 0, %s225
      %s228 = sphi 0, %s227
      %s242 = sphi 0, %s228
      %s246 = sphi 0, %s246
      %s248 = sphi 0, %s246
      %s249 = sphi 0, %s248
      %s263 = sphi 0, %s249
      %s269 = sphi 0, %s271
      %s272 = sphi 0, %s269
      %s273 = sphi 0, %s272
      %s289 = sphi 0, %s273
      %s293 = sphi 0, %s293
      %s295 = sphi 0, %s293
      %s296 = sphi 0, %s295
      %s310 = sphi 0, %s296
      %s314 = sphi 0, %s314
      %s316 = sphi 0, %s314
      %s317 = sphi 0, %s316
      %s331 = sphi 0, %s317
      %s335 = sphi 0, %s335
      %s337 = sphi 0, %s335
      %s338 = sphi 0, %s337
      %s352 = sphi 0, %s338
      %s356 = sphi 0, %s356
      %s358 = sphi 0, %s356
      %s359 = sphi 0, %s358
      %s373 = sphi 0, %s359
      %s377 = sphi 0, %s377
      %s379 = sphi 0, %s377
      %s380 = sphi 0, %s379
      %s394 = sphi 0, %s380
      %s398 = sphi 0, %s398
      %s400 = sphi 0, %s398
      %s401 = sphi 0, %s400
      %s415 = sphi 0, %s401
      %s419 = sphi 0, %s419
      %s421 = sphi 0, %s419
      %s422 = sphi 0, %s421
      %s436 = sphi 0, %s422
      %s440 = sphi 0, %s440
      %s442 = sphi 0, %s440
      %s443 = sphi 0, %s442
      %s457 = sphi 0, %s443
      %s461 = sphi 0, %s461
      %s463 = sphi 0, %s461
      %s464 = sphi 0, %s463
      %s478 = sphi 0, %s464
      %s482 = sphi 0, %s482
      %s484 = sphi 0, %s482
      %s485 = sphi 0, %s484
      %s499 = sphi 0, %s485
      %s503 = sphi 0, %s503
      %s505 = sphi 0, %s503
      %s506 = sphi 0, %s505
      %s520 = sphi 0, %s506
      %s524 = sphi 0, %s524
      %s526 = sphi 0, %s524
      %s527 = sphi 0, %s526
      %s541 = sphi 0, %s527
      %s547 = sphi 0, %s549
      %s550 = sphi 0, %s547
      %s551 = sphi 0, %s550
      %s567 = sphi 0, %s551
      %s573 = sphi 0, %s575
      %s576 = sphi 0, %s573
      %s577 = sphi 0, %s576
      %s593 = sphi 0, %s577
    $region4: #{tpu_custom_call.1} parent=1 // loop_header_branch
      %42 = sbr.rel (%p40) target = $region8
    $region5: #{tpu_custom_call.1} parent=1 // loop_body
      %s44 = ssub.s32 %s39, 1
      %s45 = ssub.s32 %s39, 2
      %s46 = sadd.s32 %s39, 1
      %s47 = ssub.s32 %s39, %s46
      %p48 = scmp.eq.s32.totalorder %s47, 0
      %s50 = sadd.s32 %s49, 1
      %s51 = scalar_select %p48, %s49, %s50
      %p54 = pneg %p48
      %p55 = scmp.eq.s32.totalorder %s39, 1
      %p56 = por %p54, %p55
      %p57 = scmp.ne.s32.totalorder %s49, %s52
      %p58 = scmp.eq.s32.totalorder %s39, 0
      %p59 = por %p57, %p58
      %p60 = scmp.ne.s32.totalorder %s49, %s52
      %p61 = scmp.eq.s32.totalorder %s44, 1
      %p62 = por %p60, %p61
      %p63 = scmp.ne.s32.totalorder %s52, %s53
      %p64 = scmp.eq.s32.totalorder %s44, 0
      %p65 = por %p63, %p64
      %p66 = scmp.ne.s32.totalorder %s52, %s53
      %p67 = scmp.eq.s32.totalorder %s45, 1
      %p68 = por %p66, %p67
      %p70 = scmp.ne.s32.totalorder %s53, %s69
      %p71 = scmp.eq.s32.totalorder %s45, 0
      %p72 = por %p70, %p71
      %s74 = sadd.s32 %s73, 1
      %p77 = scmp.eq.s32.totalorder %s39, 1
      %p78 = scmp.ne.s32.totalorder %s73, %s75
      %p79 = scmp.eq.s32.totalorder %s39, 0
      %p80 = por %p78, %p79
      %p81 = scmp.ne.s32.totalorder %s73, %s75
      %p82 = scmp.eq.s32.totalorder %s44, 1
      %p83 = por %p81, %p82
      %p84 = scmp.ne.s32.totalorder %s75, %s76
      %p85 = scmp.eq.s32.totalorder %s44, 0
      %p86 = por %p84, %p85
      %p87 = scmp.ne.s32.totalorder %s75, %s76
      %p88 = scmp.eq.s32.totalorder %s45, 1
      %p89 = por %p87, %p88
      %p91 = scmp.ne.s32.totalorder %s76, %s90
      %p92 = scmp.eq.s32.totalorder %s45, 0
      %p93 = por %p91, %p92
      %s95 = sadd.s32 %s94, 1
      %p98 = scmp.eq.s32.totalorder %s39, 1
      %p99 = scmp.ne.s32.totalorder %s94, %s96
      %p100 = scmp.eq.s32.totalorder %s39, 0
      %p101 = por %p99, %p100
      %p102 = scmp.ne.s32.totalorder %s94, %s96
      %p103 = scmp.eq.s32.totalorder %s44, 1
      %p104 = por %p102, %p103
      %p105 = scmp.ne.s32.totalorder %s96, %s97
      %p106 = scmp.eq.s32.totalorder %s44, 0
      %p107 = por %p105, %p106
      %p108 = scmp.ne.s32.totalorder %s96, %s97
      %p109 = scmp.eq.s32.totalorder %s45, 1
      %p110 = por %p108, %p109
      %p112 = scmp.ne.s32.totalorder %s97, %s111
      %p113 = scmp.eq.s32.totalorder %s45, 0
      %p114 = por %p112, %p113
      %s116 = sadd.s32 %s115, 1
      %p119 = scmp.eq.s32.totalorder %s39, 1
      %p120 = scmp.ne.s32.totalorder %s115, %s117
      %p121 = scmp.eq.s32.totalorder %s39, 0
      %p122 = por %p120, %p121
      %p123 = scmp.ne.s32.totalorder %s115, %s117
      %p124 = scmp.eq.s32.totalorder %s44, 1
      %p125 = por %p123, %p124
      %p126 = scmp.ne.s32.totalorder %s117, %s118
      %p127 = scmp.eq.s32.totalorder %s44, 0
      %p128 = por %p126, %p127
      %p129 = scmp.ne.s32.totalorder %s117, %s118
      %p130 = scmp.eq.s32.totalorder %s45, 1
      %p131 = por %p129, %p130
      %p133 = scmp.ne.s32.totalorder %s118, %s132
      %p134 = scmp.eq.s32.totalorder %s45, 0
      %p135 = por %p133, %p134
      %s137 = sadd.s32 %s136, 1
      %p140 = scmp.eq.s32.totalorder %s39, 1
      %p141 = scmp.ne.s32.totalorder %s136, %s138
      %p142 = scmp.eq.s32.totalorder %s39, 0
      %p143 = por %p141, %p142
      %p144 = scmp.ne.s32.totalorder %s136, %s138
      %p145 = scmp.eq.s32.totalorder %s44, 1
      %p146 = por %p144, %p145
      %p147 = scmp.ne.s32.totalorder %s138, %s139
      %p148 = scmp.eq.s32.totalorder %s44, 0
      %p149 = por %p147, %p148
      %p150 = scmp.ne.s32.totalorder %s138, %s139
      %p151 = scmp.eq.s32.totalorder %s45, 1
      %p152 = por %p150, %p151
      %p154 = scmp.ne.s32.totalorder %s139, %s153
      %p155 = scmp.eq.s32.totalorder %s45, 0
      %p156 = por %p154, %p155
      %s157 = ssub.s32 %s39, %s46
      %p158 = scmp.eq.s32.totalorder %s157, 0
      %s160 = sadd.s32 %s159, 1
      %s161 = scalar_select %p158, %s159, %s160
      %p164 = pneg %p158
      %p165 = scmp.eq.s32.totalorder %s39, 1
      %p166 = por %p164, %p165
      %p167 = scmp.ne.s32.totalorder %s159, %s162
      %p168 = scmp.eq.s32.totalorder %s39, 0
      %p169 = por %p167, %p168
      %p170 = scmp.ne.s32.totalorder %s159, %s162
      %p171 = scmp.eq.s32.totalorder %s44, 1
      %p172 = por %p170, %p171
      %p173 = scmp.ne.s32.totalorder %s162, %s163
      %p174 = scmp.eq.s32.totalorder %s44, 0
      %p175 = por %p173, %p174
      %p176 = scmp.ne.s32.totalorder %s162, %s163
      %p177 = scmp.eq.s32.totalorder %s45, 1
      %p178 = por %p176, %p177
      %p180 = scmp.ne.s32.totalorder %s163, %s179
      %p181 = scmp.eq.s32.totalorder %s45, 0
      %p182 = por %p180, %p181
      %s184 = sadd.s32 %s183, 1
      %p187 = scmp.eq.s32.totalorder %s39, 1
      %p188 = scmp.ne.s32.totalorder %s183, %s185
      %p189 = scmp.eq.s32.totalorder %s39, 0
      %p190 = por %p188, %p189
      %p191 = scmp.ne.s32.totalorder %s183, %s185
      %p192 = scmp.eq.s32.totalorder %s44, 1
      %p193 = por %p191, %p192
      %p194 = scmp.ne.s32.totalorder %s185, %s186
      %p195 = scmp.eq.s32.totalorder %s44, 0
      %p196 = por %p194, %p195
      %p197 = scmp.ne.s32.totalorder %s185, %s186
      %p198 = scmp.eq.s32.totalorder %s45, 1
      %p199 = por %p197, %p198
      %p201 = scmp.ne.s32.totalorder %s186, %s200
      %p202 = scmp.eq.s32.totalorder %s45, 0
      %p203 = por %p201, %p202
      %s205 = sadd.s32 %s204, 1
      %p208 = scmp.eq.s32.totalorder %s39, 1
      %p209 = scmp.ne.s32.totalorder %s204, %s206
      %p210 = scmp.eq.s32.totalorder %s39, 0
      %p211 = por %p209, %p210
      %p212 = scmp.ne.s32.totalorder %s204, %s206
      %p213 = scmp.eq.s32.totalorder %s44, 1
      %p214 = por %p212, %p213
      %p215 = scmp.ne.s32.totalorder %s206, %s207
      %p216 = scmp.eq.s32.totalorder %s44, 0
      %p217 = por %p215, %p216
      %p218 = scmp.ne.s32.totalorder %s206, %s207
      %p219 = scmp.eq.s32.totalorder %s45, 1
      %p220 = por %p218, %p219
      %p222 = scmp.ne.s32.totalorder %s207, %s221
      %p223 = scmp.eq.s32.totalorder %s45, 0
      %p224 = por %p222, %p223
      %s226 = sadd.s32 %s225, 1
      %p229 = scmp.eq.s32.totalorder %s39, 1
      %p230 = scmp.ne.s32.totalorder %s225, %s227
      %p231 = scmp.eq.s32.totalorder %s39, 0
      %p232 = por %p230, %p231
      %p233 = scmp.ne.s32.totalorder %s225, %s227
      %p234 = scmp.eq.s32.totalorder %s44, 1
      %p235 = por %p233, %p234
      %p236 = scmp.ne.s32.totalorder %s227, %s228
      %p237 = scmp.eq.s32.totalorder %s44, 0
      %p238 = por %p236, %p237
      %p239 = scmp.ne.s32.totalorder %s227, %s228
      %p240 = scmp.eq.s32.totalorder %s45, 1
      %p241 = por %p239, %p240
      %p243 = scmp.ne.s32.totalorder %s228, %s242
      %p244 = scmp.eq.s32.totalorder %s45, 0
      %p245 = por %p243, %p244
      %s247 = sadd.s32 %s246, 1
      %p250 = scmp.eq.s32.totalorder %s39, 1
      %p251 = scmp.ne.s32.totalorder %s246, %s248
      %p252 = scmp.eq.s32.totalorder %s39, 0
      %p253 = por %p251, %p252
      %p254 = scmp.ne.s32.totalorder %s246, %s248
      %p255 = scmp.eq.s32.totalorder %s44, 1
      %p256 = por %p254, %p255
      %p257 = scmp.ne.s32.totalorder %s248, %s249
      %p258 = scmp.eq.s32.totalorder %s44, 0
      %p259 = por %p257, %p258
      %p260 = scmp.ne.s32.totalorder %s248, %s249
      %p261 = scmp.eq.s32.totalorder %s45, 1
      %p262 = por %p260, %p261
      %p264 = scmp.ne.s32.totalorder %s249, %s263
      %p265 = scmp.eq.s32.totalorder %s45, 0
      %p266 = por %p264, %p265
      %s267 = ssub.s32 %s39, %s46
      %p268 = scmp.eq.s32.totalorder %s267, 0
      %s270 = sadd.s32 %s269, 1
      %s271 = scalar_select %p268, %s269, %s270
      %p274 = pneg %p268
      %p275 = scmp.eq.s32.totalorder %s39, 1
      %p276 = por %p274, %p275
      %p277 = scmp.ne.s32.totalorder %s269, %s272
      %p278 = scmp.eq.s32.totalorder %s39, 0
      %p279 = por %p277, %p278
      %p280 = scmp.ne.s32.totalorder %s269, %s272
      %p281 = scmp.eq.s32.totalorder %s44, 1
      %p282 = por %p280, %p281
      %p283 = scmp.ne.s32.totalorder %s272, %s273
      %p284 = scmp.eq.s32.totalorder %s44, 0
      %p285 = por %p283, %p284
      %p286 = scmp.ne.s32.totalorder %s272, %s273
      %p287 = scmp.eq.s32.totalorder %s45, 1
      %p288 = por %p286, %p287
      %p290 = scmp.ne.s32.totalorder %s273, %s289
      %p291 = scmp.eq.s32.totalorder %s45, 0
      %p292 = por %p290, %p291
      %s294 = sadd.s32 %s293, 1
      %p297 = scmp.eq.s32.totalorder %s39, 1
      %p298 = scmp.ne.s32.totalorder %s293, %s295
      %p299 = scmp.eq.s32.totalorder %s39, 0
      %p300 = por %p298, %p299
      %p301 = scmp.ne.s32.totalorder %s293, %s295
      %p302 = scmp.eq.s32.totalorder %s44, 1
      %p303 = por %p301, %p302
      %p304 = scmp.ne.s32.totalorder %s295, %s296
      %p305 = scmp.eq.s32.totalorder %s44, 0
      %p306 = por %p304, %p305
      %p307 = scmp.ne.s32.totalorder %s295, %s296
      %p308 = scmp.eq.s32.totalorder %s45, 1
      %p309 = por %p307, %p308
      %p311 = scmp.ne.s32.totalorder %s296, %s310
      %p312 = scmp.eq.s32.totalorder %s45, 0
      %p313 = por %p311, %p312
      %s315 = sadd.s32 %s314, 1
      %p318 = scmp.eq.s32.totalorder %s39, 1
      %p319 = scmp.ne.s32.totalorder %s314, %s316
      %p320 = scmp.eq.s32.totalorder %s39, 0
      %p321 = por %p319, %p320
      %p322 = scmp.ne.s32.totalorder %s314, %s316
      %p323 = scmp.eq.s32.totalorder %s44, 1
      %p324 = por %p322, %p323
      %p325 = scmp.ne.s32.totalorder %s316, %s317
      %p326 = scmp.eq.s32.totalorder %s44, 0
      %p327 = por %p325, %p326
      %p328 = scmp.ne.s32.totalorder %s316, %s317
      %p329 = scmp.eq.s32.totalorder %s45, 1
      %p330 = por %p328, %p329
      %p332 = scmp.ne.s32.totalorder %s317, %s331
      %p333 = scmp.eq.s32.totalorder %s45, 0
      %p334 = por %p332, %p333
      %s336 = sadd.s32 %s335, 1
      %p339 = scmp.eq.s32.totalorder %s39, 1
      %p340 = scmp.ne.s32.totalorder %s335, %s337
      %p341 = scmp.eq.s32.totalorder %s39, 0
      %p342 = por %p340, %p341
      %p343 = scmp.ne.s32.totalorder %s335, %s337
      %p344 = scmp.eq.s32.totalorder %s44, 1
      %p345 = por %p343, %p344
      %p346 = scmp.ne.s32.totalorder %s337, %s338
      %p347 = scmp.eq.s32.totalorder %s44, 0
      %p348 = por %p346, %p347
      %p349 = scmp.ne.s32.totalorder %s337, %s338
      %p350 = scmp.eq.s32.totalorder %s45, 1
      %p351 = por %p349, %p350
      %p353 = scmp.ne.s32.totalorder %s338, %s352
      %p354 = scmp.eq.s32.totalorder %s45, 0
      %p355 = por %p353, %p354
      %s357 = sadd.s32 %s356, 1
      %p360 = scmp.eq.s32.totalorder %s39, 1
      %p361 = scmp.ne.s32.totalorder %s356, %s358
      %p362 = scmp.eq.s32.totalorder %s39, 0
      %p363 = por %p361, %p362
      %p364 = scmp.ne.s32.totalorder %s356, %s358
      %p365 = scmp.eq.s32.totalorder %s44, 1
      %p366 = por %p364, %p365
      %p367 = scmp.ne.s32.totalorder %s358, %s359
      %p368 = scmp.eq.s32.totalorder %s44, 0
      %p369 = por %p367, %p368
      %p370 = scmp.ne.s32.totalorder %s358, %s359
      %p371 = scmp.eq.s32.totalorder %s45, 1
      %p372 = por %p370, %p371
      %p374 = scmp.ne.s32.totalorder %s359, %s373
      %p375 = scmp.eq.s32.totalorder %s45, 0
      %p376 = por %p374, %p375
      %s378 = sadd.s32 %s377, 1
      %p381 = scmp.eq.s32.totalorder %s39, 1
      %p382 = scmp.ne.s32.totalorder %s377, %s379
      %p383 = scmp.eq.s32.totalorder %s39, 0
      %p384 = por %p382, %p383
      %p385 = scmp.ne.s32.totalorder %s377, %s379
      %p386 = scmp.eq.s32.totalorder %s44, 1
      %p387 = por %p385, %p386
      %p388 = scmp.ne.s32.totalorder %s379, %s380
      %p389 = scmp.eq.s32.totalorder %s44, 0
      %p390 = por %p388, %p389
      %p391 = scmp.ne.s32.totalorder %s379, %s380
      %p392 = scmp.eq.s32.totalorder %s45, 1
      %p393 = por %p391, %p392
      %p395 = scmp.ne.s32.totalorder %s380, %s394
      %p396 = scmp.eq.s32.totalorder %s45, 0
      %p397 = por %p395, %p396
      %s399 = sadd.s32 %s398, 1
      %p402 = scmp.eq.s32.totalorder %s39, 1
      %p403 = scmp.ne.s32.totalorder %s398, %s400
      %p404 = scmp.eq.s32.totalorder %s39, 0
      %p405 = por %p403, %p404
      %p406 = scmp.ne.s32.totalorder %s398, %s400
      %p407 = scmp.eq.s32.totalorder %s44, 1
      %p408 = por %p406, %p407
      %p409 = scmp.ne.s32.totalorder %s400, %s401
      %p410 = scmp.eq.s32.totalorder %s44, 0
      %p411 = por %p409, %p410
      %p412 = scmp.ne.s32.totalorder %s400, %s401
      %p413 = scmp.eq.s32.totalorder %s45, 1
      %p414 = por %p412, %p413
      %p416 = scmp.ne.s32.totalorder %s401, %s415
      %p417 = scmp.eq.s32.totalorder %s45, 0
      %p418 = por %p416, %p417
      %s420 = sadd.s32 %s419, 1
      %p423 = scmp.eq.s32.totalorder %s39, 1
      %p424 = scmp.ne.s32.totalorder %s419, %s421
      %p425 = scmp.eq.s32.totalorder %s39, 0
      %p426 = por %p424, %p425
      %p427 = scmp.ne.s32.totalorder %s419, %s421
      %p428 = scmp.eq.s32.totalorder %s44, 1
      %p429 = por %p427, %p428
      %p430 = scmp.ne.s32.totalorder %s421, %s422
      %p431 = scmp.eq.s32.totalorder %s44, 0
      %p432 = por %p430, %p431
      %p433 = scmp.ne.s32.totalorder %s421, %s422
      %p434 = scmp.eq.s32.totalorder %s45, 1
      %p435 = por %p433, %p434
      %p437 = scmp.ne.s32.totalorder %s422, %s436
      %p438 = scmp.eq.s32.totalorder %s45, 0
      %p439 = por %p437, %p438
      %s441 = sadd.s32 %s440, 1
      %p444 = scmp.eq.s32.totalorder %s39, 1
      %p445 = scmp.ne.s32.totalorder %s440, %s442
      %p446 = scmp.eq.s32.totalorder %s39, 0
      %p447 = por %p445, %p446
      %p448 = scmp.ne.s32.totalorder %s440, %s442
      %p449 = scmp.eq.s32.totalorder %s44, 1
      %p450 = por %p448, %p449
      %p451 = scmp.ne.s32.totalorder %s442, %s443
      %p452 = scmp.eq.s32.totalorder %s44, 0
      %p453 = por %p451, %p452
      %p454 = scmp.ne.s32.totalorder %s442, %s443
      %p455 = scmp.eq.s32.totalorder %s45, 1
      %p456 = por %p454, %p455
      %p458 = scmp.ne.s32.totalorder %s443, %s457
      %p459 = scmp.eq.s32.totalorder %s45, 0
      %p460 = por %p458, %p459
      %s462 = sadd.s32 %s461, 1
      %p465 = scmp.eq.s32.totalorder %s39, 1
      %p466 = scmp.ne.s32.totalorder %s461, %s463
      %p467 = scmp.eq.s32.totalorder %s39, 0
      %p468 = por %p466, %p467
      %p469 = scmp.ne.s32.totalorder %s461, %s463
      %p470 = scmp.eq.s32.totalorder %s44, 1
      %p471 = por %p469, %p470
      %p472 = scmp.ne.s32.totalorder %s463, %s464
      %p473 = scmp.eq.s32.totalorder %s44, 0
      %p474 = por %p472, %p473
      %p475 = scmp.ne.s32.totalorder %s463, %s464
      %p476 = scmp.eq.s32.totalorder %s45, 1
      %p477 = por %p475, %p476
      %p479 = scmp.ne.s32.totalorder %s464, %s478
      %p480 = scmp.eq.s32.totalorder %s45, 0
      %p481 = por %p479, %p480
      %s483 = sadd.s32 %s482, 1
      %p486 = scmp.eq.s32.totalorder %s39, 1
      %p487 = scmp.ne.s32.totalorder %s482, %s484
      %p488 = scmp.eq.s32.totalorder %s39, 0
      %p489 = por %p487, %p488
      %p490 = scmp.ne.s32.totalorder %s482, %s484
      %p491 = scmp.eq.s32.totalorder %s44, 1
      %p492 = por %p490, %p491
      %p493 = scmp.ne.s32.totalorder %s484, %s485
      %p494 = scmp.eq.s32.totalorder %s44, 0
      %p495 = por %p493, %p494
      %p496 = scmp.ne.s32.totalorder %s484, %s485
      %p497 = scmp.eq.s32.totalorder %s45, 1
      %p498 = por %p496, %p497
      %p500 = scmp.ne.s32.totalorder %s485, %s499
      %p501 = scmp.eq.s32.totalorder %s45, 0
      %p502 = por %p500, %p501
      %s504 = sadd.s32 %s503, 1
      %p507 = scmp.eq.s32.totalorder %s39, 1
      %p508 = scmp.ne.s32.totalorder %s503, %s505
      %p509 = scmp.eq.s32.totalorder %s39, 0
      %p510 = por %p508, %p509
      %p511 = scmp.ne.s32.totalorder %s503, %s505
      %p512 = scmp.eq.s32.totalorder %s44, 1
      %p513 = por %p511, %p512
      %p514 = scmp.ne.s32.totalorder %s505, %s506
      %p515 = scmp.eq.s32.totalorder %s44, 0
      %p516 = por %p514, %p515
      %p517 = scmp.ne.s32.totalorder %s505, %s506
      %p518 = scmp.eq.s32.totalorder %s45, 1
      %p519 = por %p517, %p518
      %p521 = scmp.ne.s32.totalorder %s506, %s520
      %p522 = scmp.eq.s32.totalorder %s45, 0
      %p523 = por %p521, %p522
      %s525 = sadd.s32 %s524, 1
      %p528 = scmp.eq.s32.totalorder %s39, 1
      %p529 = scmp.ne.s32.totalorder %s524, %s526
      %p530 = scmp.eq.s32.totalorder %s39, 0
      %p531 = por %p529, %p530
      %p532 = scmp.ne.s32.totalorder %s524, %s526
      %p533 = scmp.eq.s32.totalorder %s44, 1
      %p534 = por %p532, %p533
      %p535 = scmp.ne.s32.totalorder %s526, %s527
      %p536 = scmp.eq.s32.totalorder %s44, 0
      %p537 = por %p535, %p536
      %p538 = scmp.ne.s32.totalorder %s526, %s527
      %p539 = scmp.eq.s32.totalorder %s45, 1
      %p540 = por %p538, %p539
      %p542 = scmp.ne.s32.totalorder %s527, %s541
      %p543 = scmp.eq.s32.totalorder %s45, 0
      %p544 = por %p542, %p543
      %s545 = ssub.s32 %s39, %s46
      %p546 = scmp.eq.s32.totalorder %s545, 0
      %s548 = sadd.s32 %s547, 1
      %s549 = scalar_select %p546, %s547, %s548
      %p552 = pneg %p546
      %p553 = scmp.eq.s32.totalorder %s39, 1
      %p554 = por %p552, %p553
      %p555 = scmp.ne.s32.totalorder %s547, %s550
      %p556 = scmp.eq.s32.totalorder %s39, 0
      %p557 = por %p555, %p556
      %p558 = scmp.ne.s32.totalorder %s547, %s550
      %p559 = scmp.eq.s32.totalorder %s44, 1
      %p560 = por %p558, %p559
      %p561 = scmp.ne.s32.totalorder %s550, %s551
      %p562 = scmp.eq.s32.totalorder %s44, 0
      %p563 = por %p561, %p562
      %p564 = scmp.ne.s32.totalorder %s550, %s551
      %p565 = scmp.eq.s32.totalorder %s45, 1
      %p566 = por %p564, %p565
      %p568 = scmp.ne.s32.totalorder %s551, %s567
      %p569 = scmp.eq.s32.totalorder %s45, 0
      %p570 = por %p568, %p569
      %s571 = ssub.s32 %s39, %s46
      %p572 = scmp.eq.s32.totalorder %s571, 0
      %s574 = sadd.s32 %s573, 1
      %s575 = scalar_select %p572, %s573, %s574
      %p578 = pneg %p572
      %p579 = scmp.eq.s32.totalorder %s39, 1
      %p580 = por %p578, %p579
      %p581 = scmp.ne.s32.totalorder %s573, %s576
      %p582 = scmp.eq.s32.totalorder %s39, 0
      %p583 = por %p581, %p582
      %p584 = scmp.ne.s32.totalorder %s573, %s576
      %p585 = scmp.eq.s32.totalorder %s44, 1
      %p586 = por %p584, %p585
      %p587 = scmp.ne.s32.totalorder %s576, %s577
      %p588 = scmp.eq.s32.totalorder %s44, 0
      %p589 = por %p587, %p588
      %p590 = scmp.ne.s32.totalorder %s576, %s577
      %p591 = scmp.eq.s32.totalorder %s45, 1
      %p592 = por %p590, %p591
      %p594 = scmp.ne.s32.totalorder %s577, %s593
      %p595 = scmp.eq.s32.totalorder %s45, 0
      %p596 = por %p594, %p595
      %p597 = scmp.le.s32.totalorder 1, %s39
      %p598 = scmp.lt.s32.totalorder %s39, 3
      %p599 = pnand %p597, %p598
      %p600 = pneg %p599
      // Predicated region
      $region9: #{tpu_custom_call.1} parent=5 // pred_check
        _
      $region10: #{tpu_custom_call.1} parent=5 // pred_check_branch
        %602 = sbr.rel (%p599) target = $region12
      $region11: #{tpu_custom_call.1} parent=5 // pred_region
        %s603 = ssub.s32 %s39, 1
        // Predicated region
        $region13: #{tpu_custom_call.1} parent=11 // pred_check
          %p604 = pneg %p86
        $region14: #{tpu_custom_call.1} parent=11 // pred_check_branch
          %606 = sbr.rel (%p604) target = $region16
        $region15: #{tpu_custom_call.1} parent=11 // pred_region
          _
        $region16: #{tpu_custom_call.1} parent=11 // pred_fallthru
          _
        // Predicated region
        $region17: #{tpu_custom_call.1} parent=11 // pred_check
          %p607 = pneg %p107
        $region18: #{tpu_custom_call.1} parent=11 // pred_check_branch
          %609 = sbr.rel (%p607) target = $region20
        $region19: #{tpu_custom_call.1} parent=11 // pred_region
          _
        $region20: #{tpu_custom_call.1} parent=11 // pred_fallthru
          _
        // Predicated region
        $region21: #{tpu_custom_call.1} parent=11 // pred_check
          %p610 = pneg %p128
        $region22: #{tpu_custom_call.1} parent=11 // pred_check_branch
          %612 = sbr.rel (%p610) target = $region24
        $region23: #{tpu_custom_call.1} parent=11 // pred_region
          _
        $region24: #{tpu_custom_call.1} parent=11 // pred_fallthru
          _
        // Predicated region
        $region25: #{tpu_custom_call.1} parent=11 // pred_check
          %p613 = pneg %p149
        $region26: #{tpu_custom_call.1} parent=11 // pred_check_branch
          %615 = sbr.rel (%p613) target = $region28
        $region27: #{tpu_custom_call.1} parent=11 // pred_region
          _
        $region28: #{tpu_custom_call.1} parent=11 // pred_fallthru
          _
        // Predicated region
        $region29: #{tpu_custom_call.1} parent=11 // pred_check
          %p616 = pneg %p196
        $region30: #{tpu_custom_call.1} parent=11 // pred_check_branch
          %618 = sbr.rel (%p616) target = $region32
        $region31: #{tpu_custom_call.1} parent=11 // pred_region
          _
        $region32: #{tpu_custom_call.1} parent=11 // pred_fallthru
          _
        // Predicated region
        $region33: #{tpu_custom_call.1} parent=11 // pred_check
          %p619 = pneg %p217
        $region34: #{tpu_custom_call.1} parent=11 // pred_check_branch
          %621 = sbr.rel (%p619) target = $region36
        $region35: #{tpu_custom_call.1} parent=11 // pred_region
          _
        $region36: #{tpu_custom_call.1} parent=11 // pred_fallthru
          _
        // Predicated region
        $region37: #{tpu_custom_call.1} parent=11 // pred_check
          %p622 = pneg %p238
        $region38: #{tpu_custom_call.1} parent=11 // pred_check_branch
          %624 = sbr.rel (%p622) target = $region40
        $region39: #{tpu_custom_call.1} parent=11 // pred_region
          _
        $region40: #{tpu_custom_call.1} parent=11 // pred_fallthru
          _
        // Predicated region
        $region41: #{tpu_custom_call.1} parent=11 // pred_check
          %p625 = pneg %p259
        $region42: #{tpu_custom_call.1} parent=11 // pred_check_branch
          %627 = sbr.rel (%p625) target = $region44
        $region43: #{tpu_custom_call.1} parent=11 // pred_region
          _
        $region44: #{tpu_custom_call.1} parent=11 // pred_fallthru
          _
        // Predicated region
        $region45: #{tpu_custom_call.1} parent=11 // pred_check
          %p628 = pneg %p306
        $region46: #{tpu_custom_call.1} parent=11 // pred_check_branch
          %630 = sbr.rel (%p628) target = $region48
        $region47: #{tpu_custom_call.1} parent=11 // pred_region
          _
        $region48: #{tpu_custom_call.1} parent=11 // pred_fallthru
          _
        // Predicated region
        $region49: #{tpu_custom_call.1} parent=11 // pred_check
          %p631 = pneg %p327
        $region50: #{tpu_custom_call.1} parent=11 // pred_check_branch
          %633 = sbr.rel (%p631) target = $region52
        $region51: #{tpu_custom_call.1} parent=11 // pred_region
          _
        $region52: #{tpu_custom_call.1} parent=11 // pred_fallthru
          _
        // Predicated region
        $region53: #{tpu_custom_call.1} parent=11 // pred_check
          %p634 = pneg %p348
        $region54: #{tpu_custom_call.1} parent=11 // pred_check_branch
          %636 = sbr.rel (%p634) target = $region56
        $region55: #{tpu_custom_call.1} parent=11 // pred_region
          _
        $region56: #{tpu_custom_call.1} parent=11 // pred_fallthru
          _
        // Predicated region
        $region57: #{tpu_custom_call.1} parent=11 // pred_check
          %p637 = pneg %p369
        $region58: #{tpu_custom_call.1} parent=11 // pred_check_branch
          %639 = sbr.rel (%p637) target = $region60
        $region59: #{tpu_custom_call.1} parent=11 // pred_region
          _
        $region60: #{tpu_custom_call.1} parent=11 // pred_fallthru
          _
        // Predicated region
        $region61: #{tpu_custom_call.1} parent=11 // pred_check
          %p640 = pneg %p390
        $region62: #{tpu_custom_call.1} parent=11 // pred_check_branch
          %642 = sbr.rel (%p640) target = $region64
        $region63: #{tpu_custom_call.1} parent=11 // pred_region
          _
        $region64: #{tpu_custom_call.1} parent=11 // pred_fallthru
          _
        // Predicated region
        $region65: #{tpu_custom_call.1} parent=11 // pred_check
          %p643 = pneg %p411
        $region66: #{tpu_custom_call.1} parent=11 // pred_check_branch
          %645 = sbr.rel (%p643) target = $region68
        $region67: #{tpu_custom_call.1} parent=11 // pred_region
          _
        $region68: #{tpu_custom_call.1} parent=11 // pred_fallthru
          _
        // Predicated region
        $region69: #{tpu_custom_call.1} parent=11 // pred_check
          %p646 = pneg %p432
        $region70: #{tpu_custom_call.1} parent=11 // pred_check_branch
          %648 = sbr.rel (%p646) target = $region72
        $region71: #{tpu_custom_call.1} parent=11 // pred_region
          _
        $region72: #{tpu_custom_call.1} parent=11 // pred_fallthru
          _
        // Predicated region
        $region73: #{tpu_custom_call.1} parent=11 // pred_check
          %p649 = pneg %p453
        $region74: #{tpu_custom_call.1} parent=11 // pred_check_branch
          %651 = sbr.rel (%p649) target = $region76
        $region75: #{tpu_custom_call.1} parent=11 // pred_region
          _
        $region76: #{tpu_custom_call.1} parent=11 // pred_fallthru
          _
        // Predicated region
        $region77: #{tpu_custom_call.1} parent=11 // pred_check
          %p652 = pneg %p474
        $region78: #{tpu_custom_call.1} parent=11 // pred_check_branch
          %654 = sbr.rel (%p652) target = $region80
        $region79: #{tpu_custom_call.1} parent=11 // pred_region
          _
        $region80: #{tpu_custom_call.1} parent=11 // pred_fallthru
          _
        // Predicated region
        $region81: #{tpu_custom_call.1} parent=11 // pred_check
          %p655 = pneg %p495
        $region82: #{tpu_custom_call.1} parent=11 // pred_check_branch
          %657 = sbr.rel (%p655) target = $region84
        $region83: #{tpu_custom_call.1} parent=11 // pred_region
          _
        $region84: #{tpu_custom_call.1} parent=11 // pred_fallthru
          _
        // Predicated region
        $region85: #{tpu_custom_call.1} parent=11 // pred_check
          %p658 = pneg %p516
        $region86: #{tpu_custom_call.1} parent=11 // pred_check_branch
          %660 = sbr.rel (%p658) target = $region88
        $region87: #{tpu_custom_call.1} parent=11 // pred_region
          _
        $region88: #{tpu_custom_call.1} parent=11 // pred_fallthru
          _
        // Predicated region
        $region89: #{tpu_custom_call.1} parent=11 // pred_check
          %p661 = pneg %p537
        $region90: #{tpu_custom_call.1} parent=11 // pred_check_branch
          %663 = sbr.rel (%p661) target = $region92
        $region91: #{tpu_custom_call.1} parent=11 // pred_region
          _
        $region92: #{tpu_custom_call.1} parent=11 // pred_fallthru
          _
      $region12: #{tpu_custom_call.1} parent=5 // pred_fallthru
        _
      %p664 = scmp.lt.s32.totalorder %s39, 2
      // Predicated region
      $region93: #{tpu_custom_call.1} parent=5 // pred_check
        %p665 = pneg %p664
      $region94: #{tpu_custom_call.1} parent=5 // pred_check_branch
        %667 = sbr.rel (%p665) target = $region96
      $region95: #{tpu_custom_call.1} parent=5 // pred_region
        // Predicated region
        $region97: #{tpu_custom_call.1} parent=95 // pred_check
          %p668 = pneg %p59
        $region98: #{tpu_custom_call.1} parent=95 // pred_check_branch
          %670 = sbr.rel (%p668) target = $region100
        $region99: #{tpu_custom_call.1} parent=95 // pred_region
          %s671 = smul.u32 16, %s39
          %p672 = scmp.lt.s32.totalorder %s671, 31
          %s673 = scalar_select %p672, %s671, 31
          %s674 = smul.addr %s673, 8
          %s675 = scalar_lea.vmem %s0, %s674
          %s676 = smul.u32 16, %s39
        $region100: #{tpu_custom_call.1} parent=95 // pred_fallthru
          _
        // Predicated region
        $region101: #{tpu_custom_call.1} parent=95 // pred_check
          %p677 = pneg %p169
        $region102: #{tpu_custom_call.1} parent=95 // pred_check_branch
          %679 = sbr.rel (%p677) target = $region104
        $region103: #{tpu_custom_call.1} parent=95 // pred_region
          %s680 = smul.u32 16, %s39
          %p681 = scmp.lt.s32.totalorder %s680, 31
          %s682 = scalar_select %p681, %s680, 31
          %s683 = smul.addr %s682, 8
          %s684 = scalar_lea.vmem %s5, %s683
          %s685 = smul.u32 16, %s39
        $region104: #{tpu_custom_call.1} parent=95 // pred_fallthru
          _
        // Predicated region
        $region105: #{tpu_custom_call.1} parent=95 // pred_check
          %p686 = pneg %p279
        $region106: #{tpu_custom_call.1} parent=95 // pred_check_branch
          %688 = sbr.rel (%p686) target = $region108
        $region107: #{tpu_custom_call.1} parent=95 // pred_region
          %s689 = smul.u32 16, %s39
          %p690 = scmp.lt.s32.totalorder %s689, 31
          %s691 = scalar_select %p690, %s689, 31
          %s692 = smul.addr %s691, 8
          %s693 = scalar_lea.vmem %s10, %s692
          %s694 = smul.u32 16, %s39
        $region108: #{tpu_custom_call.1} parent=95 // pred_fallthru
          _
      $region96: #{tpu_custom_call.1} parent=5 // pred_fallthru
        _
      %p695 = scmp.le.s32.totalorder 1, %s39
      %p696 = scmp.lt.s32.totalorder %s39, 3
      %p697 = pnand %p695, %p696
      %p698 = pneg %p697
      // Predicated region
      $region109: #{tpu_custom_call.1} parent=5 // pred_check
        _
      $region110: #{tpu_custom_call.1} parent=5 // pred_check_branch
        %700 = sbr.rel (%p697) target = $region112
      $region111: #{tpu_custom_call.1} parent=5 // pred_region
        %s701 = ssub.s32 %s39, 1
        %s702 = smul.u32 16, %s44
        %p703 = scmp.lt.s32.totalorder %s702, 31
        %s704 = scalar_select %p703, %s702, 31
        %s705 = smul.addr %s704, 8
        %s706 = scalar_lea.vmem %s0, %s705
        %p707 = pneg %p65
        %p708 = pneg %p62
        %p709 = pneg %p86
        %p710 = pneg %p83
        %p711 = pneg %p107
        %p712 = pneg %p104
        %p713 = pneg %p128
        %p714 = pneg %p125
        %p715 = pneg %p149
        %p716 = pneg %p146
        %s717 = smul.u32 16, %s44
        %p718 = scmp.lt.s32.totalorder %s717, 31
        %s719 = scalar_select %p718, %s717, 31
        %s720 = smul.addr %s719, 8
        %s721 = scalar_lea.vmem %s5, %s720
        %p722 = pneg %p175
        %p723 = pneg %p172
        %p724 = pneg %p196
        %p725 = pneg %p193
        %p726 = pneg %p217
        %p727 = pneg %p214
        %p728 = pneg %p238
        %p729 = pneg %p235
        %p730 = pneg %p259
        %p731 = pneg %p256
        %s732 = smul.u32 16, %s44
        %p733 = scmp.lt.s32.totalorder %s732, 31
        %s734 = scalar_select %p733, %s732, 31
        %s735 = smul.addr %s734, 8
        %s736 = scalar_lea.vmem %s10, %s735
        %p737 = pneg %p285
        %p738 = pneg %p282
        %p739 = pneg %p306
        %p740 = pneg %p303
        %p741 = pneg %p327
        %p742 = pneg %p324
        %p743 = pneg %p348
        %p744 = pneg %p345
        %p745 = pneg %p369
        %p746 = pneg %p366
        %p747 = pneg %p390
        %p748 = pneg %p387
        %p749 = pneg %p411
        %p750 = pneg %p408
        %p751 = pneg %p432
        %p752 = pneg %p429
        %p753 = pneg %p453
        %p754 = pneg %p450
        %p755 = pneg %p474
        %p756 = pneg %p471
        %p757 = pneg %p495
        %p758 = pneg %p492
        %p759 = pneg %p516
        %p760 = pneg %p513
        %p761 = pneg %p537
        %p762 = pneg %p534
        %p763 = pneg %p563
        %p764 = pneg %p560
        %s765 = sand.u32 %s550, 1
        %s766 = scalar_lea.sflag [#allocation4], %s765
        %s767 = sand.u32 %s550, 1
        %s768 = smul.addr %s767, 16
        %s769 = scalar_lea.vmem [#allocation3], %s768
        %p770 = pneg %p589
        %p771 = pneg %p586
        %s772 = sand.u32 %s576, 1
        %s773 = scalar_lea.sflag [#allocation6], %s772
        %s774 = sand.u32 %s576, 1
        %s775 = smul.addr %s774, 16
        %s776 = scalar_lea.vmem [#allocation5], %s775
        %s777 = smul.u32 16, %s44
        %p778 = scmp.lt.s32.totalorder %s777, 31
        %s779 = scalar_select %p778, %s777, 31
        %s780 = smul.addr %s779, 8
        %s781 = scalar_lea.vmem %s0, %s780
        %s782 = smul.u32 16, %s44
        %s783 = smul.u32 16, %s44
        %p784 = scmp.lt.s32.totalorder %s783, 31
        %s785 = scalar_select %p784, %s783, 31
        %s786 = smul.addr %s785, 8
        %s787 = scalar_lea.vmem %s5, %s786
        %s788 = smul.u32 16, %s44
        %s789 = smul.u32 16, %s44
        %p790 = scmp.lt.s32.totalorder %s789, 31
        %s791 = scalar_select %p790, %s789, 31
        %s792 = smul.addr %s791, 8
        %s793 = scalar_lea.vmem %s10, %s792
        %s794 = smul.u32 16, %s44
        %s795 = smul.u32 2, %s44
        %s796 = smul.u32 2, %s44
        %v797 = vld [vmem:[%s781] sm:$0xff]
        %v798 = vld [vmem:[%s781 + $0x8] sm:$0xff]
        %v799 = vld [vmem:[%s781 + $0x10] sm:$0xff]
        %v800 = vld [vmem:[%s781 + $0x18] sm:$0xff]
        %v801 = vld [vmem:[%s781 + $0x20] sm:$0xff]
        %v802 = vld [vmem:[%s781 + $0x28] sm:$0xff]
        %v803 = vld [vmem:[%s781 + $0x30] sm:$0xff]
        %v804 = vld [vmem:[%s781 + $0x38] sm:$0xff]
        %v805 = vld [vmem:[%s781 + $0x40] sm:$0xff]
        %v806 = vld [vmem:[%s781 + $0x48] sm:$0xff]
        %v807 = vld [vmem:[%s781 + $0x50] sm:$0xff]
        %v808 = vld [vmem:[%s781 + $0x58] sm:$0xff]
        %v809 = vld [vmem:[%s781 + $0x60] sm:$0xff]
        %v810 = vld [vmem:[%s781 + $0x68] sm:$0xff]
        %v811 = vld [vmem:[%s781 + $0x70] sm:$0xff]
        %v812 = vld [vmem:[%s781 + $0x78] sm:$0xff]
        %v813 = vld [vmem:[%s1] sm:$0xff]
        %v814 = vld [vmem:[%s1 + $0x8] sm:$0x7]
        %v815 = vld [vmem:[%s2] sm:$0x1]
        %v816 = vld [vmem:[%s3] sm:$0xf]
        %v817 = vld [vmem:[%s3 + $0x4] sm:$0xf]
        %v818 = vld [vmem:[%s3 + $0x8] sm:$0xf]
        %v819 = vld [vmem:[%s3 + $0xc] sm:$0xf]
        %v820 = vld [vmem:[%s3 + $0x10] sm:$0xf]
        %v821 = vld [vmem:[%s3 + $0x14] sm:$0xf]
        %v822 = vld [vmem:[%s3 + $0x18] sm:$0xf]
        %v823 = vld [vmem:[%s3 + $0x1c] sm:$0xf]
        %v824 = vld [vmem:[%s3 + $0x20] sm:$0xf]
        %v825 = vld [vmem:[%s3 + $0x24] sm:$0xf]
        %v826 = vld [vmem:[%s3 + $0x28] sm:$0xf]
        %v827 = vld [vmem:[%s3 + $0x2c] sm:$0xf]
        %v828 = vld [vmem:[%s3 + $0x30] sm:$0xf]
        %v829 = vld [vmem:[%s3 + $0x34] sm:$0xf]
        %v830 = vld [vmem:[%s3 + $0x38] sm:$0xf]
        %v831 = vld [vmem:[%s3 + $0x3c] sm:$0xf]
        %v832 = vld [vmem:[%s4] sm:$0x1]
        %v834 = vperm.slane %v815, 0
        %vm836 = vcmask 89088
        %v838 = vsel %vm836, %v797, 0
        %v841 = vsel %vm836, %v798, 0
        %v844 = vsel %vm836, %v799, 0
        %v847 = vsel %vm836, %v800, 0
        %v850 = vsel %vm836, %v801, 0
        %v853 = vsel %vm836, %v802, 0
        %v856 = vsel %vm836, %v803, 0
        %v859 = vsel %vm836, %v804, 0
        %v862 = vsel %vm836, %v805, 0
        %v865 = vsel %vm836, %v806, 0
        %v868 = vsel %vm836, %v807, 0
        %v871 = vsel %vm836, %v808, 0
        %v874 = vsel %vm836, %v809, 0
        %v877 = vsel %vm836, %v810, 0
        %v880 = vsel %vm836, %v811, 0
        %v883 = vsel %vm836, %v812, 0
        %vm885 = vcmask 1042432
        %v887 = vsel %vm885, %v814, 0
        %889 = vmatpush.msra.mxu0 0.0
        %890 = vmatpush.msra.mxu0 0.0
        %891 = vmatpush.msra.mxu0 0.0
        %892 = vmatpush.msra.mxu0 0.0
        %893 = vmatpush.msra.mxu0 0.0
        %894 = vmatpush.msra.mxu0 0.0
        %895 = vmatpush.msra.mxu0 0.0
        %896 = vmatpush.msra.mxu0 0.0
        %897 = vmatpush.msra.mxu0 0.0
        %898 = vmatpush.msra.mxu0 0.0
        %899 = vmatpush.msra.mxu0 0.0
        %900 = vmatpush.msra.mxu0 0.0
        %901 = vmatpush.msra.mxu0 0.0
        %902 = vmatpush.msra.mxu0 0.0
        %903 = vmatpush.msra.mxu0 %v887
        %904 = vmatpush.msra.mxu0 %v813
        %905 = vmatmul.f32.gmra.mxu0 %v838
        %v906 = vpop.f32.mrf.mxu0
        %v907 = vadd.f32 %v834, %v906
        %908 = vmatmul.f32.gmra.mxu0 %v841
        %v909 = vpop.f32.mrf.mxu0
        %v910 = vadd.f32 %v834, %v909
        %911 = vmatmul.f32.gmra.mxu0 %v844
        %v912 = vpop.f32.mrf.mxu0
        %v913 = vadd.f32 %v834, %v912
        %914 = vmatmul.f32.gmra.mxu0 %v847
        %v915 = vpop.f32.mrf.mxu0
        %v916 = vadd.f32 %v834, %v915
        %917 = vmatmul.f32.gmra.mxu0 %v850
        %v918 = vpop.f32.mrf.mxu0
        %v919 = vadd.f32 %v834, %v918
        %920 = vmatmul.f32.gmra.mxu0 %v853
        %v921 = vpop.f32.mrf.mxu0
        %v922 = vadd.f32 %v834, %v921
        %923 = vmatmul.f32.gmra.mxu0 %v856
        %v924 = vpop.f32.mrf.mxu0
        %v925 = vadd.f32 %v834, %v924
        %926 = vmatmul.f32.gmra.mxu0 %v859
        %v927 = vpop.f32.mrf.mxu0
        %v928 = vadd.f32 %v834, %v927
        %929 = vmatmul.f32.gmra.mxu0 %v862
        %v930 = vpop.f32.mrf.mxu0
        %v931 = vadd.f32 %v834, %v930
        %932 = vmatmul.f32.gmra.mxu0 %v865
        %v933 = vpop.f32.mrf.mxu0
        %v934 = vadd.f32 %v834, %v933
        %935 = vmatmul.f32.gmra.mxu0 %v868
        %v936 = vpop.f32.mrf.mxu0
        %v937 = vadd.f32 %v834, %v936
        %938 = vmatmul.f32.gmra.mxu0 %v871
        %v939 = vpop.f32.mrf.mxu0
        %v940 = vadd.f32 %v834, %v939
        %941 = vmatmul.f32.gmra.mxu0 %v874
        %v942 = vpop.f32.mrf.mxu0
        %v943 = vadd.f32 %v834, %v942
        %944 = vmatmul.f32.gmra.mxu0 %v877
        %v945 = vpop.f32.mrf.mxu0
        %v946 = vadd.f32 %v834, %v945
        %947 = vmatmul.f32.gmra.mxu0 %v880
        %v948 = vpop.f32.mrf.mxu0
        %v949 = vadd.f32 %v834, %v948
        %950 = vmatmul.f32.gmra.mxu0 %v883
        %v951 = vpop.f32.mrf.mxu0
        %v952 = vadd.f32 %v834, %v951
        %953 = vdwg.mxu0
        %v954 = vmax.f32 %v907, 0.0
        %v955 = vmax.f32 %v910, 0.0
        %v956 = vmax.f32 %v913, 0.0
        %v957 = vmax.f32 %v916, 0.0
        %v958 = vmax.f32 %v919, 0.0
        %v959 = vmax.f32 %v922, 0.0
        %v960 = vmax.f32 %v925, 0.0
        %v961 = vmax.f32 %v928, 0.0
        %v962 = vmax.f32 %v931, 0.0
        %v963 = vmax.f32 %v934, 0.0
        %v964 = vmax.f32 %v937, 0.0
        %v965 = vmax.f32 %v940, 0.0
        %v966 = vmax.f32 %v943, 0.0
        %v967 = vmax.f32 %v946, 0.0
        %v968 = vmax.f32 %v949, 0.0
        %v969 = vmax.f32 %v952, 0.0
        %v970 = vpack.c.bf16 %v955, %v954
        %v971 = vpack.c.bf16 %v957, %v956
        %v972 = vpack.c.bf16 %v959, %v958
        %v973 = vpack.c.bf16 %v961, %v960
        %v974 = vpack.c.bf16 %v963, %v962
        %v975 = vpack.c.bf16 %v965, %v964
        %v976 = vpack.c.bf16 %v967, %v966
        %v977 = vpack.c.bf16 %v969, %v968
        %v979 = vperm.slane %v832, 0
        %v997 = vunpack.c.l.b16 %v816
        %v998 = vunpack.c.l.b16 %v817
        %v999 = vunpack.c.l.b16 %v818
        %v1000 = vunpack.c.l.b16 %v819
        %v1001 = vunpack.c.l.b16 %v820
        %v1002 = vunpack.c.l.b16 %v821
        %v1003 = vunpack.c.l.b16 %v822
        %v1004 = vunpack.c.l.b16 %v823
        %v1005 = vunpack.c.l.b16 %v824
        %v1006 = vunpack.c.l.b16 %v825
        %v1007 = vunpack.c.l.b16 %v826
        %v1008 = vunpack.c.l.b16 %v827
        %v1009 = vunpack.c.l.b16 %v828
        %v1010 = vunpack.c.l.b16 %v829
        %v1011 = vunpack.c.l.b16 %v830
        %v1012 = vunpack.c.l.b16 %v831
        %v1013 = vpack.c.b16 %v998, %v997
        %v1014 = vpack.c.b16 %v1000, %v999
        %v1015 = vpack.c.b16 %v1002, %v1001
        %v1016 = vpack.c.b16 %v1004, %v1003
        %v1017 = vpack.c.b16 %v1006, %v1005
        %v1018 = vpack.c.b16 %v1008, %v1007
        %v1019 = vpack.c.b16 %v1010, %v1009
        %v1020 = vpack.c.b16 %v1012, %v1011
        %1029 = vmatpush.bf16.msra.mxu0 %v1020
        %1030 = vmatpush.bf16.msra.mxu0 %v1019
        %1031 = vmatpush.bf16.msra.mxu0 %v1018
        %1032 = vmatpush.bf16.msra.mxu0 %v1017
        %1033 = vmatpush.bf16.msra.mxu0 %v1016
        %1034 = vmatpush.bf16.msra.mxu0 %v1015
        %1035 = vmatpush.bf16.msra.mxu0 %v1014
        %1036 = vmatpush.bf16.msra.mxu0 %v1013
        %1037 = vmatmul.bf16.gmra.mxu0 %v970
        %v1038 = vpop.f32.mrf.mxu0
        %v1039 = vadd.f32 %v979, %v1038
        %v1040 = vpop.f32.mrf.mxu0
        %v1041 = vadd.f32 %v979, %v1040
        %1042 = vmatmul.bf16.gmra.mxu0 %v971
        %v1043 = vpop.f32.mrf.mxu0
        %v1044 = vadd.f32 %v979, %v1043
        %v1045 = vpop.f32.mrf.mxu0
        %v1046 = vadd.f32 %v979, %v1045
        %1047 = vmatmul.bf16.gmra.mxu0 %v972
        %v1048 = vpop.f32.mrf.mxu0
        %v1049 = vadd.f32 %v979, %v1048
        %v1050 = vpop.f32.mrf.mxu0
        %v1051 = vadd.f32 %v979, %v1050
        %1052 = vmatmul.bf16.gmra.mxu0 %v973
        %v1053 = vpop.f32.mrf.mxu0
        %v1054 = vadd.f32 %v979, %v1053
        %v1055 = vpop.f32.mrf.mxu0
        %v1056 = vadd.f32 %v979, %v1055
        %1057 = vmatmul.bf16.gmra.mxu0 %v974
        %v1058 = vpop.f32.mrf.mxu0
        %v1059 = vadd.f32 %v979, %v1058
        %v1060 = vpop.f32.mrf.mxu0
        %v1061 = vadd.f32 %v979, %v1060
        %1062 = vmatmul.bf16.gmra.mxu0 %v975
        %v1063 = vpop.f32.mrf.mxu0
        %v1064 = vadd.f32 %v979, %v1063
        %v1065 = vpop.f32.mrf.mxu0
        %v1066 = vadd.f32 %v979, %v1065
        %1067 = vmatmul.bf16.gmra.mxu0 %v976
        %v1068 = vpop.f32.mrf.mxu0
        %v1069 = vadd.f32 %v979, %v1068
        %v1070 = vpop.f32.mrf.mxu0
        %v1071 = vadd.f32 %v979, %v1070
        %1072 = vmatmul.bf16.gmra.mxu0 %v977
        %v1073 = vpop.f32.mrf.mxu0
        %v1074 = vadd.f32 %v979, %v1073
        %v1075 = vpop.f32.mrf.mxu0
        %v1076 = vadd.f32 %v979, %v1075
        %1077 = vdwg.mxu0
        %v1078 = vmax.f32 %v1039, 0.0
        %v1079 = vmax.f32 %v1041, 0.0
        %v1080 = vmax.f32 %v1044, 0.0
        %v1081 = vmax.f32 %v1046, 0.0
        %v1082 = vmax.f32 %v1049, 0.0
        %v1083 = vmax.f32 %v1051, 0.0
        %v1084 = vmax.f32 %v1054, 0.0
        %v1085 = vmax.f32 %v1056, 0.0
        %v1086 = vmax.f32 %v1059, 0.0
        %v1087 = vmax.f32 %v1061, 0.0
        %v1088 = vmax.f32 %v1064, 0.0
        %v1089 = vmax.f32 %v1066, 0.0
        %v1090 = vmax.f32 %v1069, 0.0
        %v1091 = vmax.f32 %v1071, 0.0
        %v1092 = vmax.f32 %v1074, 0.0
        %v1093 = vmax.f32 %v1076, 0.0
        %1094 = vset.pattern.permute.xlu0 0
        %1095 = vperm.xlu0 %1094, %v797
        %v1096 = vpop.permute.xlu0 %1095
        %1098 = vset.pattern.permute.xlu0 0
        %1099 = vperm.xlu0 %1098, %v798
        %v1100 = vpop.permute.xlu0 %1099
        %1102 = vset.pattern.permute.xlu0 0
        %1103 = vperm.xlu0 %1102, %v799
        %v1104 = vpop.permute.xlu0 %1103
        %1106 = vset.pattern.permute.xlu0 0
        %1107 = vperm.xlu0 %1106, %v800
        %v1108 = vpop.permute.xlu0 %1107
        %1110 = vset.pattern.permute.xlu0 0
        %1111 = vperm.xlu0 %1110, %v801
        %v1112 = vpop.permute.xlu0 %1111
        %1114 = vset.pattern.permute.xlu0 0
        %1115 = vperm.xlu0 %1114, %v802
        %v1116 = vpop.permute.xlu0 %1115
        %1118 = vset.pattern.permute.xlu0 0
        %1119 = vperm.xlu0 %1118, %v803
        %v1120 = vpop.permute.xlu0 %1119
        %1122 = vset.pattern.permute.xlu0 0
        %1123 = vperm.xlu0 %1122, %v804
        %v1124 = vpop.permute.xlu0 %1123
        %1126 = vset.pattern.permute.xlu0 0
        %1127 = vperm.xlu0 %1126, %v805
        %v1128 = vpop.permute.xlu0 %1127
        %1130 = vset.pattern.permute.xlu0 0
        %1131 = vperm.xlu0 %1130, %v806
        %v1132 = vpop.permute.xlu0 %1131
        %1134 = vset.pattern.permute.xlu0 0
        %1135 = vperm.xlu0 %1134, %v807
        %v1136 = vpop.permute.xlu0 %1135
        %1138 = vset.pattern.permute.xlu0 0
        %1139 = vperm.xlu0 %1138, %v808
        %v1140 = vpop.permute.xlu0 %1139
        %1142 = vset.pattern.permute.xlu0 0
        %1143 = vperm.xlu0 %1142, %v809
        %v1144 = vpop.permute.xlu0 %1143
        %1146 = vset.pattern.permute.xlu0 0
        %1147 = vperm.xlu0 %1146, %v810
        %v1148 = vpop.permute.xlu0 %1147
        %1150 = vset.pattern.permute.xlu0 0
        %1151 = vperm.xlu0 %1150, %v811
        %v1152 = vpop.permute.xlu0 %1151
        %1154 = vset.pattern.permute.xlu0 0
        %1155 = vperm.xlu0 %1154, %v812
        %v1156 = vpop.permute.xlu0 %1155
        %v1158 = vmul.f32 %v1078, %v1096
        %v1159 = vmul.f32 %v1079, %v1100
        %v1160 = vmul.f32 %v1080, %v1104
        %v1161 = vmul.f32 %v1081, %v1108
        %v1162 = vmul.f32 %v1082, %v1112
        %v1163 = vmul.f32 %v1083, %v1116
        %v1164 = vmul.f32 %v1084, %v1120
        %v1165 = vmul.f32 %v1085, %v1124
        %v1166 = vmul.f32 %v1086, %v1128
        %v1167 = vmul.f32 %v1087, %v1132
        %v1168 = vmul.f32 %v1088, %v1136
        %v1169 = vmul.f32 %v1089, %v1140
        %v1170 = vmul.f32 %v1090, %v1144
        %v1171 = vmul.f32 %v1091, %v1148
        %v1172 = vmul.f32 %v1092, %v1152
        %v1173 = vmul.f32 %v1093, %v1156
        %v1174 = vrot.slane %v1158, 4
        %v1175 = vadd.f32 %v1158, %v1174
        %v1176 = vrot.slane %v1175, 2
        %v1177 = vadd.f32 %v1175, %v1176
        %v1178 = vrot.slane %v1177, 1
        %v1179 = vadd.f32 %v1177, %v1178
        %v1180 = vrot.slane %v1159, 4
        %v1181 = vadd.f32 %v1159, %v1180
        %v1182 = vrot.slane %v1181, 2
        %v1183 = vadd.f32 %v1181, %v1182
        %v1184 = vrot.slane %v1183, 1
        %v1185 = vadd.f32 %v1183, %v1184
        %v1186 = vrot.slane %v1160, 4
        %v1187 = vadd.f32 %v1160, %v1186
        %v1188 = vrot.slane %v1187, 2
        %v1189 = vadd.f32 %v1187, %v1188
        %v1190 = vrot.slane %v1189, 1
        %v1191 = vadd.f32 %v1189, %v1190
        %v1192 = vrot.slane %v1161, 4
        %v1193 = vadd.f32 %v1161, %v1192
        %v1194 = vrot.slane %v1193, 2
        %v1195 = vadd.f32 %v1193, %v1194
        %v1196 = vrot.slane %v1195, 1
        %v1197 = vadd.f32 %v1195, %v1196
        %v1198 = vrot.slane %v1162, 4
        %v1199 = vadd.f32 %v1162, %v1198
        %v1200 = vrot.slane %v1199, 2
        %v1201 = vadd.f32 %v1199, %v1200
        %v1202 = vrot.slane %v1201, 1
        %v1203 = vadd.f32 %v1201, %v1202
        %v1204 = vrot.slane %v1163, 4
        %v1205 = vadd.f32 %v1163, %v1204
        %v1206 = vrot.slane %v1205, 2
        %v1207 = vadd.f32 %v1205, %v1206
        %v1208 = vrot.slane %v1207, 1
        %v1209 = vadd.f32 %v1207, %v1208
        %v1210 = vrot.slane %v1164, 4
        %v1211 = vadd.f32 %v1164, %v1210
        %v1212 = vrot.slane %v1211, 2
        %v1213 = vadd.f32 %v1211, %v1212
        %v1214 = vrot.slane %v1213, 1
        %v1215 = vadd.f32 %v1213, %v1214
        %v1216 = vrot.slane %v1165, 4
        %v1217 = vadd.f32 %v1165, %v1216
        %v1218 = vrot.slane %v1217, 2
        %v1219 = vadd.f32 %v1217, %v1218
        %v1220 = vrot.slane %v1219, 1
        %v1221 = vadd.f32 %v1219, %v1220
        %v1222 = vrot.slane %v1166, 4
        %v1223 = vadd.f32 %v1166, %v1222
        %v1224 = vrot.slane %v1223, 2
        %v1225 = vadd.f32 %v1223, %v1224
        %v1226 = vrot.slane %v1225, 1
        %v1227 = vadd.f32 %v1225, %v1226
        %v1228 = vrot.slane %v1167, 4
        %v1229 = vadd.f32 %v1167, %v1228
        %v1230 = vrot.slane %v1229, 2
        %v1231 = vadd.f32 %v1229, %v1230
        %v1232 = vrot.slane %v1231, 1
        %v1233 = vadd.f32 %v1231, %v1232
        %v1234 = vrot.slane %v1168, 4
        %v1235 = vadd.f32 %v1168, %v1234
        %v1236 = vrot.slane %v1235, 2
        %v1237 = vadd.f32 %v1235, %v1236
        %v1238 = vrot.slane %v1237, 1
        %v1239 = vadd.f32 %v1237, %v1238
        %v1240 = vrot.slane %v1169, 4
        %v1241 = vadd.f32 %v1169, %v1240
        %v1242 = vrot.slane %v1241, 2
        %v1243 = vadd.f32 %v1241, %v1242
        %v1244 = vrot.slane %v1243, 1
        %v1245 = vadd.f32 %v1243, %v1244
        %v1246 = vrot.slane %v1170, 4
        %v1247 = vadd.f32 %v1170, %v1246
        %v1248 = vrot.slane %v1247, 2
        %v1249 = vadd.f32 %v1247, %v1248
        %v1250 = vrot.slane %v1249, 1
        %v1251 = vadd.f32 %v1249, %v1250
        %v1252 = vrot.slane %v1171, 4
        %v1253 = vadd.f32 %v1171, %v1252
        %v1254 = vrot.slane %v1253, 2
        %v1255 = vadd.f32 %v1253, %v1254
        %v1256 = vrot.slane %v1255, 1
        %v1257 = vadd.f32 %v1255, %v1256
        %v1258 = vrot.slane %v1172, 4
        %v1259 = vadd.f32 %v1172, %v1258
        %v1260 = vrot.slane %v1259, 2
        %v1261 = vadd.f32 %v1259, %v1260
        %v1262 = vrot.slane %v1261, 1
        %v1263 = vadd.f32 %v1261, %v1262
        %v1264 = vrot.slane %v1173, 4
        %v1265 = vadd.f32 %v1173, %v1264
        %v1266 = vrot.slane %v1265, 2
        %v1267 = vadd.f32 %v1265, %v1266
        %v1268 = vrot.slane %v1267, 1
        %v1269 = vadd.f32 %v1267, %v1268
        %vm1270 = vcmask 7168
        %v1271 = vsel %vm1270, %v797, 0.0
        %v1272 = vrot.slane %v1271, 4
        %v1273 = vadd.f32 %v1271, %v1272
        %v1274 = vrot.slane %v1273, 2
        %v1275 = vadd.f32 %v1273, %v1274
        %v1276 = vrot.slane %v1275, 1
        %v1277 = vadd.f32 %v1275, %v1276
        %v1278 = vsel %vm1270, %v798, 0.0
        %v1279 = vrot.slane %v1278, 4
        %v1280 = vadd.f32 %v1278, %v1279
        %v1281 = vrot.slane %v1280, 2
        %v1282 = vadd.f32 %v1280, %v1281
        %v1283 = vrot.slane %v1282, 1
        %v1284 = vadd.f32 %v1282, %v1283
        %v1285 = vsel %vm1270, %v799, 0.0
        %v1286 = vrot.slane %v1285, 4
        %v1287 = vadd.f32 %v1285, %v1286
        %v1288 = vrot.slane %v1287, 2
        %v1289 = vadd.f32 %v1287, %v1288
        %v1290 = vrot.slane %v1289, 1
        %v1291 = vadd.f32 %v1289, %v1290
        %v1292 = vsel %vm1270, %v800, 0.0
        %v1293 = vrot.slane %v1292, 4
        %v1294 = vadd.f32 %v1292, %v1293
        %v1295 = vrot.slane %v1294, 2
        %v1296 = vadd.f32 %v1294, %v1295
        %v1297 = vrot.slane %v1296, 1
        %v1298 = vadd.f32 %v1296, %v1297
        %v1299 = vsel %vm1270, %v801, 0.0
        %v1300 = vrot.slane %v1299, 4
        %v1301 = vadd.f32 %v1299, %v1300
        %v1302 = vrot.slane %v1301, 2
        %v1303 = vadd.f32 %v1301, %v1302
        %v1304 = vrot.slane %v1303, 1
        %v1305 = vadd.f32 %v1303, %v1304
        %v1306 = vsel %vm1270, %v802, 0.0
        %v1307 = vrot.slane %v1306, 4
        %v1308 = vadd.f32 %v1306, %v1307
        %v1309 = vrot.slane %v1308, 2
        %v1310 = vadd.f32 %v1308, %v1309
        %v1311 = vrot.slane %v1310, 1
        %v1312 = vadd.f32 %v1310, %v1311
        %v1313 = vsel %vm1270, %v803, 0.0
        %v1314 = vrot.slane %v1313, 4
        %v1315 = vadd.f32 %v1313, %v1314
        %v1316 = vrot.slane %v1315, 2
        %v1317 = vadd.f32 %v1315, %v1316
        %v1318 = vrot.slane %v1317, 1
        %v1319 = vadd.f32 %v1317, %v1318
        %v1320 = vsel %vm1270, %v804, 0.0
        %v1321 = vrot.slane %v1320, 4
        %v1322 = vadd.f32 %v1320, %v1321
        %v1323 = vrot.slane %v1322, 2
        %v1324 = vadd.f32 %v1322, %v1323
        %v1325 = vrot.slane %v1324, 1
        %v1326 = vadd.f32 %v1324, %v1325
        %v1327 = vsel %vm1270, %v805, 0.0
        %v1328 = vrot.slane %v1327, 4
        %v1329 = vadd.f32 %v1327, %v1328
        %v1330 = vrot.slane %v1329, 2
        %v1331 = vadd.f32 %v1329, %v1330
        %v1332 = vrot.slane %v1331, 1
        %v1333 = vadd.f32 %v1331, %v1332
        %v1334 = vsel %vm1270, %v806, 0.0
        %v1335 = vrot.slane %v1334, 4
        %v1336 = vadd.f32 %v1334, %v1335
        %v1337 = vrot.slane %v1336, 2
        %v1338 = vadd.f32 %v1336, %v1337
        %v1339 = vrot.slane %v1338, 1
        %v1340 = vadd.f32 %v1338, %v1339
        %v1341 = vsel %vm1270, %v807, 0.0
        %v1342 = vrot.slane %v1341, 4
        %v1343 = vadd.f32 %v1341, %v1342
        %v1344 = vrot.slane %v1343, 2
        %v1345 = vadd.f32 %v1343, %v1344
        %v1346 = vrot.slane %v1345, 1
        %v1347 = vadd.f32 %v1345, %v1346
        %v1348 = vsel %vm1270, %v808, 0.0
        %v1349 = vrot.slane %v1348, 4
        %v1350 = vadd.f32 %v1348, %v1349
        %v1351 = vrot.slane %v1350, 2
        %v1352 = vadd.f32 %v1350, %v1351
        %v1353 = vrot.slane %v1352, 1
        %v1354 = vadd.f32 %v1352, %v1353
        %v1355 = vsel %vm1270, %v809, 0.0
        %v1356 = vrot.slane %v1355, 4
        %v1357 = vadd.f32 %v1355, %v1356
        %v1358 = vrot.slane %v1357, 2
        %v1359 = vadd.f32 %v1357, %v1358
        %v1360 = vrot.slane %v1359, 1
        %v1361 = vadd.f32 %v1359, %v1360
        %v1362 = vsel %vm1270, %v810, 0.0
        %v1363 = vrot.slane %v1362, 4
        %v1364 = vadd.f32 %v1362, %v1363
        %v1365 = vrot.slane %v1364, 2
        %v1366 = vadd.f32 %v1364, %v1365
        %v1367 = vrot.slane %v1366, 1
        %v1368 = vadd.f32 %v1366, %v1367
        %v1369 = vsel %vm1270, %v811, 0.0
        %v1370 = vrot.slane %v1369, 4
        %v1371 = vadd.f32 %v1369, %v1370
        %v1372 = vrot.slane %v1371, 2
        %v1373 = vadd.f32 %v1371, %v1372
        %v1374 = vrot.slane %v1373, 1
        %v1375 = vadd.f32 %v1373, %v1374
        %v1376 = vsel %vm1270, %v812, 0.0
        %v1377 = vrot.slane %v1376, 4
        %v1378 = vadd.f32 %v1376, %v1377
        %v1379 = vrot.slane %v1378, 2
        %v1380 = vadd.f32 %v1378, %v1379
        %v1381 = vrot.slane %v1380, 1
        %v1382 = vadd.f32 %v1380, %v1381
        %v1383 = vrcp.pop %v1277
        %v1384 = vrcp.pop %v1284
        %v1385 = vrcp.pop %v1291
        %v1386 = vrcp.pop %v1298
        %v1387 = vrcp.pop %v1305
        %v1388 = vrcp.pop %v1312
        %v1389 = vrcp.pop %v1319
        %v1390 = vrcp.pop %v1326
        %v1391 = vrcp.pop %v1333
        %v1392 = vrcp.pop %v1340
        %v1393 = vrcp.pop %v1347
        %v1394 = vrcp.pop %v1354
        %v1395 = vrcp.pop %v1361
        %v1396 = vrcp.pop %v1368
        %v1397 = vrcp.pop %v1375
        %v1398 = vrcp.pop %v1382
        %1400 = vset.pattern.permute.xlu0 0
        %1401 = vperm.xlu0 %1400, %v1383
        %v1402 = vpop.permute.xlu0 %1401
        %1405 = vset.pattern.permute.xlu0 0
        %1406 = vperm.xlu0 %1405, %v1384
        %v1407 = vpop.permute.xlu0 %1406
        %1410 = vset.pattern.permute.xlu0 0
        %1411 = vperm.xlu0 %1410, %v1385
        %v1412 = vpop.permute.xlu0 %1411
        %1415 = vset.pattern.permute.xlu0 0
        %1416 = vperm.xlu0 %1415, %v1386
        %v1417 = vpop.permute.xlu0 %1416
        %1420 = vset.pattern.permute.xlu0 0
        %1421 = vperm.xlu0 %1420, %v1387
        %v1422 = vpop.permute.xlu0 %1421
        %1425 = vset.pattern.permute.xlu0 0
        %1426 = vperm.xlu0 %1425, %v1388
        %v1427 = vpop.permute.xlu0 %1426
        %1430 = vset.pattern.permute.xlu0 0
        %1431 = vperm.xlu0 %1430, %v1389
        %v1432 = vpop.permute.xlu0 %1431
        %1435 = vset.pattern.permute.xlu0 0
        %1436 = vperm.xlu0 %1435, %v1390
        %v1437 = vpop.permute.xlu0 %1436
        %1440 = vset.pattern.permute.xlu0 0
        %1441 = vperm.xlu0 %1440, %v1391
        %v1442 = vpop.permute.xlu0 %1441
        %1445 = vset.pattern.permute.xlu0 0
        %1446 = vperm.xlu0 %1445, %v1392
        %v1447 = vpop.permute.xlu0 %1446
        %1450 = vset.pattern.permute.xlu0 0
        %1451 = vperm.xlu0 %1450, %v1393
        %v1452 = vpop.permute.xlu0 %1451
        %1455 = vset.pattern.permute.xlu0 0
        %1456 = vperm.xlu0 %1455, %v1394
        %v1457 = vpop.permute.xlu0 %1456
        %1460 = vset.pattern.permute.xlu0 0
        %1461 = vperm.xlu0 %1460, %v1395
        %v1462 = vpop.permute.xlu0 %1461
        %1465 = vset.pattern.permute.xlu0 0
        %1466 = vperm.xlu0 %1465, %v1396
        %v1467 = vpop.permute.xlu0 %1466
        %1470 = vset.pattern.permute.xlu0 0
        %1471 = vperm.xlu0 %1470, %v1397
        %v1472 = vpop.permute.xlu0 %1471
        %1475 = vset.pattern.permute.xlu0 0
        %1476 = vperm.xlu0 %1475, %v1398
        %v1477 = vpop.permute.xlu0 %1476
        %v1479 = vmul.f32 %v1179, %v1402
        %v1480 = vmul.f32 %v1185, %v1407
        %v1481 = vmul.f32 %v1191, %v1412
        %v1482 = vmul.f32 %v1197, %v1417
        %v1483 = vmul.f32 %v1203, %v1422
        %v1484 = vmul.f32 %v1209, %v1427
        %v1485 = vmul.f32 %v1215, %v1432
        %v1486 = vmul.f32 %v1221, %v1437
        %v1487 = vmul.f32 %v1227, %v1442
        %v1488 = vmul.f32 %v1233, %v1447
        %v1489 = vmul.f32 %v1239, %v1452
        %v1490 = vmul.f32 %v1245, %v1457
        %v1491 = vmul.f32 %v1251, %v1462
        %v1492 = vmul.f32 %v1257, %v1467
        %v1493 = vmul.f32 %v1263, %v1472
        %v1494 = vmul.f32 %v1269, %v1477
        %v1495 = vld [vmem:[%s787] sm:$0xff]
        %v1496 = vld [vmem:[%s787 + $0x8] sm:$0xff]
        %v1497 = vld [vmem:[%s787 + $0x10] sm:$0xff]
        %v1498 = vld [vmem:[%s787 + $0x18] sm:$0xff]
        %v1499 = vld [vmem:[%s787 + $0x20] sm:$0xff]
        %v1500 = vld [vmem:[%s787 + $0x28] sm:$0xff]
        %v1501 = vld [vmem:[%s787 + $0x30] sm:$0xff]
        %v1502 = vld [vmem:[%s787 + $0x38] sm:$0xff]
        %v1503 = vld [vmem:[%s787 + $0x40] sm:$0xff]
        %v1504 = vld [vmem:[%s787 + $0x48] sm:$0xff]
        %v1505 = vld [vmem:[%s787 + $0x50] sm:$0xff]
        %v1506 = vld [vmem:[%s787 + $0x58] sm:$0xff]
        %v1507 = vld [vmem:[%s787 + $0x60] sm:$0xff]
        %v1508 = vld [vmem:[%s787 + $0x68] sm:$0xff]
        %v1509 = vld [vmem:[%s787 + $0x70] sm:$0xff]
        %v1510 = vld [vmem:[%s787 + $0x78] sm:$0xff]
        %v1511 = vld [vmem:[%s6] sm:$0xff]
        %v1512 = vld [vmem:[%s6 + $0x8] sm:$0xff]
        %v1513 = vld [vmem:[%s6 + $0x10] sm:$0x1f]
        %v1514 = vld [vmem:[%s7] sm:$0x1]
        %v1515 = vld [vmem:[%s8] sm:$0xf]
        %v1516 = vld [vmem:[%s8 + $0x4] sm:$0xf]
        %v1517 = vld [vmem:[%s8 + $0x8] sm:$0xf]
        %v1518 = vld [vmem:[%s8 + $0xc] sm:$0xf]
        %v1519 = vld [vmem:[%s8 + $0x10] sm:$0xf]
        %v1520 = vld [vmem:[%s8 + $0x14] sm:$0xf]
        %v1521 = vld [vmem:[%s8 + $0x18] sm:$0xf]
        %v1522 = vld [vmem:[%s8 + $0x1c] sm:$0xf]
        %v1523 = vld [vmem:[%s8 + $0x20] sm:$0xf]
        %v1524 = vld [vmem:[%s8 + $0x24] sm:$0xf]
        %v1525 = vld [vmem:[%s8 + $0x28] sm:$0xf]
        %v1526 = vld [vmem:[%s8 + $0x2c] sm:$0xf]
        %v1527 = vld [vmem:[%s8 + $0x30] sm:$0xf]
        %v1528 = vld [vmem:[%s8 + $0x34] sm:$0xf]
        %v1529 = vld [vmem:[%s8 + $0x38] sm:$0xf]
        %v1530 = vld [vmem:[%s8 + $0x3c] sm:$0xf]
        %v1531 = vld [vmem:[%s9] sm:$0x1]
        %v1533 = vperm.slane %v1514, 0
        %vm1535 = vcmask 171008
        %v1537 = vsel %vm1535, %v1495, 0
        %v1540 = vsel %vm1535, %v1496, 0
        %v1543 = vsel %vm1535, %v1497, 0
        %v1546 = vsel %vm1535, %v1498, 0
        %v1549 = vsel %vm1535, %v1499, 0
        %v1552 = vsel %vm1535, %v1500, 0
        %v1555 = vsel %vm1535, %v1501, 0
        %v1558 = vsel %vm1535, %v1502, 0
        %v1561 = vsel %vm1535, %v1503, 0
        %v1564 = vsel %vm1535, %v1504, 0
        %v1567 = vsel %vm1535, %v1505, 0
        %v1570 = vsel %vm1535, %v1506, 0
        %v1573 = vsel %vm1535, %v1507, 0
        %v1576 = vsel %vm1535, %v1508, 0
        %v1579 = vsel %vm1535, %v1509, 0
        %v1582 = vsel %vm1535, %v1510, 0
        %vm1584 = vcmask 1044480
        %v1586 = vsel %vm1584, %v1513, 0
        %1588 = vmatpush.msra.mxu0 0.0
        %1589 = vmatpush.msra.mxu0 0.0
        %1590 = vmatpush.msra.mxu0 0.0
        %1591 = vmatpush.msra.mxu0 0.0
        %1592 = vmatpush.msra.mxu0 0.0
        %1593 = vmatpush.msra.mxu0 0.0
        %1594 = vmatpush.msra.mxu0 0.0
        %1595 = vmatpush.msra.mxu0 0.0
        %1596 = vmatpush.msra.mxu0 0.0
        %1597 = vmatpush.msra.mxu0 0.0
        %1598 = vmatpush.msra.mxu0 0.0
        %1599 = vmatpush.msra.mxu0 0.0
        %1600 = vmatpush.msra.mxu0 0.0
        %1601 = vmatpush.msra.mxu0 %v1586
        %1602 = vmatpush.msra.mxu0 %v1512
        %1603 = vmatpush.msra.mxu0 %v1511
        %1604 = vmatmul.f32.gmra.mxu0 %v1537
        %v1605 = vpop.f32.mrf.mxu0
        %v1606 = vadd.f32 %v1533, %v1605
        %1607 = vmatmul.f32.gmra.mxu0 %v1540
        %v1608 = vpop.f32.mrf.mxu0
        %v1609 = vadd.f32 %v1533, %v1608
        %1610 = vmatmul.f32.gmra.mxu0 %v1543
        %v1611 = vpop.f32.mrf.mxu0
        %v1612 = vadd.f32 %v1533, %v1611
        %1613 = vmatmul.f32.gmra.mxu0 %v1546
        %v1614 = vpop.f32.mrf.mxu0
        %v1615 = vadd.f32 %v1533, %v1614
        %1616 = vmatmul.f32.gmra.mxu0 %v1549
        %v1617 = vpop.f32.mrf.mxu0
        %v1618 = vadd.f32 %v1533, %v1617
        %1619 = vmatmul.f32.gmra.mxu0 %v1552
        %v1620 = vpop.f32.mrf.mxu0
        %v1621 = vadd.f32 %v1533, %v1620
        %1622 = vmatmul.f32.gmra.mxu0 %v1555
        %v1623 = vpop.f32.mrf.mxu0
        %v1624 = vadd.f32 %v1533, %v1623
        %1625 = vmatmul.f32.gmra.mxu0 %v1558
        %v1626 = vpop.f32.mrf.mxu0
        %v1627 = vadd.f32 %v1533, %v1626
        %1628 = vmatmul.f32.gmra.mxu0 %v1561
        %v1629 = vpop.f32.mrf.mxu0
        %v1630 = vadd.f32 %v1533, %v1629
        %1631 = vmatmul.f32.gmra.mxu0 %v1564
        %v1632 = vpop.f32.mrf.mxu0
        %v1633 = vadd.f32 %v1533, %v1632
        %1634 = vmatmul.f32.gmra.mxu0 %v1567
        %v1635 = vpop.f32.mrf.mxu0
        %v1636 = vadd.f32 %v1533, %v1635
        %1637 = vmatmul.f32.gmra.mxu0 %v1570
        %v1638 = vpop.f32.mrf.mxu0
        %v1639 = vadd.f32 %v1533, %v1638
        %1640 = vmatmul.f32.gmra.mxu0 %v1573
        %v1641 = vpop.f32.mrf.mxu0
        %v1642 = vadd.f32 %v1533, %v1641
        %1643 = vmatmul.f32.gmra.mxu0 %v1576
        %v1644 = vpop.f32.mrf.mxu0
        %v1645 = vadd.f32 %v1533, %v1644
        %1646 = vmatmul.f32.gmra.mxu0 %v1579
        %v1647 = vpop.f32.mrf.mxu0
        %v1648 = vadd.f32 %v1533, %v1647
        %1649 = vmatmul.f32.gmra.mxu0 %v1582
        %v1650 = vpop.f32.mrf.mxu0
        %v1651 = vadd.f32 %v1533, %v1650
        %1652 = vdwg.mxu0
        %v1653 = vmax.f32 %v1606, 0.0
        %v1654 = vmax.f32 %v1609, 0.0
        %v1655 = vmax.f32 %v1612, 0.0
        %v1656 = vmax.f32 %v1615, 0.0
        %v1657 = vmax.f32 %v1618, 0.0
        %v1658 = vmax.f32 %v1621, 0.0
        %v1659 = vmax.f32 %v1624, 0.0
        %v1660 = vmax.f32 %v1627, 0.0
        %v1661 = vmax.f32 %v1630, 0.0
        %v1662 = vmax.f32 %v1633, 0.0
        %v1663 = vmax.f32 %v1636, 0.0
        %v1664 = vmax.f32 %v1639, 0.0
        %v1665 = vmax.f32 %v1642, 0.0
        %v1666 = vmax.f32 %v1645, 0.0
        %v1667 = vmax.f32 %v1648, 0.0
        %v1668 = vmax.f32 %v1651, 0.0
        %v1669 = vpack.c.bf16 %v1654, %v1653
        %v1670 = vpack.c.bf16 %v1656, %v1655
        %v1671 = vpack.c.bf16 %v1658, %v1657
        %v1672 = vpack.c.bf16 %v1660, %v1659
        %v1673 = vpack.c.bf16 %v1662, %v1661
        %v1674 = vpack.c.bf16 %v1664, %v1663
        %v1675 = vpack.c.bf16 %v1666, %v1665
        %v1676 = vpack.c.bf16 %v1668, %v1667
        %v1678 = vperm.slane %v1531, 0
        %v1696 = vunpack.c.l.b16 %v1515
        %v1697 = vunpack.c.l.b16 %v1516
        %v1698 = vunpack.c.l.b16 %v1517
        %v1699 = vunpack.c.l.b16 %v1518
        %v1700 = vunpack.c.l.b16 %v1519
        %v1701 = vunpack.c.l.b16 %v1520
        %v1702 = vunpack.c.l.b16 %v1521
        %v1703 = vunpack.c.l.b16 %v1522
        %v1704 = vunpack.c.l.b16 %v1523
        %v1705 = vunpack.c.l.b16 %v1524
        %v1706 = vunpack.c.l.b16 %v1525
        %v1707 = vunpack.c.l.b16 %v1526
        %v1708 = vunpack.c.l.b16 %v1527
        %v1709 = vunpack.c.l.b16 %v1528
        %v1710 = vunpack.c.l.b16 %v1529
        %v1711 = vunpack.c.l.b16 %v1530
        %v1712 = vpack.c.b16 %v1697, %v1696
        %v1713 = vpack.c.b16 %v1699, %v1698
        %v1714 = vpack.c.b16 %v1701, %v1700
        %v1715 = vpack.c.b16 %v1703, %v1702
        %v1716 = vpack.c.b16 %v1705, %v1704
        %v1717 = vpack.c.b16 %v1707, %v1706
        %v1718 = vpack.c.b16 %v1709, %v1708
        %v1719 = vpack.c.b16 %v1711, %v1710
        %1728 = vmatpush.bf16.msra.mxu0 %v1719
        %1729 = vmatpush.bf16.msra.mxu0 %v1718
        %1730 = vmatpush.bf16.msra.mxu0 %v1717
        %1731 = vmatpush.bf16.msra.mxu0 %v1716
        %1732 = vmatpush.bf16.msra.mxu0 %v1715
        %1733 = vmatpush.bf16.msra.mxu0 %v1714
        %1734 = vmatpush.bf16.msra.mxu0 %v1713
        %1735 = vmatpush.bf16.msra.mxu0 %v1712
        %1736 = vmatmul.bf16.gmra.mxu0 %v1669
        %v1737 = vpop.f32.mrf.mxu0
        %v1738 = vadd.f32 %v1678, %v1737
        %v1739 = vpop.f32.mrf.mxu0
        %v1740 = vadd.f32 %v1678, %v1739
        %1741 = vmatmul.bf16.gmra.mxu0 %v1670
        %v1742 = vpop.f32.mrf.mxu0
        %v1743 = vadd.f32 %v1678, %v1742
        %v1744 = vpop.f32.mrf.mxu0
        %v1745 = vadd.f32 %v1678, %v1744
        %1746 = vmatmul.bf16.gmra.mxu0 %v1671
        %v1747 = vpop.f32.mrf.mxu0
        %v1748 = vadd.f32 %v1678, %v1747
        %v1749 = vpop.f32.mrf.mxu0
        %v1750 = vadd.f32 %v1678, %v1749
        %1751 = vmatmul.bf16.gmra.mxu0 %v1672
        %v1752 = vpop.f32.mrf.mxu0
        %v1753 = vadd.f32 %v1678, %v1752
        %v1754 = vpop.f32.mrf.mxu0
        %v1755 = vadd.f32 %v1678, %v1754
        %1756 = vmatmul.bf16.gmra.mxu0 %v1673
        %v1757 = vpop.f32.mrf.mxu0
        %v1758 = vadd.f32 %v1678, %v1757
        %v1759 = vpop.f32.mrf.mxu0
        %v1760 = vadd.f32 %v1678, %v1759
        %1761 = vmatmul.bf16.gmra.mxu0 %v1674
        %v1762 = vpop.f32.mrf.mxu0
        %v1763 = vadd.f32 %v1678, %v1762
        %v1764 = vpop.f32.mrf.mxu0
        %v1765 = vadd.f32 %v1678, %v1764
        %1766 = vmatmul.bf16.gmra.mxu0 %v1675
        %v1767 = vpop.f32.mrf.mxu0
        %v1768 = vadd.f32 %v1678, %v1767
        %v1769 = vpop.f32.mrf.mxu0
        %v1770 = vadd.f32 %v1678, %v1769
        %1771 = vmatmul.bf16.gmra.mxu0 %v1676
        %v1772 = vpop.f32.mrf.mxu0
        %v1773 = vadd.f32 %v1678, %v1772
        %v1774 = vpop.f32.mrf.mxu0
        %v1775 = vadd.f32 %v1678, %v1774
        %1776 = vdwg.mxu0
        %v1777 = vmax.f32 %v1738, 0.0
        %v1778 = vmax.f32 %v1740, 0.0
        %v1779 = vmax.f32 %v1743, 0.0
        %v1780 = vmax.f32 %v1745, 0.0
        %v1781 = vmax.f32 %v1748, 0.0
        %v1782 = vmax.f32 %v1750, 0.0
        %v1783 = vmax.f32 %v1753, 0.0
        %v1784 = vmax.f32 %v1755, 0.0
        %v1785 = vmax.f32 %v1758, 0.0
        %v1786 = vmax.f32 %v1760, 0.0
        %v1787 = vmax.f32 %v1763, 0.0
        %v1788 = vmax.f32 %v1765, 0.0
        %v1789 = vmax.f32 %v1768, 0.0
        %v1790 = vmax.f32 %v1770, 0.0
        %v1791 = vmax.f32 %v1773, 0.0
        %v1792 = vmax.f32 %v1775, 0.0
        %1793 = vset.pattern.permute.xlu0 0
        %1794 = vperm.xlu0 %1793, %v1495
        %v1795 = vpop.permute.xlu0 %1794
        %1797 = vset.pattern.permute.xlu0 0
        %1798 = vperm.xlu0 %1797, %v1496
        %v1799 = vpop.permute.xlu0 %1798
        %1801 = vset.pattern.permute.xlu0 0
        %1802 = vperm.xlu0 %1801, %v1497
        %v1803 = vpop.permute.xlu0 %1802
        %1805 = vset.pattern.permute.xlu0 0
        %1806 = vperm.xlu0 %1805, %v1498
        %v1807 = vpop.permute.xlu0 %1806
        %1809 = vset.pattern.permute.xlu0 0
        %1810 = vperm.xlu0 %1809, %v1499
        %v1811 = vpop.permute.xlu0 %1810
        %1813 = vset.pattern.permute.xlu0 0
        %1814 = vperm.xlu0 %1813, %v1500
        %v1815 = vpop.permute.xlu0 %1814
        %1817 = vset.pattern.permute.xlu0 0
        %1818 = vperm.xlu0 %1817, %v1501
        %v1819 = vpop.permute.xlu0 %1818
        %1821 = vset.pattern.permute.xlu0 0
        %1822 = vperm.xlu0 %1821, %v1502
        %v1823 = vpop.permute.xlu0 %1822
        %1825 = vset.pattern.permute.xlu0 0
        %1826 = vperm.xlu0 %1825, %v1503
        %v1827 = vpop.permute.xlu0 %1826
        %1829 = vset.pattern.permute.xlu0 0
        %1830 = vperm.xlu0 %1829, %v1504
        %v1831 = vpop.permute.xlu0 %1830
        %1833 = vset.pattern.permute.xlu0 0
        %1834 = vperm.xlu0 %1833, %v1505
        %v1835 = vpop.permute.xlu0 %1834
        %1837 = vset.pattern.permute.xlu0 0
        %1838 = vperm.xlu0 %1837, %v1506
        %v1839 = vpop.permute.xlu0 %1838
        %1841 = vset.pattern.permute.xlu0 0
        %1842 = vperm.xlu0 %1841, %v1507
        %v1843 = vpop.permute.xlu0 %1842
        %1845 = vset.pattern.permute.xlu0 0
        %1846 = vperm.xlu0 %1845, %v1508
        %v1847 = vpop.permute.xlu0 %1846
        %1849 = vset.pattern.permute.xlu0 0
        %1850 = vperm.xlu0 %1849, %v1509
        %v1851 = vpop.permute.xlu0 %1850
        %1853 = vset.pattern.permute.xlu0 0
        %1854 = vperm.xlu0 %1853, %v1510
        %v1855 = vpop.permute.xlu0 %1854
        %v1857 = vmul.f32 %v1777, %v1795
        %v1858 = vmul.f32 %v1778, %v1799
        %v1859 = vmul.f32 %v1779, %v1803
        %v1860 = vmul.f32 %v1780, %v1807
        %v1861 = vmul.f32 %v1781, %v1811
        %v1862 = vmul.f32 %v1782, %v1815
        %v1863 = vmul.f32 %v1783, %v1819
        %v1864 = vmul.f32 %v1784, %v1823
        %v1865 = vmul.f32 %v1785, %v1827
        %v1866 = vmul.f32 %v1786, %v1831
        %v1867 = vmul.f32 %v1787, %v1835
        %v1868 = vmul.f32 %v1788, %v1839
        %v1869 = vmul.f32 %v1789, %v1843
        %v1870 = vmul.f32 %v1790, %v1847
        %v1871 = vmul.f32 %v1791, %v1851
        %v1872 = vmul.f32 %v1792, %v1855
        %v1873 = vrot.slane %v1857, 4
        %v1874 = vadd.f32 %v1857, %v1873
        %v1875 = vrot.slane %v1874, 2
        %v1876 = vadd.f32 %v1874, %v1875
        %v1877 = vrot.slane %v1876, 1
        %v1878 = vadd.f32 %v1876, %v1877
        %v1879 = vrot.slane %v1858, 4
        %v1880 = vadd.f32 %v1858, %v1879
        %v1881 = vrot.slane %v1880, 2
        %v1882 = vadd.f32 %v1880, %v1881
        %v1883 = vrot.slane %v1882, 1
        %v1884 = vadd.f32 %v1882, %v1883
        %v1885 = vrot.slane %v1859, 4
        %v1886 = vadd.f32 %v1859, %v1885
        %v1887 = vrot.slane %v1886, 2
        %v1888 = vadd.f32 %v1886, %v1887
        %v1889 = vrot.slane %v1888, 1
        %v1890 = vadd.f32 %v1888, %v1889
        %v1891 = vrot.slane %v1860, 4
        %v1892 = vadd.f32 %v1860, %v1891
        %v1893 = vrot.slane %v1892, 2
        %v1894 = vadd.f32 %v1892, %v1893
        %v1895 = vrot.slane %v1894, 1
        %v1896 = vadd.f32 %v1894, %v1895
        %v1897 = vrot.slane %v1861, 4
        %v1898 = vadd.f32 %v1861, %v1897
        %v1899 = vrot.slane %v1898, 2
        %v1900 = vadd.f32 %v1898, %v1899
        %v1901 = vrot.slane %v1900, 1
        %v1902 = vadd.f32 %v1900, %v1901
        %v1903 = vrot.slane %v1862, 4
        %v1904 = vadd.f32 %v1862, %v1903
        %v1905 = vrot.slane %v1904, 2
        %v1906 = vadd.f32 %v1904, %v1905
        %v1907 = vrot.slane %v1906, 1
        %v1908 = vadd.f32 %v1906, %v1907
        %v1909 = vrot.slane %v1863, 4
        %v1910 = vadd.f32 %v1863, %v1909
        %v1911 = vrot.slane %v1910, 2
        %v1912 = vadd.f32 %v1910, %v1911
        %v1913 = vrot.slane %v1912, 1
        %v1914 = vadd.f32 %v1912, %v1913
        %v1915 = vrot.slane %v1864, 4
        %v1916 = vadd.f32 %v1864, %v1915
        %v1917 = vrot.slane %v1916, 2
        %v1918 = vadd.f32 %v1916, %v1917
        %v1919 = vrot.slane %v1918, 1
        %v1920 = vadd.f32 %v1918, %v1919
        %v1921 = vrot.slane %v1865, 4
        %v1922 = vadd.f32 %v1865, %v1921
        %v1923 = vrot.slane %v1922, 2
        %v1924 = vadd.f32 %v1922, %v1923
        %v1925 = vrot.slane %v1924, 1
        %v1926 = vadd.f32 %v1924, %v1925
        %v1927 = vrot.slane %v1866, 4
        %v1928 = vadd.f32 %v1866, %v1927
        %v1929 = vrot.slane %v1928, 2
        %v1930 = vadd.f32 %v1928, %v1929
        %v1931 = vrot.slane %v1930, 1
        %v1932 = vadd.f32 %v1930, %v1931
        %v1933 = vrot.slane %v1867, 4
        %v1934 = vadd.f32 %v1867, %v1933
        %v1935 = vrot.slane %v1934, 2
        %v1936 = vadd.f32 %v1934, %v1935
        %v1937 = vrot.slane %v1936, 1
        %v1938 = vadd.f32 %v1936, %v1937
        %v1939 = vrot.slane %v1868, 4
        %v1940 = vadd.f32 %v1868, %v1939
        %v1941 = vrot.slane %v1940, 2
        %v1942 = vadd.f32 %v1940, %v1941
        %v1943 = vrot.slane %v1942, 1
        %v1944 = vadd.f32 %v1942, %v1943
        %v1945 = vrot.slane %v1869, 4
        %v1946 = vadd.f32 %v1869, %v1945
        %v1947 = vrot.slane %v1946, 2
        %v1948 = vadd.f32 %v1946, %v1947
        %v1949 = vrot.slane %v1948, 1
        %v1950 = vadd.f32 %v1948, %v1949
        %v1951 = vrot.slane %v1870, 4
        %v1952 = vadd.f32 %v1870, %v1951
        %v1953 = vrot.slane %v1952, 2
        %v1954 = vadd.f32 %v1952, %v1953
        %v1955 = vrot.slane %v1954, 1
        %v1956 = vadd.f32 %v1954, %v1955
        %v1957 = vrot.slane %v1871, 4
        %v1958 = vadd.f32 %v1871, %v1957
        %v1959 = vrot.slane %v1958, 2
        %v1960 = vadd.f32 %v1958, %v1959
        %v1961 = vrot.slane %v1960, 1
        %v1962 = vadd.f32 %v1960, %v1961
        %v1963 = vrot.slane %v1872, 4
        %v1964 = vadd.f32 %v1872, %v1963
        %v1965 = vrot.slane %v1964, 2
        %v1966 = vadd.f32 %v1964, %v1965
        %v1967 = vrot.slane %v1966, 1
        %v1968 = vadd.f32 %v1966, %v1967
        %v1969 = vsel %vm1270, %v1495, 0.0
        %v1970 = vrot.slane %v1969, 4
        %v1971 = vadd.f32 %v1969, %v1970
        %v1972 = vrot.slane %v1971, 2
        %v1973 = vadd.f32 %v1971, %v1972
        %v1974 = vrot.slane %v1973, 1
        %v1975 = vadd.f32 %v1973, %v1974
        %v1976 = vsel %vm1270, %v1496, 0.0
        %v1977 = vrot.slane %v1976, 4
        %v1978 = vadd.f32 %v1976, %v1977
        %v1979 = vrot.slane %v1978, 2
        %v1980 = vadd.f32 %v1978, %v1979
        %v1981 = vrot.slane %v1980, 1
        %v1982 = vadd.f32 %v1980, %v1981
        %v1983 = vsel %vm1270, %v1497, 0.0
        %v1984 = vrot.slane %v1983, 4
        %v1985 = vadd.f32 %v1983, %v1984
        %v1986 = vrot.slane %v1985, 2
        %v1987 = vadd.f32 %v1985, %v1986
        %v1988 = vrot.slane %v1987, 1
        %v1989 = vadd.f32 %v1987, %v1988
        %v1990 = vsel %vm1270, %v1498, 0.0
        %v1991 = vrot.slane %v1990, 4
        %v1992 = vadd.f32 %v1990, %v1991
        %v1993 = vrot.slane %v1992, 2
        %v1994 = vadd.f32 %v1992, %v1993
        %v1995 = vrot.slane %v1994, 1
        %v1996 = vadd.f32 %v1994, %v1995
        %v1997 = vsel %vm1270, %v1499, 0.0
        %v1998 = vrot.slane %v1997, 4
        %v1999 = vadd.f32 %v1997, %v1998
        %v2000 = vrot.slane %v1999, 2
        %v2001 = vadd.f32 %v1999, %v2000
        %v2002 = vrot.slane %v2001, 1
        %v2003 = vadd.f32 %v2001, %v2002
        %v2004 = vsel %vm1270, %v1500, 0.0
        %v2005 = vrot.slane %v2004, 4
        %v2006 = vadd.f32 %v2004, %v2005
        %v2007 = vrot.slane %v2006, 2
        %v2008 = vadd.f32 %v2006, %v2007
        %v2009 = vrot.slane %v2008, 1
        %v2010 = vadd.f32 %v2008, %v2009
        %v2011 = vsel %vm1270, %v1501, 0.0
        %v2012 = vrot.slane %v2011, 4
        %v2013 = vadd.f32 %v2011, %v2012
        %v2014 = vrot.slane %v2013, 2
        %v2015 = vadd.f32 %v2013, %v2014
        %v2016 = vrot.slane %v2015, 1
        %v2017 = vadd.f32 %v2015, %v2016
        %v2018 = vsel %vm1270, %v1502, 0.0
        %v2019 = vrot.slane %v2018, 4
        %v2020 = vadd.f32 %v2018, %v2019
        %v2021 = vrot.slane %v2020, 2
        %v2022 = vadd.f32 %v2020, %v2021
        %v2023 = vrot.slane %v2022, 1
        %v2024 = vadd.f32 %v2022, %v2023
        %v2025 = vsel %vm1270, %v1503, 0.0
        %v2026 = vrot.slane %v2025, 4
        %v2027 = vadd.f32 %v2025, %v2026
        %v2028 = vrot.slane %v2027, 2
        %v2029 = vadd.f32 %v2027, %v2028
        %v2030 = vrot.slane %v2029, 1
        %v2031 = vadd.f32 %v2029, %v2030
        %v2032 = vsel %vm1270, %v1504, 0.0
        %v2033 = vrot.slane %v2032, 4
        %v2034 = vadd.f32 %v2032, %v2033
        %v2035 = vrot.slane %v2034, 2
        %v2036 = vadd.f32 %v2034, %v2035
        %v2037 = vrot.slane %v2036, 1
        %v2038 = vadd.f32 %v2036, %v2037
        %v2039 = vsel %vm1270, %v1505, 0.0
        %v2040 = vrot.slane %v2039, 4
        %v2041 = vadd.f32 %v2039, %v2040
        %v2042 = vrot.slane %v2041, 2
        %v2043 = vadd.f32 %v2041, %v2042
        %v2044 = vrot.slane %v2043, 1
        %v2045 = vadd.f32 %v2043, %v2044
        %v2046 = vsel %vm1270, %v1506, 0.0
        %v2047 = vrot.slane %v2046, 4
        %v2048 = vadd.f32 %v2046, %v2047
        %v2049 = vrot.slane %v2048, 2
        %v2050 = vadd.f32 %v2048, %v2049
        %v2051 = vrot.slane %v2050, 1
        %v2052 = vadd.f32 %v2050, %v2051
        %v2053 = vsel %vm1270, %v1507, 0.0
        %v2054 = vrot.slane %v2053, 4
        %v2055 = vadd.f32 %v2053, %v2054
        %v2056 = vrot.slane %v2055, 2
        %v2057 = vadd.f32 %v2055, %v2056
        %v2058 = vrot.slane %v2057, 1
        %v2059 = vadd.f32 %v2057, %v2058
        %v2060 = vsel %vm1270, %v1508, 0.0
        %v2061 = vrot.slane %v2060, 4
        %v2062 = vadd.f32 %v2060, %v2061
        %v2063 = vrot.slane %v2062, 2
        %v2064 = vadd.f32 %v2062, %v2063
        %v2065 = vrot.slane %v2064, 1
        %v2066 = vadd.f32 %v2064, %v2065
        %v2067 = vsel %vm1270, %v1509, 0.0
        %v2068 = vrot.slane %v2067, 4
        %v2069 = vadd.f32 %v2067, %v2068
        %v2070 = vrot.slane %v2069, 2
        %v2071 = vadd.f32 %v2069, %v2070
        %v2072 = vrot.slane %v2071, 1
        %v2073 = vadd.f32 %v2071, %v2072
        %v2074 = vsel %vm1270, %v1510, 0.0
        %v2075 = vrot.slane %v2074, 4
        %v2076 = vadd.f32 %v2074, %v2075
        %v2077 = vrot.slane %v2076, 2
        %v2078 = vadd.f32 %v2076, %v2077
        %v2079 = vrot.slane %v2078, 1
        %v2080 = vadd.f32 %v2078, %v2079
        %v2081 = vrcp.pop %v1975
        %v2082 = vrcp.pop %v1982
        %v2083 = vrcp.pop %v1989
        %v2084 = vrcp.pop %v1996
        %v2085 = vrcp.pop %v2003
        %v2086 = vrcp.pop %v2010
        %v2087 = vrcp.pop %v2017
        %v2088 = vrcp.pop %v2024
        %v2089 = vrcp.pop %v2031
        %v2090 = vrcp.pop %v2038
        %v2091 = vrcp.pop %v2045
        %v2092 = vrcp.pop %v2052
        %v2093 = vrcp.pop %v2059
        %v2094 = vrcp.pop %v2066
        %v2095 = vrcp.pop %v2073
        %v2096 = vrcp.pop %v2080
        %2098 = vset.pattern.permute.xlu0 0
        %2099 = vperm.xlu0 %2098, %v2081
        %v2100 = vpop.permute.xlu0 %2099
        %2103 = vset.pattern.permute.xlu0 0
        %2104 = vperm.xlu0 %2103, %v2082
        %v2105 = vpop.permute.xlu0 %2104
        %2108 = vset.pattern.permute.xlu0 0
        %2109 = vperm.xlu0 %2108, %v2083
        %v2110 = vpop.permute.xlu0 %2109
        %2113 = vset.pattern.permute.xlu0 0
        %2114 = vperm.xlu0 %2113, %v2084
        %v2115 = vpop.permute.xlu0 %2114
        %2118 = vset.pattern.permute.xlu0 0
        %2119 = vperm.xlu0 %2118, %v2085
        %v2120 = vpop.permute.xlu0 %2119
        %2123 = vset.pattern.permute.xlu0 0
        %2124 = vperm.xlu0 %2123, %v2086
        %v2125 = vpop.permute.xlu0 %2124
        %2128 = vset.pattern.permute.xlu0 0
        %2129 = vperm.xlu0 %2128, %v2087
        %v2130 = vpop.permute.xlu0 %2129
        %2133 = vset.pattern.permute.xlu0 0
        %2134 = vperm.xlu0 %2133, %v2088
        %v2135 = vpop.permute.xlu0 %2134
        %2138 = vset.pattern.permute.xlu0 0
        %2139 = vperm.xlu0 %2138, %v2089
        %v2140 = vpop.permute.xlu0 %2139
        %2143 = vset.pattern.permute.xlu0 0
        %2144 = vperm.xlu0 %2143, %v2090
        %v2145 = vpop.permute.xlu0 %2144
        %2148 = vset.pattern.permute.xlu0 0
        %2149 = vperm.xlu0 %2148, %v2091
        %v2150 = vpop.permute.xlu0 %2149
        %2153 = vset.pattern.permute.xlu0 0
        %2154 = vperm.xlu0 %2153, %v2092
        %v2155 = vpop.permute.xlu0 %2154
        %2158 = vset.pattern.permute.xlu0 0
        %2159 = vperm.xlu0 %2158, %v2093
        %v2160 = vpop.permute.xlu0 %2159
        %2163 = vset.pattern.permute.xlu0 0
        %2164 = vperm.xlu0 %2163, %v2094
        %v2165 = vpop.permute.xlu0 %2164
        %2168 = vset.pattern.permute.xlu0 0
        %2169 = vperm.xlu0 %2168, %v2095
        %v2170 = vpop.permute.xlu0 %2169
        %2173 = vset.pattern.permute.xlu0 0
        %2174 = vperm.xlu0 %2173, %v2096
        %v2175 = vpop.permute.xlu0 %2174
        %v2177 = vmul.f32 %v1878, %v2100
        %v2178 = vmul.f32 %v1884, %v2105
        %v2179 = vmul.f32 %v1890, %v2110
        %v2180 = vmul.f32 %v1896, %v2115
        %v2181 = vmul.f32 %v1902, %v2120
        %v2182 = vmul.f32 %v1908, %v2125
        %v2183 = vmul.f32 %v1914, %v2130
        %v2184 = vmul.f32 %v1920, %v2135
        %v2185 = vmul.f32 %v1926, %v2140
        %v2186 = vmul.f32 %v1932, %v2145
        %v2187 = vmul.f32 %v1938, %v2150
        %v2188 = vmul.f32 %v1944, %v2155
        %v2189 = vmul.f32 %v1950, %v2160
        %v2190 = vmul.f32 %v1956, %v2165
        %v2191 = vmul.f32 %v1962, %v2170
        %v2192 = vmul.f32 %v1968, %v2175
        %v2193 = vld [vmem:[%s793] sm:$0xff]
        %v2194 = vld [vmem:[%s793 + $0x8] sm:$0xff]
        %v2195 = vld [vmem:[%s793 + $0x10] sm:$0xff]
        %v2196 = vld [vmem:[%s793 + $0x18] sm:$0xff]
        %v2197 = vld [vmem:[%s793 + $0x20] sm:$0xff]
        %v2198 = vld [vmem:[%s793 + $0x28] sm:$0xff]
        %v2199 = vld [vmem:[%s793 + $0x30] sm:$0xff]
        %v2200 = vld [vmem:[%s793 + $0x38] sm:$0xff]
        %v2201 = vld [vmem:[%s793 + $0x40] sm:$0xff]
        %v2202 = vld [vmem:[%s793 + $0x48] sm:$0xff]
        %v2203 = vld [vmem:[%s793 + $0x50] sm:$0xff]
        %v2204 = vld [vmem:[%s793 + $0x58] sm:$0xff]
        %v2205 = vld [vmem:[%s793 + $0x60] sm:$0xff]
        %v2206 = vld [vmem:[%s793 + $0x68] sm:$0xff]
        %v2207 = vld [vmem:[%s793 + $0x70] sm:$0xff]
        %v2208 = vld [vmem:[%s793 + $0x78] sm:$0xff]
        %v2209 = vld [vmem:[%s11] sm:$0xff]
        %v2210 = vld [vmem:[%s11 + $0x8] sm:$0x7]
        %v2211 = vld [vmem:[%s12] sm:$0x1]
        %v2212 = vld [vmem:[%s13] sm:$0xf]
        %v2213 = vld [vmem:[%s13 + $0x4] sm:$0xf]
        %v2214 = vld [vmem:[%s13 + $0x8] sm:$0xf]
        %v2215 = vld [vmem:[%s13 + $0xc] sm:$0xf]
        %v2216 = vld [vmem:[%s13 + $0x10] sm:$0xf]
        %v2217 = vld [vmem:[%s13 + $0x14] sm:$0xf]
        %v2218 = vld [vmem:[%s13 + $0x18] sm:$0xf]
        %v2219 = vld [vmem:[%s13 + $0x1c] sm:$0xf]
        %v2220 = vld [vmem:[%s13 + $0x20] sm:$0xf]
        %v2221 = vld [vmem:[%s13 + $0x24] sm:$0xf]
        %v2222 = vld [vmem:[%s13 + $0x28] sm:$0xf]
        %v2223 = vld [vmem:[%s13 + $0x2c] sm:$0xf]
        %v2224 = vld [vmem:[%s13 + $0x30] sm:$0xf]
        %v2225 = vld [vmem:[%s13 + $0x34] sm:$0xf]
        %v2226 = vld [vmem:[%s13 + $0x38] sm:$0xf]
        %v2227 = vld [vmem:[%s13 + $0x3c] sm:$0xf]
        %v2228 = vld [vmem:[%s14] sm:$0x1]
        %v2230 = vperm.slane %v2211, 0
        %v2233 = vsel %vm836, %v2193, 0
        %v2236 = vsel %vm836, %v2194, 0
        %v2239 = vsel %vm836, %v2195, 0
        %v2242 = vsel %vm836, %v2196, 0
        %v2245 = vsel %vm836, %v2197, 0
        %v2248 = vsel %vm836, %v2198, 0
        %v2251 = vsel %vm836, %v2199, 0
        %v2254 = vsel %vm836, %v2200, 0
        %v2257 = vsel %vm836, %v2201, 0
        %v2260 = vsel %vm836, %v2202, 0
        %v2263 = vsel %vm836, %v2203, 0
        %v2266 = vsel %vm836, %v2204, 0
        %v2269 = vsel %vm836, %v2205, 0
        %v2272 = vsel %vm836, %v2206, 0
        %v2275 = vsel %vm836, %v2207, 0
        %v2278 = vsel %vm836, %v2208, 0
        %v2281 = vsel %vm885, %v2210, 0
        %2283 = vmatpush.msra.mxu0 0.0
        %2284 = vmatpush.msra.mxu0 0.0
        %2285 = vmatpush.msra.mxu0 0.0
        %2286 = vmatpush.msra.mxu0 0.0
        %2287 = vmatpush.msra.mxu0 0.0
        %2288 = vmatpush.msra.mxu0 0.0
        %2289 = vmatpush.msra.mxu0 0.0
        %2290 = vmatpush.msra.mxu0 0.0
        %2291 = vmatpush.msra.mxu0 0.0
        %2292 = vmatpush.msra.mxu0 0.0
        %2293 = vmatpush.msra.mxu0 0.0
        %2294 = vmatpush.msra.mxu0 0.0
        %2295 = vmatpush.msra.mxu0 0.0
        %2296 = vmatpush.msra.mxu0 0.0
        %2297 = vmatpush.msra.mxu0 %v2281
        %2298 = vmatpush.msra.mxu0 %v2209
        %2299 = vmatmul.f32.gmra.mxu0 %v2233
        %v2300 = vpop.f32.mrf.mxu0
        %v2301 = vadd.f32 %v2230, %v2300
        %2302 = vmatmul.f32.gmra.mxu0 %v2236
        %v2303 = vpop.f32.mrf.mxu0
        %v2304 = vadd.f32 %v2230, %v2303
        %2305 = vmatmul.f32.gmra.mxu0 %v2239
        %v2306 = vpop.f32.mrf.mxu0
        %v2307 = vadd.f32 %v2230, %v2306
        %2308 = vmatmul.f32.gmra.mxu0 %v2242
        %v2309 = vpop.f32.mrf.mxu0
        %v2310 = vadd.f32 %v2230, %v2309
        %2311 = vmatmul.f32.gmra.mxu0 %v2245
        %v2312 = vpop.f32.mrf.mxu0
        %v2313 = vadd.f32 %v2230, %v2312
        %2314 = vmatmul.f32.gmra.mxu0 %v2248
        %v2315 = vpop.f32.mrf.mxu0
        %v2316 = vadd.f32 %v2230, %v2315
        %2317 = vmatmul.f32.gmra.mxu0 %v2251
        %v2318 = vpop.f32.mrf.mxu0
        %v2319 = vadd.f32 %v2230, %v2318
        %2320 = vmatmul.f32.gmra.mxu0 %v2254
        %v2321 = vpop.f32.mrf.mxu0
        %v2322 = vadd.f32 %v2230, %v2321
        %2323 = vmatmul.f32.gmra.mxu0 %v2257
        %v2324 = vpop.f32.mrf.mxu0
        %v2325 = vadd.f32 %v2230, %v2324
        %2326 = vmatmul.f32.gmra.mxu0 %v2260
        %v2327 = vpop.f32.mrf.mxu0
        %v2328 = vadd.f32 %v2230, %v2327
        %2329 = vmatmul.f32.gmra.mxu0 %v2263
        %v2330 = vpop.f32.mrf.mxu0
        %v2331 = vadd.f32 %v2230, %v2330
        %2332 = vmatmul.f32.gmra.mxu0 %v2266
        %v2333 = vpop.f32.mrf.mxu0
        %v2334 = vadd.f32 %v2230, %v2333
        %2335 = vmatmul.f32.gmra.mxu0 %v2269
        %v2336 = vpop.f32.mrf.mxu0
        %v2337 = vadd.f32 %v2230, %v2336
        %2338 = vmatmul.f32.gmra.mxu0 %v2272
        %v2339 = vpop.f32.mrf.mxu0
        %v2340 = vadd.f32 %v2230, %v2339
        %2341 = vmatmul.f32.gmra.mxu0 %v2275
        %v2342 = vpop.f32.mrf.mxu0
        %v2343 = vadd.f32 %v2230, %v2342
        %2344 = vmatmul.f32.gmra.mxu0 %v2278
        %v2345 = vpop.f32.mrf.mxu0
        %v2346 = vadd.f32 %v2230, %v2345
        %2347 = vdwg.mxu0
        %v2348 = vmax.f32 %v2301, 0.0
        %v2349 = vmax.f32 %v2304, 0.0
        %v2350 = vmax.f32 %v2307, 0.0
        %v2351 = vmax.f32 %v2310, 0.0
        %v2352 = vmax.f32 %v2313, 0.0
        %v2353 = vmax.f32 %v2316, 0.0
        %v2354 = vmax.f32 %v2319, 0.0
        %v2355 = vmax.f32 %v2322, 0.0
        %v2356 = vmax.f32 %v2325, 0.0
        %v2357 = vmax.f32 %v2328, 0.0
        %v2358 = vmax.f32 %v2331, 0.0
        %v2359 = vmax.f32 %v2334, 0.0
        %v2360 = vmax.f32 %v2337, 0.0
        %v2361 = vmax.f32 %v2340, 0.0
        %v2362 = vmax.f32 %v2343, 0.0
        %v2363 = vmax.f32 %v2346, 0.0
        %v2364 = vpack.c.bf16 %v2349, %v2348
        %v2365 = vpack.c.bf16 %v2351, %v2350
        %v2366 = vpack.c.bf16 %v2353, %v2352
        %v2367 = vpack.c.bf16 %v2355, %v2354
        %v2368 = vpack.c.bf16 %v2357, %v2356
        %v2369 = vpack.c.bf16 %v2359, %v2358
        %v2370 = vpack.c.bf16 %v2361, %v2360
        %v2371 = vpack.c.bf16 %v2363, %v2362
        %v2373 = vperm.slane %v2228, 0
        %v2391 = vunpack.c.l.b16 %v2212
        %v2392 = vunpack.c.l.b16 %v2213
        %v2393 = vunpack.c.l.b16 %v2214
        %v2394 = vunpack.c.l.b16 %v2215
        %v2395 = vunpack.c.l.b16 %v2216
        %v2396 = vunpack.c.l.b16 %v2217
        %v2397 = vunpack.c.l.b16 %v2218
        %v2398 = vunpack.c.l.b16 %v2219
        %v2399 = vunpack.c.l.b16 %v2220
        %v2400 = vunpack.c.l.b16 %v2221
        %v2401 = vunpack.c.l.b16 %v2222
        %v2402 = vunpack.c.l.b16 %v2223
        %v2403 = vunpack.c.l.b16 %v2224
        %v2404 = vunpack.c.l.b16 %v2225
        %v2405 = vunpack.c.l.b16 %v2226
        %v2406 = vunpack.c.l.b16 %v2227
        %v2407 = vpack.c.b16 %v2392, %v2391
        %v2408 = vpack.c.b16 %v2394, %v2393
        %v2409 = vpack.c.b16 %v2396, %v2395
        %v2410 = vpack.c.b16 %v2398, %v2397
        %v2411 = vpack.c.b16 %v2400, %v2399
        %v2412 = vpack.c.b16 %v2402, %v2401
        %v2413 = vpack.c.b16 %v2404, %v2403
        %v2414 = vpack.c.b16 %v2406, %v2405
        %2423 = vmatpush.bf16.msra.mxu0 %v2414
        %2424 = vmatpush.bf16.msra.mxu0 %v2413
        %2425 = vmatpush.bf16.msra.mxu0 %v2412
        %2426 = vmatpush.bf16.msra.mxu0 %v2411
        %2427 = vmatpush.bf16.msra.mxu0 %v2410
        %2428 = vmatpush.bf16.msra.mxu0 %v2409
        %2429 = vmatpush.bf16.msra.mxu0 %v2408
        %2430 = vmatpush.bf16.msra.mxu0 %v2407
        %2431 = vmatmul.bf16.gmra.mxu0 %v2364
        %v2432 = vpop.f32.mrf.mxu0
        %v2433 = vadd.f32 %v2373, %v2432
        %v2434 = vpop.f32.mrf.mxu0
        %v2435 = vadd.f32 %v2373, %v2434
        %2436 = vmatmul.bf16.gmra.mxu0 %v2365
        %v2437 = vpop.f32.mrf.mxu0
        %v2438 = vadd.f32 %v2373, %v2437
        %v2439 = vpop.f32.mrf.mxu0
        %v2440 = vadd.f32 %v2373, %v2439
        %2441 = vmatmul.bf16.gmra.mxu0 %v2366
        %v2442 = vpop.f32.mrf.mxu0
        %v2443 = vadd.f32 %v2373, %v2442
        %v2444 = vpop.f32.mrf.mxu0
        %v2445 = vadd.f32 %v2373, %v2444
        %2446 = vmatmul.bf16.gmra.mxu0 %v2367
        %v2447 = vpop.f32.mrf.mxu0
        %v2448 = vadd.f32 %v2373, %v2447
        %v2449 = vpop.f32.mrf.mxu0
        %v2450 = vadd.f32 %v2373, %v2449
        %2451 = vmatmul.bf16.gmra.mxu0 %v2368
        %v2452 = vpop.f32.mrf.mxu0
        %v2453 = vadd.f32 %v2373, %v2452
        %v2454 = vpop.f32.mrf.mxu0
        %v2455 = vadd.f32 %v2373, %v2454
        %2456 = vmatmul.bf16.gmra.mxu0 %v2369
        %v2457 = vpop.f32.mrf.mxu0
        %v2458 = vadd.f32 %v2373, %v2457
        %v2459 = vpop.f32.mrf.mxu0
        %v2460 = vadd.f32 %v2373, %v2459
        %2461 = vmatmul.bf16.gmra.mxu0 %v2370
        %v2462 = vpop.f32.mrf.mxu0
        %v2463 = vadd.f32 %v2373, %v2462
        %v2464 = vpop.f32.mrf.mxu0
        %v2465 = vadd.f32 %v2373, %v2464
        %2466 = vmatmul.bf16.gmra.mxu0 %v2371
        %v2467 = vpop.f32.mrf.mxu0
        %v2468 = vadd.f32 %v2373, %v2467
        %v2469 = vpop.f32.mrf.mxu0
        %v2470 = vadd.f32 %v2373, %v2469
        %2471 = vdwg.mxu0
        %v2472 = vmax.f32 %v2433, 0.0
        %v2473 = vmax.f32 %v2435, 0.0
        %v2474 = vmax.f32 %v2438, 0.0
        %v2475 = vmax.f32 %v2440, 0.0
        %v2476 = vmax.f32 %v2443, 0.0
        %v2477 = vmax.f32 %v2445, 0.0
        %v2478 = vmax.f32 %v2448, 0.0
        %v2479 = vmax.f32 %v2450, 0.0
        %v2480 = vmax.f32 %v2453, 0.0
        %v2481 = vmax.f32 %v2455, 0.0
        %v2482 = vmax.f32 %v2458, 0.0
        %v2483 = vmax.f32 %v2460, 0.0
        %v2484 = vmax.f32 %v2463, 0.0
        %v2485 = vmax.f32 %v2465, 0.0
        %v2486 = vmax.f32 %v2468, 0.0
        %v2487 = vmax.f32 %v2470, 0.0
        %2488 = vset.pattern.permute.xlu0 0
        %2489 = vperm.xlu0 %2488, %v2193
        %v2490 = vpop.permute.xlu0 %2489
        %2492 = vset.pattern.permute.xlu0 0
        %2493 = vperm.xlu0 %2492, %v2194
        %v2494 = vpop.permute.xlu0 %2493
        %2496 = vset.pattern.permute.xlu0 0
        %2497 = vperm.xlu0 %2496, %v2195
        %v2498 = vpop.permute.xlu0 %2497
        %2500 = vset.pattern.permute.xlu0 0
        %2501 = vperm.xlu0 %2500, %v2196
        %v2502 = vpop.permute.xlu0 %2501
        %2504 = vset.pattern.permute.xlu0 0
        %2505 = vperm.xlu0 %2504, %v2197
        %v2506 = vpop.permute.xlu0 %2505
        %2508 = vset.pattern.permute.xlu0 0
        %2509 = vperm.xlu0 %2508, %v2198
        %v2510 = vpop.permute.xlu0 %2509
        %2512 = vset.pattern.permute.xlu0 0
        %2513 = vperm.xlu0 %2512, %v2199
        %v2514 = vpop.permute.xlu0 %2513
        %2516 = vset.pattern.permute.xlu0 0
        %2517 = vperm.xlu0 %2516, %v2200
        %v2518 = vpop.permute.xlu0 %2517
        %2520 = vset.pattern.permute.xlu0 0
        %2521 = vperm.xlu0 %2520, %v2201
        %v2522 = vpop.permute.xlu0 %2521
        %2524 = vset.pattern.permute.xlu0 0
        %2525 = vperm.xlu0 %2524, %v2202
        %v2526 = vpop.permute.xlu0 %2525
        %2528 = vset.pattern.permute.xlu0 0
        %2529 = vperm.xlu0 %2528, %v2203
        %v2530 = vpop.permute.xlu0 %2529
        %2532 = vset.pattern.permute.xlu0 0
        %2533 = vperm.xlu0 %2532, %v2204
        %v2534 = vpop.permute.xlu0 %2533
        %2536 = vset.pattern.permute.xlu0 0
        %2537 = vperm.xlu0 %2536, %v2205
        %v2538 = vpop.permute.xlu0 %2537
        %2540 = vset.pattern.permute.xlu0 0
        %2541 = vperm.xlu0 %2540, %v2206
        %v2542 = vpop.permute.xlu0 %2541
        %2544 = vset.pattern.permute.xlu0 0
        %2545 = vperm.xlu0 %2544, %v2207
        %v2546 = vpop.permute.xlu0 %2545
        %2548 = vset.pattern.permute.xlu0 0
        %2549 = vperm.xlu0 %2548, %v2208
        %v2550 = vpop.permute.xlu0 %2549
        %v2552 = vmul.f32 %v2472, %v2490
        %v2553 = vmul.f32 %v2473, %v2494
        %v2554 = vmul.f32 %v2474, %v2498
        %v2555 = vmul.f32 %v2475, %v2502
        %v2556 = vmul.f32 %v2476, %v2506
        %v2557 = vmul.f32 %v2477, %v2510
        %v2558 = vmul.f32 %v2478, %v2514
        %v2559 = vmul.f32 %v2479, %v2518
        %v2560 = vmul.f32 %v2480, %v2522
        %v2561 = vmul.f32 %v2481, %v2526
        %v2562 = vmul.f32 %v2482, %v2530
        %v2563 = vmul.f32 %v2483, %v2534
        %v2564 = vmul.f32 %v2484, %v2538
        %v2565 = vmul.f32 %v2485, %v2542
        %v2566 = vmul.f32 %v2486, %v2546
        %v2567 = vmul.f32 %v2487, %v2550
        %v2568 = vrot.slane %v2552, 4
        %v2569 = vadd.f32 %v2552, %v2568
        %v2570 = vrot.slane %v2569, 2
        %v2571 = vadd.f32 %v2569, %v2570
        %v2572 = vrot.slane %v2571, 1
        %v2573 = vadd.f32 %v2571, %v2572
        %v2574 = vrot.slane %v2553, 4
        %v2575 = vadd.f32 %v2553, %v2574
        %v2576 = vrot.slane %v2575, 2
        %v2577 = vadd.f32 %v2575, %v2576
        %v2578 = vrot.slane %v2577, 1
        %v2579 = vadd.f32 %v2577, %v2578
        %v2580 = vrot.slane %v2554, 4
        %v2581 = vadd.f32 %v2554, %v2580
        %v2582 = vrot.slane %v2581, 2
        %v2583 = vadd.f32 %v2581, %v2582
        %v2584 = vrot.slane %v2583, 1
        %v2585 = vadd.f32 %v2583, %v2584
        %v2586 = vrot.slane %v2555, 4
        %v2587 = vadd.f32 %v2555, %v2586
        %v2588 = vrot.slane %v2587, 2
        %v2589 = vadd.f32 %v2587, %v2588
        %v2590 = vrot.slane %v2589, 1
        %v2591 = vadd.f32 %v2589, %v2590
        %v2592 = vrot.slane %v2556, 4
        %v2593 = vadd.f32 %v2556, %v2592
        %v2594 = vrot.slane %v2593, 2
        %v2595 = vadd.f32 %v2593, %v2594
        %v2596 = vrot.slane %v2595, 1
        %v2597 = vadd.f32 %v2595, %v2596
        %v2598 = vrot.slane %v2557, 4
        %v2599 = vadd.f32 %v2557, %v2598
        %v2600 = vrot.slane %v2599, 2
        %v2601 = vadd.f32 %v2599, %v2600
        %v2602 = vrot.slane %v2601, 1
        %v2603 = vadd.f32 %v2601, %v2602
        %v2604 = vrot.slane %v2558, 4
        %v2605 = vadd.f32 %v2558, %v2604
        %v2606 = vrot.slane %v2605, 2
        %v2607 = vadd.f32 %v2605, %v2606
        %v2608 = vrot.slane %v2607, 1
        %v2609 = vadd.f32 %v2607, %v2608
        %v2610 = vrot.slane %v2559, 4
        %v2611 = vadd.f32 %v2559, %v2610
        %v2612 = vrot.slane %v2611, 2
        %v2613 = vadd.f32 %v2611, %v2612
        %v2614 = vrot.slane %v2613, 1
        %v2615 = vadd.f32 %v2613, %v2614
        %v2616 = vrot.slane %v2560, 4
        %v2617 = vadd.f32 %v2560, %v2616
        %v2618 = vrot.slane %v2617, 2
        %v2619 = vadd.f32 %v2617, %v2618
        %v2620 = vrot.slane %v2619, 1
        %v2621 = vadd.f32 %v2619, %v2620
        %v2622 = vrot.slane %v2561, 4
        %v2623 = vadd.f32 %v2561, %v2622
        %v2624 = vrot.slane %v2623, 2
        %v2625 = vadd.f32 %v2623, %v2624
        %v2626 = vrot.slane %v2625, 1
        %v2627 = vadd.f32 %v2625, %v2626
        %v2628 = vrot.slane %v2562, 4
        %v2629 = vadd.f32 %v2562, %v2628
        %v2630 = vrot.slane %v2629, 2
        %v2631 = vadd.f32 %v2629, %v2630
        %v2632 = vrot.slane %v2631, 1
        %v2633 = vadd.f32 %v2631, %v2632
        %v2634 = vrot.slane %v2563, 4
        %v2635 = vadd.f32 %v2563, %v2634
        %v2636 = vrot.slane %v2635, 2
        %v2637 = vadd.f32 %v2635, %v2636
        %v2638 = vrot.slane %v2637, 1
        %v2639 = vadd.f32 %v2637, %v2638
        %v2640 = vrot.slane %v2564, 4
        %v2641 = vadd.f32 %v2564, %v2640
        %v2642 = vrot.slane %v2641, 2
        %v2643 = vadd.f32 %v2641, %v2642
        %v2644 = vrot.slane %v2643, 1
        %v2645 = vadd.f32 %v2643, %v2644
        %v2646 = vrot.slane %v2565, 4
        %v2647 = vadd.f32 %v2565, %v2646
        %v2648 = vrot.slane %v2647, 2
        %v2649 = vadd.f32 %v2647, %v2648
        %v2650 = vrot.slane %v2649, 1
        %v2651 = vadd.f32 %v2649, %v2650
        %v2652 = vrot.slane %v2566, 4
        %v2653 = vadd.f32 %v2566, %v2652
        %v2654 = vrot.slane %v2653, 2
        %v2655 = vadd.f32 %v2653, %v2654
        %v2656 = vrot.slane %v2655, 1
        %v2657 = vadd.f32 %v2655, %v2656
        %v2658 = vrot.slane %v2567, 4
        %v2659 = vadd.f32 %v2567, %v2658
        %v2660 = vrot.slane %v2659, 2
        %v2661 = vadd.f32 %v2659, %v2660
        %v2662 = vrot.slane %v2661, 1
        %v2663 = vadd.f32 %v2661, %v2662
        %v2664 = vsel %vm1270, %v2193, 0.0
        %v2665 = vrot.slane %v2664, 4
        %v2666 = vadd.f32 %v2664, %v2665
        %v2667 = vrot.slane %v2666, 2
        %v2668 = vadd.f32 %v2666, %v2667
        %v2669 = vrot.slane %v2668, 1
        %v2670 = vadd.f32 %v2668, %v2669
        %v2671 = vsel %vm1270, %v2194, 0.0
        %v2672 = vrot.slane %v2671, 4
        %v2673 = vadd.f32 %v2671, %v2672
        %v2674 = vrot.slane %v2673, 2
        %v2675 = vadd.f32 %v2673, %v2674
        %v2676 = vrot.slane %v2675, 1
        %v2677 = vadd.f32 %v2675, %v2676
        %v2678 = vsel %vm1270, %v2195, 0.0
        %v2679 = vrot.slane %v2678, 4
        %v2680 = vadd.f32 %v2678, %v2679
        %v2681 = vrot.slane %v2680, 2
        %v2682 = vadd.f32 %v2680, %v2681
        %v2683 = vrot.slane %v2682, 1
        %v2684 = vadd.f32 %v2682, %v2683
        %v2685 = vsel %vm1270, %v2196, 0.0
        %v2686 = vrot.slane %v2685, 4
        %v2687 = vadd.f32 %v2685, %v2686
        %v2688 = vrot.slane %v2687, 2
        %v2689 = vadd.f32 %v2687, %v2688
        %v2690 = vrot.slane %v2689, 1
        %v2691 = vadd.f32 %v2689, %v2690
        %v2692 = vsel %vm1270, %v2197, 0.0
        %v2693 = vrot.slane %v2692, 4
        %v2694 = vadd.f32 %v2692, %v2693
        %v2695 = vrot.slane %v2694, 2
        %v2696 = vadd.f32 %v2694, %v2695
        %v2697 = vrot.slane %v2696, 1
        %v2698 = vadd.f32 %v2696, %v2697
        %v2699 = vsel %vm1270, %v2198, 0.0
        %v2700 = vrot.slane %v2699, 4
        %v2701 = vadd.f32 %v2699, %v2700
        %v2702 = vrot.slane %v2701, 2
        %v2703 = vadd.f32 %v2701, %v2702
        %v2704 = vrot.slane %v2703, 1
        %v2705 = vadd.f32 %v2703, %v2704
        %v2706 = vsel %vm1270, %v2199, 0.0
        %v2707 = vrot.slane %v2706, 4
        %v2708 = vadd.f32 %v2706, %v2707
        %v2709 = vrot.slane %v2708, 2
        %v2710 = vadd.f32 %v2708, %v2709
        %v2711 = vrot.slane %v2710, 1
        %v2712 = vadd.f32 %v2710, %v2711
        %v2713 = vsel %vm1270, %v2200, 0.0
        %v2714 = vrot.slane %v2713, 4
        %v2715 = vadd.f32 %v2713, %v2714
        %v2716 = vrot.slane %v2715, 2
        %v2717 = vadd.f32 %v2715, %v2716
        %v2718 = vrot.slane %v2717, 1
        %v2719 = vadd.f32 %v2717, %v2718
        %v2720 = vsel %vm1270, %v2201, 0.0
        %v2721 = vrot.slane %v2720, 4
        %v2722 = vadd.f32 %v2720, %v2721
        %v2723 = vrot.slane %v2722, 2
        %v2724 = vadd.f32 %v2722, %v2723
        %v2725 = vrot.slane %v2724, 1
        %v2726 = vadd.f32 %v2724, %v2725
        %v2727 = vsel %vm1270, %v2202, 0.0
        %v2728 = vrot.slane %v2727, 4
        %v2729 = vadd.f32 %v2727, %v2728
        %v2730 = vrot.slane %v2729, 2
        %v2731 = vadd.f32 %v2729, %v2730
        %v2732 = vrot.slane %v2731, 1
        %v2733 = vadd.f32 %v2731, %v2732
        %v2734 = vsel %vm1270, %v2203, 0.0
        %v2735 = vrot.slane %v2734, 4
        %v2736 = vadd.f32 %v2734, %v2735
        %v2737 = vrot.slane %v2736, 2
        %v2738 = vadd.f32 %v2736, %v2737
        %v2739 = vrot.slane %v2738, 1
        %v2740 = vadd.f32 %v2738, %v2739
        %v2741 = vsel %vm1270, %v2204, 0.0
        %v2742 = vrot.slane %v2741, 4
        %v2743 = vadd.f32 %v2741, %v2742
        %v2744 = vrot.slane %v2743, 2
        %v2745 = vadd.f32 %v2743, %v2744
        %v2746 = vrot.slane %v2745, 1
        %v2747 = vadd.f32 %v2745, %v2746
        %v2748 = vsel %vm1270, %v2205, 0.0
        %v2749 = vrot.slane %v2748, 4
        %v2750 = vadd.f32 %v2748, %v2749
        %v2751 = vrot.slane %v2750, 2
        %v2752 = vadd.f32 %v2750, %v2751
        %v2753 = vrot.slane %v2752, 1
        %v2754 = vadd.f32 %v2752, %v2753
        %v2755 = vsel %vm1270, %v2206, 0.0
        %v2756 = vrot.slane %v2755, 4
        %v2757 = vadd.f32 %v2755, %v2756
        %v2758 = vrot.slane %v2757, 2
        %v2759 = vadd.f32 %v2757, %v2758
        %v2760 = vrot.slane %v2759, 1
        %v2761 = vadd.f32 %v2759, %v2760
        %v2762 = vsel %vm1270, %v2207, 0.0
        %v2763 = vrot.slane %v2762, 4
        %v2764 = vadd.f32 %v2762, %v2763
        %v2765 = vrot.slane %v2764, 2
        %v2766 = vadd.f32 %v2764, %v2765
        %v2767 = vrot.slane %v2766, 1
        %v2768 = vadd.f32 %v2766, %v2767
        %v2769 = vsel %vm1270, %v2208, 0.0
        %v2770 = vrot.slane %v2769, 4
        %v2771 = vadd.f32 %v2769, %v2770
        %v2772 = vrot.slane %v2771, 2
        %v2773 = vadd.f32 %v2771, %v2772
        %v2774 = vrot.slane %v2773, 1
        %v2775 = vadd.f32 %v2773, %v2774
        %v2776 = vrcp.pop %v2670
        %v2777 = vrcp.pop %v2677
        %v2778 = vrcp.pop %v2684
        %v2779 = vrcp.pop %v2691
        %v2780 = vrcp.pop %v2698
        %v2781 = vrcp.pop %v2705
        %v2782 = vrcp.pop %v2712
        %v2783 = vrcp.pop %v2719
        %v2784 = vrcp.pop %v2726
        %v2785 = vrcp.pop %v2733
        %v2786 = vrcp.pop %v2740
        %v2787 = vrcp.pop %v2747
        %v2788 = vrcp.pop %v2754
        %v2789 = vrcp.pop %v2761
        %v2790 = vrcp.pop %v2768
        %v2791 = vrcp.pop %v2775
        %2793 = vset.pattern.permute.xlu0 0
        %2794 = vperm.xlu0 %2793, %v2776
        %v2795 = vpop.permute.xlu0 %2794
        %2798 = vset.pattern.permute.xlu0 0
        %2799 = vperm.xlu0 %2798, %v2777
        %v2800 = vpop.permute.xlu0 %2799
        %2803 = vset.pattern.permute.xlu0 0
        %2804 = vperm.xlu0 %2803, %v2778
        %v2805 = vpop.permute.xlu0 %2804
        %2808 = vset.pattern.permute.xlu0 0
        %2809 = vperm.xlu0 %2808, %v2779
        %v2810 = vpop.permute.xlu0 %2809
        %2813 = vset.pattern.permute.xlu0 0
        %2814 = vperm.xlu0 %2813, %v2780
        %v2815 = vpop.permute.xlu0 %2814
        %2818 = vset.pattern.permute.xlu0 0
        %2819 = vperm.xlu0 %2818, %v2781
        %v2820 = vpop.permute.xlu0 %2819
        %2823 = vset.pattern.permute.xlu0 0
        %2824 = vperm.xlu0 %2823, %v2782
        %v2825 = vpop.permute.xlu0 %2824
        %2828 = vset.pattern.permute.xlu0 0
        %2829 = vperm.xlu0 %2828, %v2783
        %v2830 = vpop.permute.xlu0 %2829
        %2833 = vset.pattern.permute.xlu0 0
        %2834 = vperm.xlu0 %2833, %v2784
        %v2835 = vpop.permute.xlu0 %2834
        %2838 = vset.pattern.permute.xlu0 0
        %2839 = vperm.xlu0 %2838, %v2785
        %v2840 = vpop.permute.xlu0 %2839
        %2843 = vset.pattern.permute.xlu0 0
        %2844 = vperm.xlu0 %2843, %v2786
        %v2845 = vpop.permute.xlu0 %2844
        %2848 = vset.pattern.permute.xlu0 0
        %2849 = vperm.xlu0 %2848, %v2787
        %v2850 = vpop.permute.xlu0 %2849
        %2853 = vset.pattern.permute.xlu0 0
        %2854 = vperm.xlu0 %2853, %v2788
        %v2855 = vpop.permute.xlu0 %2854
        %2858 = vset.pattern.permute.xlu0 0
        %2859 = vperm.xlu0 %2858, %v2789
        %v2860 = vpop.permute.xlu0 %2859
        %2863 = vset.pattern.permute.xlu0 0
        %2864 = vperm.xlu0 %2863, %v2790
        %v2865 = vpop.permute.xlu0 %2864
        %2868 = vset.pattern.permute.xlu0 0
        %2869 = vperm.xlu0 %2868, %v2791
        %v2870 = vpop.permute.xlu0 %2869
        %v2872 = vmul.f32 %v2573, %v2795
        %v2873 = vmul.f32 %v2579, %v2800
        %v2874 = vmul.f32 %v2585, %v2805
        %v2875 = vmul.f32 %v2591, %v2810
        %v2876 = vmul.f32 %v2597, %v2815
        %v2877 = vmul.f32 %v2603, %v2820
        %v2878 = vmul.f32 %v2609, %v2825
        %v2879 = vmul.f32 %v2615, %v2830
        %v2880 = vmul.f32 %v2621, %v2835
        %v2881 = vmul.f32 %v2627, %v2840
        %v2882 = vmul.f32 %v2633, %v2845
        %v2883 = vmul.f32 %v2639, %v2850
        %v2884 = vmul.f32 %v2645, %v2855
        %v2885 = vmul.f32 %v2651, %v2860
        %v2886 = vmul.f32 %v2657, %v2865
        %v2887 = vmul.f32 %v2663, %v2870
        %v2888 = vpack.c.bf16 %v1479, %v1479
        %v2889 = vpack.c.bf16 %v1480, %v1480
        %v2890 = vpack.c.bf16 %v1481, %v1481
        %v2891 = vpack.c.bf16 %v1482, %v1482
        %v2892 = vpack.c.bf16 %v1483, %v1483
        %v2893 = vpack.c.bf16 %v1484, %v1484
        %v2894 = vpack.c.bf16 %v1485, %v1485
        %v2895 = vpack.c.bf16 %v1486, %v1486
        %v2896 = vpack.c.bf16 %v1487, %v1487
        %v2897 = vpack.c.bf16 %v1488, %v1488
        %v2898 = vpack.c.bf16 %v1489, %v1489
        %v2899 = vpack.c.bf16 %v1490, %v1490
        %v2900 = vpack.c.bf16 %v1491, %v1491
        %v2901 = vpack.c.bf16 %v1492, %v1492
        %v2902 = vpack.c.bf16 %v1493, %v1493
        %v2903 = vpack.c.bf16 %v1494, %v1494
        %v2904 = vld [vmem:[%s15] sm:$0xf]
        %v2905 = vld [vmem:[%s15 + $0x4] sm:$0xf]
        %v2906 = vld [vmem:[%s15 + $0x8] sm:$0xf]
        %v2907 = vld [vmem:[%s15 + $0xc] sm:$0xf]
        %v2908 = vld [vmem:[%s15 + $0x10] sm:$0xf]
        %v2909 = vld [vmem:[%s15 + $0x14] sm:$0xf]
        %v2910 = vld [vmem:[%s15 + $0x18] sm:$0xf]
        %v2911 = vld [vmem:[%s15 + $0x1c] sm:$0xf]
        %v2912 = vld [vmem:[%s15 + $0x20] sm:$0xf]
        %v2913 = vld [vmem:[%s15 + $0x24] sm:$0xf]
        %v2914 = vld [vmem:[%s15 + $0x28] sm:$0xf]
        %v2915 = vld [vmem:[%s15 + $0x2c] sm:$0xf]
        %v2916 = vld [vmem:[%s15 + $0x30] sm:$0xf]
        %v2917 = vld [vmem:[%s15 + $0x34] sm:$0xf]
        %v2918 = vld [vmem:[%s15 + $0x38] sm:$0xf]
        %v2919 = vld [vmem:[%s15 + $0x3c] sm:$0xf]
        %v2920 = vpack.c.bf16 %v2177, %v2177
        %v2921 = vpack.c.bf16 %v2178, %v2178
        %v2922 = vpack.c.bf16 %v2179, %v2179
        %v2923 = vpack.c.bf16 %v2180, %v2180
        %v2924 = vpack.c.bf16 %v2181, %v2181
        %v2925 = vpack.c.bf16 %v2182, %v2182
        %v2926 = vpack.c.bf16 %v2183, %v2183
        %v2927 = vpack.c.bf16 %v2184, %v2184
        %v2928 = vpack.c.bf16 %v2185, %v2185
        %v2929 = vpack.c.bf16 %v2186, %v2186
        %v2930 = vpack.c.bf16 %v2187, %v2187
        %v2931 = vpack.c.bf16 %v2188, %v2188
        %v2932 = vpack.c.bf16 %v2189, %v2189
        %v2933 = vpack.c.bf16 %v2190, %v2190
        %v2934 = vpack.c.bf16 %v2191, %v2191
        %v2935 = vpack.c.bf16 %v2192, %v2192
        %v2936 = vld [vmem:[%s16] sm:$0xf]
        %v2937 = vld [vmem:[%s16 + $0x4] sm:$0xf]
        %v2938 = vld [vmem:[%s16 + $0x8] sm:$0xf]
        %v2939 = vld [vmem:[%s16 + $0xc] sm:$0xf]
        %v2940 = vld [vmem:[%s16 + $0x10] sm:$0xf]
        %v2941 = vld [vmem:[%s16 + $0x14] sm:$0xf]
        %v2942 = vld [vmem:[%s16 + $0x18] sm:$0xf]
        %v2943 = vld [vmem:[%s16 + $0x1c] sm:$0xf]
        %v2944 = vld [vmem:[%s16 + $0x20] sm:$0xf]
        %v2945 = vld [vmem:[%s16 + $0x24] sm:$0xf]
        %v2946 = vld [vmem:[%s16 + $0x28] sm:$0xf]
        %v2947 = vld [vmem:[%s16 + $0x2c] sm:$0xf]
        %v2948 = vld [vmem:[%s16 + $0x30] sm:$0xf]
        %v2949 = vld [vmem:[%s16 + $0x34] sm:$0xf]
        %v2950 = vld [vmem:[%s16 + $0x38] sm:$0xf]
        %v2951 = vld [vmem:[%s16 + $0x3c] sm:$0xf]
        %v2968 = vunpack.c.l.b16 %v2920
        %v2969 = vunpack.c.l.b16 %v2921
        %v2970 = vunpack.c.l.b16 %v2922
        %v2971 = vunpack.c.l.b16 %v2923
        %v2972 = vunpack.c.l.b16 %v2924
        %v2973 = vunpack.c.l.b16 %v2925
        %v2974 = vunpack.c.l.b16 %v2926
        %v2975 = vunpack.c.l.b16 %v2927
        %v2976 = vunpack.c.l.b16 %v2928
        %v2977 = vunpack.c.l.b16 %v2929
        %v2978 = vunpack.c.l.b16 %v2930
        %v2979 = vunpack.c.l.b16 %v2931
        %v2980 = vunpack.c.l.b16 %v2932
        %v2981 = vunpack.c.l.b16 %v2933
        %v2982 = vunpack.c.l.b16 %v2934
        %v2983 = vunpack.c.l.b16 %v2935
        %vm2984 = vcmask 1041409
        %v2985 = vsel %vm2984, %v2969, %v2968
        %vm2986 = vcmask 1042434
        %v2987 = vsel %vm2986, %v2970, %v2985
        %vm2988 = vcmask 1043459
        %v2989 = vsel %vm2988, %v2971, %v2987
        %vm2990 = vcmask 1044484
        %v2991 = vsel %vm2990, %v2972, %v2989
        %vm2992 = vcmask 1045509
        %v2993 = vsel %vm2992, %v2973, %v2991
        %vm2994 = vcmask 1046534
        %v2995 = vsel %vm2994, %v2974, %v2993
        %vm2996 = vcmask 1047559
        %v2997 = vsel %vm2996, %v2975, %v2995
        %v2998 = vsel %vm2984, %v2977, %v2976
        %v2999 = vsel %vm2986, %v2978, %v2998
        %v3000 = vsel %vm2988, %v2979, %v2999
        %v3001 = vsel %vm2990, %v2980, %v3000
        %v3002 = vsel %vm2992, %v2981, %v3001
        %v3003 = vsel %vm2994, %v2982, %v3002
        %v3004 = vsel %vm2996, %v2983, %v3003
        %v3005 = vpack.c.b16 %v3004, %v2997
        %v3023 = vunpack.c.l.b16 %v2936
        %v3024 = vunpack.c.l.b16 %v2937
        %v3025 = vunpack.c.l.b16 %v2938
        %v3026 = vunpack.c.l.b16 %v2939
        %v3027 = vunpack.c.l.b16 %v2940
        %v3028 = vunpack.c.l.b16 %v2941
        %v3029 = vunpack.c.l.b16 %v2942
        %v3030 = vunpack.c.l.b16 %v2943
        %v3031 = vunpack.c.l.b16 %v2944
        %v3032 = vunpack.c.l.b16 %v2945
        %v3033 = vunpack.c.l.b16 %v2946
        %v3034 = vunpack.c.l.b16 %v2947
        %v3035 = vunpack.c.l.b16 %v2948
        %v3036 = vunpack.c.l.b16 %v2949
        %v3037 = vunpack.c.l.b16 %v2950
        %v3038 = vunpack.c.l.b16 %v2951
        %v3039 = vpack.c.b16 %v3024, %v3023
        %v3040 = vpack.c.b16 %v3026, %v3025
        %v3041 = vpack.c.b16 %v3028, %v3027
        %v3042 = vpack.c.b16 %v3030, %v3029
        %v3043 = vpack.c.b16 %v3032, %v3031
        %v3044 = vpack.c.b16 %v3034, %v3033
        %v3045 = vpack.c.b16 %v3036, %v3035
        %v3046 = vpack.c.b16 %v3038, %v3037
        %3055 = vmatpush.bf16.msra.mxu0 %v3046
        %3056 = vmatpush.bf16.msra.mxu0 %v3045
        %3057 = vmatpush.bf16.msra.mxu0 %v3044
        %3058 = vmatpush.bf16.msra.mxu0 %v3043
        %3059 = vmatpush.bf16.msra.mxu0 %v3042
        %3060 = vmatpush.bf16.msra.mxu0 %v3041
        %3061 = vmatpush.bf16.msra.mxu0 %v3040
        %3062 = vmatpush.bf16.msra.mxu0 %v3039
        %3063 = vmatmul.bf16.gmra.mxu0 %v3005
        %v3064 = vpop.f32.mrf.mxu0
        %v3065 = vadd.f32 0.0, %v3064
        %v3066 = vpop.f32.mrf.mxu0
        %v3067 = vadd.f32 0.0, %v3066
        %3068 = vdwg.mxu0
        %v3085 = vunpack.c.l.b16 %v2888
        %v3086 = vunpack.c.l.b16 %v2889
        %v3087 = vunpack.c.l.b16 %v2890
        %v3088 = vunpack.c.l.b16 %v2891
        %v3089 = vunpack.c.l.b16 %v2892
        %v3090 = vunpack.c.l.b16 %v2893
        %v3091 = vunpack.c.l.b16 %v2894
        %v3092 = vunpack.c.l.b16 %v2895
        %v3093 = vunpack.c.l.b16 %v2896
        %v3094 = vunpack.c.l.b16 %v2897
        %v3095 = vunpack.c.l.b16 %v2898
        %v3096 = vunpack.c.l.b16 %v2899
        %v3097 = vunpack.c.l.b16 %v2900
        %v3098 = vunpack.c.l.b16 %v2901
        %v3099 = vunpack.c.l.b16 %v2902
        %v3100 = vunpack.c.l.b16 %v2903
        %v3101 = vsel %vm2984, %v3086, %v3085
        %v3102 = vsel %vm2986, %v3087, %v3101
        %v3103 = vsel %vm2988, %v3088, %v3102
        %v3104 = vsel %vm2990, %v3089, %v3103
        %v3105 = vsel %vm2992, %v3090, %v3104
        %v3106 = vsel %vm2994, %v3091, %v3105
        %v3107 = vsel %vm2996, %v3092, %v3106
        %v3108 = vsel %vm2984, %v3094, %v3093
        %v3109 = vsel %vm2986, %v3095, %v3108
        %v3110 = vsel %vm2988, %v3096, %v3109
        %v3111 = vsel %vm2990, %v3097, %v3110
        %v3112 = vsel %vm2992, %v3098, %v3111
        %v3113 = vsel %vm2994, %v3099, %v3112
        %v3114 = vsel %vm2996, %v3100, %v3113
        %v3115 = vpack.c.b16 %v3114, %v3107
        %v3133 = vunpack.c.l.b16 %v2904
        %v3134 = vunpack.c.l.b16 %v2905
        %v3135 = vunpack.c.l.b16 %v2906
        %v3136 = vunpack.c.l.b16 %v2907
        %v3137 = vunpack.c.l.b16 %v2908
        %v3138 = vunpack.c.l.b16 %v2909
        %v3139 = vunpack.c.l.b16 %v2910
        %v3140 = vunpack.c.l.b16 %v2911
        %v3141 = vunpack.c.l.b16 %v2912
        %v3142 = vunpack.c.l.b16 %v2913
        %v3143 = vunpack.c.l.b16 %v2914
        %v3144 = vunpack.c.l.b16 %v2915
        %v3145 = vunpack.c.l.b16 %v2916
        %v3146 = vunpack.c.l.b16 %v2917
        %v3147 = vunpack.c.l.b16 %v2918
        %v3148 = vunpack.c.l.b16 %v2919
        %v3149 = vpack.c.b16 %v3134, %v3133
        %v3150 = vpack.c.b16 %v3136, %v3135
        %v3151 = vpack.c.b16 %v3138, %v3137
        %v3152 = vpack.c.b16 %v3140, %v3139
        %v3153 = vpack.c.b16 %v3142, %v3141
        %v3154 = vpack.c.b16 %v3144, %v3143
        %v3155 = vpack.c.b16 %v3146, %v3145
        %v3156 = vpack.c.b16 %v3148, %v3147
        %3165 = vmatpush.bf16.msra.mxu0 %v3156
        %3166 = vmatpush.bf16.msra.mxu0 %v3155
        %3167 = vmatpush.bf16.msra.mxu0 %v3154
        %3168 = vmatpush.bf16.msra.mxu0 %v3153
        %3169 = vmatpush.bf16.msra.mxu0 %v3152
        %3170 = vmatpush.bf16.msra.mxu0 %v3151
        %3171 = vmatpush.bf16.msra.mxu0 %v3150
        %3172 = vmatpush.bf16.msra.mxu0 %v3149
        %3173 = vmatmul.bf16.gmra.mxu0 %v3115
        %v3174 = vpop.f32.mrf.mxu0
        %v3175 = vadd.f32 %v3065, %v3174
        %v3176 = vpop.f32.mrf.mxu0
        %v3177 = vadd.f32 %v3067, %v3176
        %3178 = vdwg.mxu0
        %v3179 = vpack.c.bf16 %v2872, %v2872
        %v3180 = vpack.c.bf16 %v2873, %v2873
        %v3181 = vpack.c.bf16 %v2874, %v2874
        %v3182 = vpack.c.bf16 %v2875, %v2875
        %v3183 = vpack.c.bf16 %v2876, %v2876
        %v3184 = vpack.c.bf16 %v2877, %v2877
        %v3185 = vpack.c.bf16 %v2878, %v2878
        %v3186 = vpack.c.bf16 %v2879, %v2879
        %v3187 = vpack.c.bf16 %v2880, %v2880
        %v3188 = vpack.c.bf16 %v2881, %v2881
        %v3189 = vpack.c.bf16 %v2882, %v2882
        %v3190 = vpack.c.bf16 %v2883, %v2883
        %v3191 = vpack.c.bf16 %v2884, %v2884
        %v3192 = vpack.c.bf16 %v2885, %v2885
        %v3193 = vpack.c.bf16 %v2886, %v2886
        %v3194 = vpack.c.bf16 %v2887, %v2887
        %v3195 = vld [vmem:[%s17] sm:$0xf]
        %v3196 = vld [vmem:[%s17 + $0x4] sm:$0xf]
        %v3197 = vld [vmem:[%s17 + $0x8] sm:$0xf]
        %v3198 = vld [vmem:[%s17 + $0xc] sm:$0xf]
        %v3199 = vld [vmem:[%s17 + $0x10] sm:$0xf]
        %v3200 = vld [vmem:[%s17 + $0x14] sm:$0xf]
        %v3201 = vld [vmem:[%s17 + $0x18] sm:$0xf]
        %v3202 = vld [vmem:[%s17 + $0x1c] sm:$0xf]
        %v3203 = vld [vmem:[%s17 + $0x20] sm:$0xf]
        %v3204 = vld [vmem:[%s17 + $0x24] sm:$0xf]
        %v3205 = vld [vmem:[%s17 + $0x28] sm:$0xf]
        %v3206 = vld [vmem:[%s17 + $0x2c] sm:$0xf]
        %v3207 = vld [vmem:[%s17 + $0x30] sm:$0xf]
        %v3208 = vld [vmem:[%s17 + $0x34] sm:$0xf]
        %v3209 = vld [vmem:[%s17 + $0x38] sm:$0xf]
        %v3210 = vld [vmem:[%s17 + $0x3c] sm:$0xf]
        %v3227 = vunpack.c.l.b16 %v3179
        %v3228 = vunpack.c.l.b16 %v3180
        %v3229 = vunpack.c.l.b16 %v3181
        %v3230 = vunpack.c.l.b16 %v3182
        %v3231 = vunpack.c.l.b16 %v3183
        %v3232 = vunpack.c.l.b16 %v3184
        %v3233 = vunpack.c.l.b16 %v3185
        %v3234 = vunpack.c.l.b16 %v3186
        %v3235 = vunpack.c.l.b16 %v3187
        %v3236 = vunpack.c.l.b16 %v3188
        %v3237 = vunpack.c.l.b16 %v3189
        %v3238 = vunpack.c.l.b16 %v3190
        %v3239 = vunpack.c.l.b16 %v3191
        %v3240 = vunpack.c.l.b16 %v3192
        %v3241 = vunpack.c.l.b16 %v3193
        %v3242 = vunpack.c.l.b16 %v3194
        %v3243 = vsel %vm2984, %v3228, %v3227
        %v3244 = vsel %vm2986, %v3229, %v3243
        %v3245 = vsel %vm2988, %v3230, %v3244
        %v3246 = vsel %vm2990, %v3231, %v3245
        %v3247 = vsel %vm2992, %v3232, %v3246
        %v3248 = vsel %vm2994, %v3233, %v3247
        %v3249 = vsel %vm2996, %v3234, %v3248
        %v3250 = vsel %vm2984, %v3236, %v3235
        %v3251 = vsel %vm2986, %v3237, %v3250
        %v3252 = vsel %vm2988, %v3238, %v3251
        %v3253 = vsel %vm2990, %v3239, %v3252
        %v3254 = vsel %vm2992, %v3240, %v3253
        %v3255 = vsel %vm2994, %v3241, %v3254
        %v3256 = vsel %vm2996, %v3242, %v3255
        %v3257 = vpack.c.b16 %v3256, %v3249
        %v3275 = vunpack.c.l.b16 %v3195
        %v3276 = vunpack.c.l.b16 %v3196
        %v3277 = vunpack.c.l.b16 %v3197
        %v3278 = vunpack.c.l.b16 %v3198
        %v3279 = vunpack.c.l.b16 %v3199
        %v3280 = vunpack.c.l.b16 %v3200
        %v3281 = vunpack.c.l.b16 %v3201
        %v3282 = vunpack.c.l.b16 %v3202
        %v3283 = vunpack.c.l.b16 %v3203
        %v3284 = vunpack.c.l.b16 %v3204
        %v3285 = vunpack.c.l.b16 %v3205
        %v3286 = vunpack.c.l.b16 %v3206
        %v3287 = vunpack.c.l.b16 %v3207
        %v3288 = vunpack.c.l.b16 %v3208
        %v3289 = vunpack.c.l.b16 %v3209
        %v3290 = vunpack.c.l.b16 %v3210
        %v3291 = vpack.c.b16 %v3276, %v3275
        %v3292 = vpack.c.b16 %v3278, %v3277
        %v3293 = vpack.c.b16 %v3280, %v3279
        %v3294 = vpack.c.b16 %v3282, %v3281
        %v3295 = vpack.c.b16 %v3284, %v3283
        %v3296 = vpack.c.b16 %v3286, %v3285
        %v3297 = vpack.c.b16 %v3288, %v3287
        %v3298 = vpack.c.b16 %v3290, %v3289
        %3307 = vmatpush.bf16.msra.mxu0 %v3298
        %3308 = vmatpush.bf16.msra.mxu0 %v3297
        %3309 = vmatpush.bf16.msra.mxu0 %v3296
        %3310 = vmatpush.bf16.msra.mxu0 %v3295
        %3311 = vmatpush.bf16.msra.mxu0 %v3294
        %3312 = vmatpush.bf16.msra.mxu0 %v3293
        %3313 = vmatpush.bf16.msra.mxu0 %v3292
        %3314 = vmatpush.bf16.msra.mxu0 %v3291
        %3315 = vmatmul.bf16.gmra.mxu0 %v3257
        %v3316 = vpop.f32.mrf.mxu0
        %v3317 = vadd.f32 0.0, %v3316
        %v3318 = vpop.f32.mrf.mxu0
        %v3319 = vadd.f32 0.0, %v3318
        %3320 = vdwg.mxu0
        %v3321 = vadd.f32 %v3175, %v3317
        %v3322 = vadd.f32 %v3177, %v3319
        %v3323 = vld [vmem:[%s18] sm:$0x1]
        %v3325 = vperm.slane %v3323, 0
        %v3327 = vadd.f32 %v3321, %v3325
        %v3328 = vadd.f32 %v3322, %v3325
        %v3329 = vmax.f32 %v3327, 0.0
        %v3330 = vmax.f32 %v3328, 0.0
        %v3331 = vpack.c.bf16 %v3330, %v3329
        %v3332 = vld [vmem:[%s19] sm:$0xf]
        %v3333 = vld [vmem:[%s19 + $0x4] sm:$0xf]
        %v3334 = vld [vmem:[%s19 + $0x8] sm:$0xf]
        %v3335 = vld [vmem:[%s19 + $0xc] sm:$0xf]
        %v3336 = vld [vmem:[%s19 + $0x10] sm:$0xf]
        %v3337 = vld [vmem:[%s19 + $0x14] sm:$0xf]
        %v3338 = vld [vmem:[%s19 + $0x18] sm:$0xf]
        %v3339 = vld [vmem:[%s19 + $0x1c] sm:$0xf]
        %v3340 = vld [vmem:[%s19 + $0x20] sm:$0xf]
        %v3341 = vld [vmem:[%s19 + $0x24] sm:$0xf]
        %v3342 = vld [vmem:[%s19 + $0x28] sm:$0xf]
        %v3343 = vld [vmem:[%s19 + $0x2c] sm:$0xf]
        %v3344 = vld [vmem:[%s19 + $0x30] sm:$0xf]
        %v3345 = vld [vmem:[%s19 + $0x34] sm:$0xf]
        %v3346 = vld [vmem:[%s19 + $0x38] sm:$0xf]
        %v3347 = vld [vmem:[%s19 + $0x3c] sm:$0xf]
        %v3348 = vld [vmem:[%s20] sm:$0x1]
        %v3350 = vperm.slane %v3348, 0
        %v3368 = vunpack.c.l.b16 %v3332
        %v3369 = vunpack.c.l.b16 %v3333
        %v3370 = vunpack.c.l.b16 %v3334
        %v3371 = vunpack.c.l.b16 %v3335
        %v3372 = vunpack.c.l.b16 %v3336
        %v3373 = vunpack.c.l.b16 %v3337
        %v3374 = vunpack.c.l.b16 %v3338
        %v3375 = vunpack.c.l.b16 %v3339
        %v3376 = vunpack.c.l.b16 %v3340
        %v3377 = vunpack.c.l.b16 %v3341
        %v3378 = vunpack.c.l.b16 %v3342
        %v3379 = vunpack.c.l.b16 %v3343
        %v3380 = vunpack.c.l.b16 %v3344
        %v3381 = vunpack.c.l.b16 %v3345
        %v3382 = vunpack.c.l.b16 %v3346
        %v3383 = vunpack.c.l.b16 %v3347
        %v3384 = vpack.c.b16 %v3369, %v3368
        %v3385 = vpack.c.b16 %v3371, %v3370
        %v3386 = vpack.c.b16 %v3373, %v3372
        %v3387 = vpack.c.b16 %v3375, %v3374
        %v3388 = vpack.c.b16 %v3377, %v3376
        %v3389 = vpack.c.b16 %v3379, %v3378
        %v3390 = vpack.c.b16 %v3381, %v3380
        %v3391 = vpack.c.b16 %v3383, %v3382
        %3400 = vmatpush.bf16.msra.mxu0 %v3391
        %3401 = vmatpush.bf16.msra.mxu0 %v3390
        %3402 = vmatpush.bf16.msra.mxu0 %v3389
        %3403 = vmatpush.bf16.msra.mxu0 %v3388
        %3404 = vmatpush.bf16.msra.mxu0 %v3387
        %3405 = vmatpush.bf16.msra.mxu0 %v3386
        %3406 = vmatpush.bf16.msra.mxu0 %v3385
        %3407 = vmatpush.bf16.msra.mxu0 %v3384
        %3408 = vmatmul.bf16.gmra.mxu0 %v3331
        %v3409 = vpop.f32.mrf.mxu0
        %v3410 = vadd.f32 %v3350, %v3409
        %v3411 = vpop.f32.mrf.mxu0
        %v3412 = vadd.f32 %v3350, %v3411
        %3413 = vdwg.mxu0
        %v3414 = vmax.f32 %v3410, 0.0
        %v3415 = vmax.f32 %v3412, 0.0
        %v3416 = vld [vmem:[%s21] sm:$0x1]
        %v3418 = vperm.slane %v3416, 0
        %v3420 = vmul.f32 %v3414, %v3418
        %v3421 = vmul.f32 %v3415, %v3418
        %3422 = vadd.xlane.f32.xlu0 %v3420
        %v3423 = vpop.xlane.xlu0 %3422
        %3424 = vadd.xlane.f32.xlu0 %v3421
        %v3425 = vpop.xlane.xlu0 %3424
        %v3426 = vld [vmem:[#allocation2] sm:$0x1]
        %v3428 = vperm.slane %v3426, 0
        %v3430 = vadd.f32 %v3423, %v3428
        %v3431 = vadd.f32 %v3425, %v3428
        %v3432 = vxor.u32 %v3430, 2147483648
        %v3433 = vxor.u32 %v3431, 2147483648
        %v3434 = vmul.f32 %v3432, 1.442695
        %v3435 = vpow.pop %v3434
        %v3436 = vmul.f32 %v3433, 1.442695
        %v3437 = vpow.pop %v3436
        %v3438 = vadd.f32 %v3435, 1.0
        %v3439 = vadd.f32 %v3437, 1.0
        %v3440 = vrcp.pop %v3438
        %v3441 = vmul.f32 %v3438, %v3440
        %v3442 = vsub.f32 1.0, %v3441
        %v3443 = vmul.f32 %v3440, %v3442
        %v3444 = vadd.f32 %v3440, %v3443
        %vm3445 = vweird.f32 %v3438
        %vm3446 = vweird.f32 %v3440
        %vm3447 = vmor %vm3445, %vm3446
        %v3448 = vsel %vm3447, %v3440, %v3444
        %v3449 = vand.u32 2147483647, %v3438
        %vm3450 = vcmp.eq.f32.partialorder %v3449, 8.507059e+37
        %v3451 = vand.u32 %v3438, 2147483648
        %v3452 = vor.u32 1.1754944e-38, %v3451
        %v3453 = vsel %vm3450, %v3452, %v3448
        %v3454 = vmul.f32 1.0, %v3453
        %v3455 = vrcp.pop %v3439
        %v3456 = vmul.f32 %v3439, %v3455
        %v3457 = vsub.f32 1.0, %v3456
        %v3458 = vmul.f32 %v3455, %v3457
        %v3459 = vadd.f32 %v3455, %v3458
        %vm3460 = vweird.f32 %v3439
        %vm3461 = vweird.f32 %v3455
        %vm3462 = vmor %vm3460, %vm3461
        %v3463 = vsel %vm3462, %v3455, %v3459
        %v3464 = vand.u32 2147483647, %v3439
        %vm3465 = vcmp.eq.f32.partialorder %v3464, 8.507059e+37
        %v3466 = vand.u32 %v3439, 2147483648
        %v3467 = vor.u32 1.1754944e-38, %v3466
        %v3468 = vsel %vm3465, %v3467, %v3463
        %v3469 = vmul.f32 1.0, %v3468
        %3470 = vst [vmem:[%s776] sm:$0xff] %v3329
        %3471 = vst [vmem:[%s776 + $0x8] sm:$0xff] %v3330
        %3473 = vset.pattern.permute.xlu0 0
        %3474 = vperm.xlu0 %3473, %v3454
        %v3475 = vpop.permute.xlu0 %3474
        %3478 = vset.pattern.permute.xlu0 0
        %3479 = vperm.xlu0 %3478, %v3469
        %v3480 = vpop.permute.xlu0 %3479
        %3482 = vst [vmem:[%s769] sm:$0xff] %v3475
        %3483 = vst [vmem:[%s769 + $0x8] sm:$0xff] %v3480
        %s3484 = sand.u32 %s550, 1
        %s3485 = scalar_lea.sflag [#allocation4], %s3484
        %s3486 = sand.u32 %s550, 1
        %s3487 = smul.addr %s3486, 16
        %s3488 = scalar_lea.vmem [#allocation3], %s3487
        %s3489 = sand.u32 %s576, 1
        %s3490 = scalar_lea.sflag [#allocation6], %s3489
        %s3491 = sand.u32 %s576, 1
        %s3492 = smul.addr %s3491, 16
        %s3493 = scalar_lea.vmem [#allocation5], %s3492
        // Predicated region
        $region113: #{tpu_custom_call.1} parent=111 // pred_check
          %p3494 = pneg %p560
        $region114: #{tpu_custom_call.1} parent=111 // pred_check_branch
          %3496 = sbr.rel (%p3494) target = $region116
        $region115: #{tpu_custom_call.1} parent=111 // pred_region
          %s3497 = smul.u32 2, %s44
          %3499 = vsyncadd %s3485, 0
          %s3500 = smul.addr %s3497, 8
          %s3501 = scalar_lea.hbm %s23, %s3500
          %s3502 = sshll.u32 %s3488, 4
          %s3503 = int_to_ptr.vmem [resolvable:$true] %s3502
          %s3504 = sshll.u32 %s3501, 4
          %s3505 = int_to_ptr.hbm [resolvable:$true] %s3504
          %3510 = dma.vmem_to_hbm [thread:$0]  %s3503, 256, %s3505, %s3485, 128, 128, 8
        $region116: #{tpu_custom_call.1} parent=111 // pred_fallthru
          _
        // Predicated region
        $region117: #{tpu_custom_call.1} parent=111 // pred_check
          %p3511 = pneg %p586
        $region118: #{tpu_custom_call.1} parent=111 // pred_check_branch
          %3513 = sbr.rel (%p3511) target = $region120
        $region119: #{tpu_custom_call.1} parent=111 // pred_region
          %s3514 = smul.u32 2, %s44
          %3516 = vsyncadd %s3490, 0
          %s3517 = smul.addr %s3514, 8
          %s3518 = scalar_lea.hbm %s24, %s3517
          %s3519 = sshll.u32 %s3493, 4
          %s3520 = int_to_ptr.vmem [resolvable:$true] %s3519
          %s3521 = sshll.u32 %s3518, 4
          %s3522 = int_to_ptr.hbm [resolvable:$true] %s3521
          %3527 = dma.vmem_to_hbm [thread:$0]  %s3520, 256, %s3522, %s3490, 128, 128, 8
        $region120: #{tpu_custom_call.1} parent=111 // pred_fallthru
          _
      $region112: #{tpu_custom_call.1} parent=5 // pred_fallthru
        _
      %p3528 = scmp.le.s32.totalorder 2, %s39
      // Predicated region
      $region121: #{tpu_custom_call.1} parent=5 // pred_check
        %p3529 = pneg %p3528
      $region122: #{tpu_custom_call.1} parent=5 // pred_check_branch
        %3531 = sbr.rel (%p3529) target = $region124
      $region123: #{tpu_custom_call.1} parent=5 // pred_region
        %s3532 = ssub.s32 %s39, 2
        // Predicated region
        $region125: #{tpu_custom_call.1} parent=123 // pred_check
          %p3533 = pneg %p566
        $region126: #{tpu_custom_call.1} parent=123 // pred_check_branch
          %3535 = sbr.rel (%p3533) target = $region128
        $region127: #{tpu_custom_call.1} parent=123 // pred_region
          %s3536 = sand.u32 %s551, 1
          %s3537 = scalar_lea.sflag [#allocation4], %s3536
          %s3538 = sand.u32 %s551, 1
          %s3539 = smul.addr %s3538, 16
          %s3540 = scalar_lea.vmem [#allocation3], %s3539
          %3542 = dma.done %s3537, 256
        $region128: #{tpu_custom_call.1} parent=123 // pred_fallthru
          _
        // Predicated region
        $region129: #{tpu_custom_call.1} parent=123 // pred_check
          %p3543 = pneg %p592
        $region130: #{tpu_custom_call.1} parent=123 // pred_check_branch
          %3545 = sbr.rel (%p3543) target = $region132
        $region131: #{tpu_custom_call.1} parent=123 // pred_region
          %s3546 = sand.u32 %s577, 1
          %s3547 = scalar_lea.sflag [#allocation6], %s3546
          %s3548 = sand.u32 %s577, 1
          %s3549 = smul.addr %s3548, 16
          %s3550 = scalar_lea.vmem [#allocation5], %s3549
          %3552 = dma.done %s3547, 256
        $region132: #{tpu_custom_call.1} parent=123 // pred_fallthru
          _
      $region124: #{tpu_custom_call.1} parent=5 // pred_fallthru
        _
    $region6: #{tpu_custom_call.1} parent=1 // loop_footer
      %s43 = sadd.s32 1, %s39
    $region7: #{tpu_custom_call.1} parent=1 // loop_footer_branch
      %38 = sbr.rel target = $region3
    $region8: #{tpu_custom_call.1} parent=1 // loop_exit
      _
    %3553 = vsyncpa [#allocation4], 1
    %s3554 = scalar_lea.sflag [#allocation4], 1
    %3555 = vsyncpa %s3554, 1
    %3556 = vsyncpa [#allocation6], 1
    %s3557 = scalar_lea.sflag [#allocation6], 1
    %3558 = vsyncpa %s3557, 1

</llo_original>
